<compile_context>
chip_gen: v6e
topology: v6e:2x2x1
jax: 0.10.0
libtpu: 0.0.40
codegen_flags: <defaults>
</compile_context>

<pallas_src>
import functools

import jax
import jax.numpy as jnp
from jax.experimental import pallas as pl
from jax.experimental.pallas import tpu as pltpu

LRELU_SLOPE = 0.2
BN_EPS = 1e-5
TM_MAX = 512                       # patch-matrix rows per grid step
VMEM_LIMIT = 32 * 1024 * 1024      # fits v7x (64 MiB phys) and v5e/v6e


def _round_up(x, m):
    return (x + m - 1) // m * m


def _pick_tile(M):
    """Return (tm, Mp): tile size (multiple of 8) and padded row count."""
    mp8 = _round_up(M, 8)
    tm = min(TM_MAX, mp8)
    return tm, _round_up(M, tm)


# ----------------------------- Pallas kernels -----------------------------

def _mm_bias_lrelu_kernel(p_ref, w_ref, b_ref, o_ref):
    # conv1: matmul + per-row bias (folded label map) + LeakyReLU, bf16 store.
    y = jnp.dot(p_ref[...], w_ref[...], preferred_element_type=jnp.float32)
    y = y + b_ref[...]
    o_ref[...] = jnp.where(y >= 0, y, LRELU_SLOPE * y).astype(o_ref.dtype)


def _mm_sigmoid_kernel(p_ref, w_ref, o_ref):
    y = jnp.dot(p_ref[...], w_ref[...], preferred_element_type=jnp.float32)
    o_ref[...] = jax.nn.sigmoid(y).astype(o_ref.dtype)


def _bn_lrelu_kernel(p_ref, w_ref, g_ref, bt_ref, o_ref, s_ref, ss_ref, *, m_true):
    """Fused conv-matmul + BatchNorm(train stats) + LeakyReLU, single pallas_call.

    grid = (2, gm):  phase 0 accumulates channel sum/sumsq in VMEM scratch,
    phase 1 recomputes the tile's matmul and applies the folded affine + lrelu.
    Zero-padded patch rows contribute 0 to both sums (convs have no bias).
    """
    phase = pl.program_id(0)
    i = pl.program_id(1)
    y = jnp.dot(p_ref[...], w_ref[...], preferred_element_type=jnp.float32)

    @pl.when(phase == 0)
    def _stats():
        @pl.when(i == 0)
        def _init():
            s_ref[...] = jnp.zeros_like(s_ref)
            ss_ref[...] = jnp.zeros_like(ss_ref)
        s_ref[...] += jnp.sum(y, axis=0, keepdims=True)
        ss_ref[...] += jnp.sum(y * y, axis=0, keepdims=True)

    @pl.when(phase == 1)
    def _apply():
        inv_m = 1.0 / m_true
        mean = s_ref[...] * inv_m
        var = jnp.maximum(ss_ref[...] * inv_m - mean * mean, 0.0)   # clamp >= 0
        inv_std = jax.lax.rsqrt(var + BN_EPS)
        scale = g_ref[...] * inv_std
        shift = bt_ref[...] - mean * scale
        z = y * scale + shift
        o_ref[...] = jnp.where(z >= 0, z, LRELU_SLOPE * z).astype(o_ref.dtype)


# --------------------------- tiled matmul wrappers ---------------------------

def _parallel_params():
    return pltpu.CompilerParams(
        dimension_semantics=("parallel",), vmem_limit_bytes=VMEM_LIMIT)


def _conv_matmul_bias_lrelu(cols, w_kn, bias, tm):
    Mp, K = cols.shape
    N = w_kn.shape[1]
    gm = Mp // tm
    return pl.pallas_call(
        _mm_bias_lrelu_kernel,
        out_shape=jax.ShapeDtypeStruct((Mp, N), jnp.bfloat16),
        grid=(gm,),
        in_specs=[pl.BlockSpec((tm, K), lambda i: (i, 0)),
                  pl.BlockSpec((K, N), lambda i: (0, 0)),
                  pl.BlockSpec((tm, N), lambda i: (i, 0))],
        out_specs=pl.BlockSpec((tm, N), lambda i: (i, 0)),
        compiler_params=_parallel_params(),
    )(cols, w_kn, bias)


def _conv_matmul_sigmoid(cols, w_kn, tm):
    Mp, K = cols.shape
    N = w_kn.shape[1]
    gm = Mp // tm
    return pl.pallas_call(
        _mm_sigmoid_kernel,
        out_shape=jax.ShapeDtypeStruct((Mp, N), jnp.float32),
        grid=(gm,),
        in_specs=[pl.BlockSpec((tm, K), lambda i: (i, 0)),
                  pl.BlockSpec((K, N), lambda i: (0, 0))],
        out_specs=pl.BlockSpec((tm, N), lambda i: (i, 0)),
        compiler_params=_parallel_params(),
    )(cols, w_kn)


def _conv_matmul_bn_lrelu(cols, w_kn, gamma, beta, m_true, tm):
    Mp, K = cols.shape
    N = w_kn.shape[1]
    gm = Mp // tm
    kern = functools.partial(_bn_lrelu_kernel, m_true=float(m_true))
    return pl.pallas_call(
        kern,
        out_shape=jax.ShapeDtypeStruct((Mp, N), jnp.bfloat16),
        grid=(2, gm),
        in_specs=[pl.BlockSpec((tm, K), lambda p, i: (i, 0)),
                  pl.BlockSpec((K, N), lambda p, i: (0, 0)),
                  pl.BlockSpec((1, N), lambda p, i: (0, 0)),
                  pl.BlockSpec((1, N), lambda p, i: (0, 0))],
        out_specs=pl.BlockSpec((tm, N), lambda p, i: (i, 0)),
        scratch_shapes=[pltpu.VMEM((1, N), jnp.float32),
                        pltpu.VMEM((1, N), jnp.float32)],
        compiler_params=pltpu.CompilerParams(
            dimension_semantics=("arbitrary", "arbitrary"),
            vmem_limit_bytes=VMEM_LIMIT),
    )(cols, w_kn, gamma, beta)


# ------------------------------- glue (JAX) -------------------------------

def _im2col(x, k, stride, pad):
    """x: (B,H,W,C) -> patch matrix (B*Ho*Wo, k*k*C), flattened as (ki, kj, cin)."""
    if pad:
        x = jnp.pad(x, ((0, 0), (pad, pad), (pad, pad), (0, 0)))
    B, Hp, Wp, C = x.shape
    Ho = (Hp - k) // stride + 1
    Wo = (Wp - k) // stride + 1
    pats = []
    for di in range(k):
        for dj in range(k):
            pats.append(x[:, di:di + stride * Ho:stride,
                          dj:dj + stride * Wo:stride, :])
    cols = jnp.stack(pats, axis=3)                       # (B,Ho,Wo,k*k,C)
    return cols.reshape(B * Ho * Wo, k * k * C), Ho, Wo


def _conv_layer(x, w_kn, k, stride, pad, kind, gamma=None, beta=None, bias=None):
    """x: (B,H,W,Cin) bf16; w_kn: pre-packed (k*k*Cin, Cout) bf16."""
    B = x.shape[0]
    cout = w_kn.shape[1]
    cols, Ho, Wo = _im2col(x, k, stride, pad)
    M = cols.shape[0]
    tm, Mp = _pick_tile(M)
    if Mp != M:
        cols = jnp.pad(cols, ((0, Mp - M), (0, 0)))
    if kind == "bias_lrelu":
        b = bias if Mp == M else jnp.pad(bias, ((0, Mp - M), (0, 0)))
        out = _conv_matmul_bias_lrelu(cols, w_kn, b, tm)
    elif kind == "bn_lrelu":
        out = _conv_matmul_bn_lrelu(cols, w_kn, gamma, beta, float(M), tm)
    elif kind == "sigmoid":
        out = _conv_matmul_sigmoid(cols, w_kn, tm)
    else:
        raise ValueError(kind)
    if Mp != M:
        out = out[:M]
    return out.reshape(B, Ho, Wo, cout)


def discriminator_forward(img_nchw, labels, packed):
    B, nc, H, W = img_nchw.shape

    # ---- label embedding: nn.Linear(num_classes, embed_size) — plain XLA ----
    emb = labels.astype(jnp.float32) @ packed["emb_w"] + packed["emb_b"]   # (B,E)

    # ---- fold the spatially-constant label map into a per-sample conv1 bias ----
    # conv1: 4x4, stride 2, pad 1.  Taps falling into the zero padding are
    # masked out per output row/column (edge-tap correction), so this is exact.
    k, stride, pad = 4, 2, 1
    Ho1 = (H + 2 * pad - k) // stride + 1
    Wo1 = (W + 2 * pad - k) // stride + 1
    t = jnp.einsum("be,ijec->bijc", emb, packed["w1_lab"])       # (B,4,4,ndf) f32
    r = stride * jnp.arange(Ho1)[:, None] + jnp.arange(k)[None, :] - pad
    c = stride * jnp.arange(Wo1)[:, None] + jnp.arange(k)[None, :] - pad
    row_ok = ((r >= 0) & (r < H)).astype(jnp.float32)            # (Ho1, 4)
    col_ok = ((c >= 0) & (c < W)).astype(jnp.float32)            # (Wo1, 4)
    bias1 = jnp.einsum("hi,wj,bijc->bhwc", row_ok, col_ok, t)    # (B,Ho1,Wo1,ndf)
    bias1 = bias1.reshape(B * Ho1 * Wo1, -1)

    # ---- conv stack (image channels only; label part carried by bias1) ----
    x = jnp.transpose(img_nchw, (0, 2, 3, 1)).astype(jnp.bfloat16)   # NHWC bf16
    x = _conv_layer(x, packed["w1_img"], 4, 2, 1, "bias_lrelu", bias=bias1)
    x = _conv_layer(x, packed["w2"], 4, 2, 1, "bn_lrelu", packed["g2"], packed["b2"])
    x = _conv_layer(x, packed["w3"], 4, 2, 1, "bn_lrelu", packed["g3"], packed["b3"])
    x = _conv_layer(x, packed["w4"], 4, 2, 1, "bn_lrelu", packed["g4"], packed["b4"])
    x = _conv_layer(x, packed["w5"], 4, 1, 0, "sigmoid")             # (B,1,1,1) f32
    return x.reshape(-1)                                             # == .view(-1)


def pack_params(params, nc):
    """One-time prep outside the forward: split conv1 into image/label parts and
    pack HWIO conv weights -> (k*k*Cin, Cout) bf16."""
    packed = {"emb_w": params["emb_w"], "emb_b": params["emb_b"]}
    w1 = params["w1"]                                   # (4,4,nc+E,ndf) HWIO
    kk, _, _, ndf = w1.shape
    packed["w1_img"] = w1[:, :, :nc, :].reshape(kk * kk * nc, ndf).astype(jnp.bfloat16)
    packed["w1_lab"] = w1[:, :, nc:, :].astype(jnp.float32)
    for i in range(2, 6):
        w = params[f"w{i}"]
        k, _, cin, cout = w.shape
        packed[f"w{i}"] = w.reshape(k * k * cin, cout).astype(jnp.bfloat16)
    for i in range(2, 5):
        packed[f"g{i}"] = params[f"g{i}"].reshape(1, -1).astype(jnp.float32)
        packed[f"b{i}"] = params[f"b{i}"].reshape(1, -1).astype(jnp.float32)
    return packed


# ------------------------- pure-JAX reference (check) -------------------------

def reference_forward(img_nchw, labels, params):
    B, _, H, W = img_nchw.shape
    E = params["emb_w"].shape[1]
    emb = labels @ params["emb_w"] + params["emb_b"]
    img = jnp.transpose(img_nchw, (0, 2, 3, 1)).astype(jnp.float32)
    x = jnp.concatenate(
        [img, jnp.broadcast_to(emb[:, None, None, :], (B, H, W, E))], axis=-1)

    def conv(x, w, s, p):
        return jax.lax.conv_general_dilated(
            x, w, (s, s), [(p, p), (p, p)],
            dimension_numbers=("NHWC", "HWIO", "NHWC"))

    def bn(x, g, b):
        m = jnp.mean(x, axis=(0, 1, 2), keepdims=True)
        v = jnp.mean((x - m) ** 2, axis=(0, 1, 2), keepdims=True)
        return (x - m) * jax.lax.rsqrt(v + BN_EPS) * g + b

    def lrelu(x):
        return jnp.where(x >= 0, x, LRELU_SLOPE * x)

    x = lrelu(conv(x, params["w1"], 2, 1))
    x = lrelu(bn(conv(x, params["w2"], 2, 1), params["g2"], params["b2"]))
    x = lrelu(bn(conv(x, params["w3"], 2, 1), params["g3"], params["b3"]))
    x = lrelu(bn(conv(x, params["w4"], 2, 1), params["g4"], params["b4"]))
    x = jax.nn.sigmoid(conv(x, params["w5"], 1, 0))
    return x.reshape(-1)


# ------------------------------ params init ------------------------------

def init_params(key, nc, ndf, num_classes, embed_size):
    ks = jax.random.split(key, 14)

    def conv_w(k, cin, cout):       # HWIO  (== PyTorch OIHW .transpose(2,3,1,0))
        return 0.02 * jax.random.normal(k, (4, 4, cin, cout), jnp.float32)

    p = {}
    # nn.Linear(num_classes, embed_size): stored already transposed -> (in, out)
    p["emb_w"] = 0.02 * jax.random.normal(ks[0], (num_classes, embed_size), jnp.float32)
    p["emb_b"] = 0.02 * jax.random.normal(ks[1], (embed_size,), jnp.float32)
    p["w1"] = conv_w(ks[2], nc + embed_size, ndf)
    p["w2"] = conv_w(ks[3], ndf, ndf * 2)
    p["g2"] = 1.0 + 0.02 * jax.random.normal(ks[4], (ndf * 2,), jnp.float32)
    p["b2"] = 0.02 * jax.random.normal(ks[5], (ndf * 2,), jnp.float32)
    p["w3"] = conv_w(ks[6], ndf * 2, ndf * 4)
    p["g3"] = 1.0 + 0.02 * jax.random.normal(ks[7], (ndf * 4,), jnp.float32)
    p["b3"] = 0.02 * jax.random.normal(ks[8], (ndf * 4,), jnp.float32)
    p["w4"] = conv_w(ks[9], ndf * 4, ndf * 8)
    p["g4"] = 1.0 + 0.02 * jax.random.normal(ks[10], (ndf * 8,), jnp.float32)
    p["b4"] = 0.02 * jax.random.normal(ks[11], (ndf * 8,), jnp.float32)
    p["w5"] = conv_w(ks[12], ndf * 8, 1)
    return p


if __name__ == "__main__":
    # DCGAN-style shapes: 64x64 spatial so the final 4x4/stride-1/pad-0 conv -> 1x1.
    B, nc, H, W = 2, 2, 64, 64
    ndf, num_classes, embed_size = 8, 10, 14

    key = jax.random.PRNGKey(0)
    k_img, k_lab, k_par = jax.random.split(key, 3)
    img = jax.random.normal(k_img, (B, nc, H, W), jnp.float32)          # NCHW input
    labels = jax.nn.one_hot(
        jax.random.randint(k_lab, (B,), 0, num_classes), num_classes).astype(jnp.float32)
    params = init_params(k_par, nc, ndf, num_classes, embed_size)
    packed = pack_params(params, nc)                                    # one-time prep

    out = jax.jit(discriminator_forward)(img, labels, packed)
    out = jax.block_until_ready(out)

    ref = jax.block_until_ready(reference_forward(img, labels, params))
    assert out.shape == (B,), out.shape
    # bf16 matmul inputs / activations with f32 accumulation -> loose tolerance.
    assert jnp.allclose(out, ref, rtol=2e-2, atol=2e-2), (out, ref)
    print("KERNEL_OK")
</pallas_src>

<mosaic_0001>
module attributes {stable_mosaic.version = 11 : i64} {
  func.func @_mm_bias_lrelu_kernel(%arg0: i32, %arg1: memref<512x32xbf16, #tpu.memory_space<vmem>>, %arg2: memref<32x8xbf16, #tpu.memory_space<vmem>>, %arg3: memref<512x8xf32, #tpu.memory_space<vmem>>, %arg4: memref<512x8xbf16, #tpu.memory_space<vmem>>) attributes {dimension_semantics = [#tpu.dimension_semantics<parallel>], iteration_bounds = array<i64: 4>, scalar_prefetch = 0 : i64, scratch_operands = 0 : i64, tpu.core_type = #tpu.core_type<tc>, window_params = [{transform_indices = @transform_0, window_bounds = array<i64: 512, 32>}, {pipeline_mode = #tpu.pipeline_mode<synchronous>, transform_indices = @transform_1, window_bounds = array<i64: 32, 8>}, {transform_indices = @transform_2, window_bounds = array<i64: 512, 8>}, {transform_indices = @transform_3, window_bounds = array<i64: 512, 8>}]} {
    %c0 = arith.constant 0 : index
    %c0_0 = arith.constant 0 : index
    %0 = vector.load %arg1[%c0, %c0_0] : memref<512x32xbf16, #tpu.memory_space<vmem>>, vector<512x32xbf16>
    %c0_1 = arith.constant 0 : index
    %c0_2 = arith.constant 0 : index
    %1 = vector.load %arg2[%c0_1, %c0_2] : memref<32x8xbf16, #tpu.memory_space<vmem>>, vector<32x8xbf16>
    %cst = arith.constant dense<0.000000e+00> : vector<512x8xf32>
    %2 = tpu.matmul %0, %1, %cst {dimension_numbers = #tpu.dot_dimension_numbers<[1], [0], [0], [1], [0, 0, 1, 1], [], []>} : vector<512x32xbf16>, vector<32x8xbf16>, vector<512x8xf32> -> vector<512x8xf32>
    %c0_3 = arith.constant 0 : index
    %c0_4 = arith.constant 0 : index
    %3 = vector.load %arg3[%c0_3, %c0_4] : memref<512x8xf32, #tpu.memory_space<vmem>>, vector<512x8xf32>
    %4 = arith.addf %2, %3 : vector<512x8xf32>
    %cst_5 = arith.constant 0.000000e+00 : f32
    %5 = vector.broadcast %cst_5 : f32 to vector<512x8xf32>
    %6 = arith.cmpf oge, %4, %5 : vector<512x8xf32>
    %cst_6 = arith.constant 2.000000e-01 : f32
    %7 = vector.broadcast %cst_6 : f32 to vector<512x8xf32>
    %8 = arith.mulf %7, %4 : vector<512x8xf32>
    %9 = arith.select %6, %4, %8 : vector<512x8xi1>, vector<512x8xf32>
    %10 = arith.truncf %9 : vector<512x8xf32> to vector<512x8xbf16>
    %c0_7 = arith.constant 0 : index
    %c0_8 = arith.constant 0 : index
    %11 = vector.load %arg4[%c0_7, %c0_8] : memref<512x8xbf16, #tpu.memory_space<vmem>>, vector<512x8xbf16>
    tpu.vector_store %arg4[%c0_7, %c0_8], %10 {strides = array<i32>} : memref<512x8xbf16, #tpu.memory_space<vmem>>, vector<512x8xbf16>,
    return
  }
  func.func @transform_0(%arg0: i32) -> (i32, i32) {
    %c0_i32 = arith.constant 0 : i32
    %c0_i32_0 = arith.constant 0 : i32
    return %arg0, %c0_i32 : i32, i32
  }
  func.func @transform_1(%arg0: i32) -> (i32, i32) {
    %c0_i32 = arith.constant 0 : i32
    %c0_i32_0 = arith.constant 0 : i32
    %c0_i32_1 = arith.constant 0 : i32
    return %c0_i32, %c0_i32_0 : i32, i32
  }
  func.func @transform_2(%arg0: i32) -> (i32, i32) {
    %c0_i32 = arith.constant 0 : i32
    %c0_i32_0 = arith.constant 0 : i32
    return %arg0, %c0_i32 : i32, i32
  }
  func.func @transform_3(%arg0: i32) -> (i32, i32) {
    %c0_i32 = arith.constant 0 : i32
    %c0_i32_0 = arith.constant 0 : i32
    return %arg0, %c0_i32 : i32, i32
  }
}

module attributes {stable_mosaic.version = 11 : i64} {
  func.func @_bn_lrelu_kernel(%arg0: i32, %arg1: i32, %arg2: memref<512x128xbf16, #tpu.memory_space<vmem>>, %arg3: memref<128x16xbf16, #tpu.memory_space<vmem>>, %arg4: memref<1x16xf32, #tpu.memory_space<vmem>>, %arg5: memref<1x16xf32, #tpu.memory_space<vmem>>, %arg6: memref<512x16xbf16, #tpu.memory_space<vmem>>, %arg7: memref<1x16xf32, #tpu.memory_space<vmem>>, %arg8: memref<1x16xf32, #tpu.memory_space<vmem>>) attributes {dimension_semantics = [#tpu.dimension_semantics<arbitrary>, #tpu.dimension_semantics<arbitrary>], iteration_bounds = array<i64: 2, 1>, scalar_prefetch = 0 : i64, scratch_operands = 2 : i64, tpu.core_type = #tpu.core_type<tc>, window_params = [{transform_indices = @transform_0, window_bounds = array<i64: 512, 128>}, {pipeline_mode = #tpu.pipeline_mode<synchronous>, transform_indices = @transform_1, window_bounds = array<i64: 128, 16>}, {pipeline_mode = #tpu.pipeline_mode<synchronous>, transform_indices = @transform_2, window_bounds = array<i64: 1, 16>}, {pipeline_mode = #tpu.pipeline_mode<synchronous>, transform_indices = @transform_3, window_bounds = array<i64: 1, 16>}, {transform_indices = @transform_4, window_bounds = array<i64: 512, 16>}]} {
    %c0 = arith.constant 0 : index
    %c0_0 = arith.constant 0 : index
    %0 = vector.load %arg2[%c0, %c0_0] : memref<512x128xbf16, #tpu.memory_space<vmem>>, vector<512x128xbf16>
    %c0_1 = arith.constant 0 : index
    %c0_2 = arith.constant 0 : index
    %1 = vector.load %arg3[%c0_1, %c0_2] : memref<128x16xbf16, #tpu.memory_space<vmem>>, vector<128x16xbf16>
    %cst = arith.constant dense<0.000000e+00> : vector<512x16xf32>
    %2 = tpu.matmul %0, %1, %cst {dimension_numbers = #tpu.dot_dimension_numbers<[1], [0], [0], [1], [0, 0, 1, 1], [], []>} : vector<512x128xbf16>, vector<128x16xbf16>, vector<512x16xf32> -> vector<512x16xf32>
    %c0_i32 = arith.constant 0 : i32
    %3 = arith.cmpi eq, %arg0, %c0_i32 : i32
    %4 = arith.extui %3 : i1 to i32
    %c0_i32_3 = arith.constant 0 : i32
    %5 = arith.cmpi ne, %4, %c0_i32_3 : i32
    scf.if %5 {
      %c0_i32_5 = arith.constant 0 : i32
      %9 = arith.cmpi eq, %arg1, %c0_i32_5 : i32
      %10 = arith.extui %9 : i1 to i32
      %c0_i32_6 = arith.constant 0 : i32
      %11 = arith.cmpi ne, %10, %c0_i32_6 : i32
      scf.if %11 {
        %cst_17 = arith.constant 0.000000e+00 : f32
        %23 = vector.broadcast %cst_17 : f32 to vector<1x16xf32>
        %c0_18 = arith.constant 0 : index
        %c0_19 = arith.constant 0 : index
        %24 = vector.load %arg7[%c0_18, %c0_19] : memref<1x16xf32, #tpu.memory_space<vmem>>, vector<1x16xf32>
        tpu.vector_store %arg7[%c0_18, %c0_19], %23 {strides = array<i32>} : memref<1x16xf32, #tpu.memory_space<vmem>>, vector<1x16xf32>,
        %cst_20 = arith.constant 0.000000e+00 : f32
        %25 = vector.broadcast %cst_20 : f32 to vector<1x16xf32>
        %c0_21 = arith.constant 0 : index
        %c0_22 = arith.constant 0 : index
        %26 = vector.load %arg8[%c0_21, %c0_22] : memref<1x16xf32, #tpu.memory_space<vmem>>, vector<1x16xf32>
        tpu.vector_store %arg8[%c0_21, %c0_22], %25 {strides = array<i32>} : memref<1x16xf32, #tpu.memory_space<vmem>>, vector<1x16xf32>,
      } else {
      }
      %c0_7 = arith.constant 0 : index
      %c0_8 = arith.constant 0 : index
      %12 = vector.load %arg7[%c0_7, %c0_8] : memref<1x16xf32, #tpu.memory_space<vmem>>, vector<1x16xf32>
      %cst_9 = arith.constant dense<0.000000e+00> : vector<16xf32>
      %13 = vector.multi_reduction <add>, %2, %cst_9 [0] : vector<512x16xf32> to vector<16xf32>
      %14 = vector.shape_cast %13 : vector<16xf32> to vector<1x16xf32>
      %15 = arith.addf %12, %14 : vector<1x16xf32>
      %c0_10 = arith.constant 0 : index
      %c0_11 = arith.constant 0 : index
      %16 = vector.load %arg7[%c0_10, %c0_11] : memref<1x16xf32, #tpu.memory_space<vmem>>, vector<1x16xf32>
      tpu.vector_store %arg7[%c0_10, %c0_11], %15 {strides = array<i32>} : memref<1x16xf32, #tpu.memory_space<vmem>>, vector<1x16xf32>,
      %c0_12 = arith.constant 0 : index
      %c0_13 = arith.constant 0 : index
      %17 = vector.load %arg8[%c0_12, %c0_13] : memref<1x16xf32, #tpu.memory_space<vmem>>, vector<1x16xf32>
      %18 = arith.mulf %2, %2 : vector<512x16xf32>
      %cst_14 = arith.constant dense<0.000000e+00> : vector<16xf32>
      %19 = vector.multi_reduction <add>, %18, %cst_14 [0] : vector<512x16xf32> to vector<16xf32>
      %20 = vector.shape_cast %19 : vector<16xf32> to vector<1x16xf32>
      %21 = arith.addf %17, %20 : vector<1x16xf32>
      %c0_15 = arith.constant 0 : index
      %c0_16 = arith.constant 0 : index
      %22 = vector.load %arg8[%c0_15, %c0_16] : memref<1x16xf32, #tpu.memory_space<vmem>>, vector<1x16xf32>
      tpu.vector_store %arg8[%c0_15, %c0_16], %21 {strides = array<i32>} : memref<1x16xf32, #tpu.memory_space<vmem>>, vector<1x16xf32>,
    } else {
    }
    %c1_i32 = arith.constant 1 : i32
    %6 = arith.cmpi eq, %arg0, %c1_i32 : i32
    %7 = arith.extui %6 : i1 to i32
    %c0_i32_4 = arith.constant 0 : i32
    %8 = arith.cmpi ne, %7, %c0_i32_4 : i32
    scf.if %8 {
      %c0_5 = arith.constant 0 : index
      %c0_6 = arith.constant 0 : index
      %9 = vector.load %arg7[%c0_5, %c0_6] : memref<1x16xf32, #tpu.memory_space<vmem>>, vector<1x16xf32>
      %cst_7 = arith.constant 0.001953125 : f32
      %10 = vector.broadcast %cst_7 : f32 to vector<1x16xf32>
      %11 = arith.mulf %9, %10 : vector<1x16xf32>
      %c0_8 = arith.constant 0 : index
      %c0_9 = arith.constant 0 : index
      %12 = vector.load %arg8[%c0_8, %c0_9] : memref<1x16xf32, #tpu.memory_space<vmem>>, vector<1x16xf32>
      %cst_10 = arith.constant 0.001953125 : f32
      %13 = vector.broadcast %cst_10 : f32 to vector<1x16xf32>
      %14 = arith.mulf %12, %13 : vector<1x16xf32>
      %15 = arith.mulf %11, %11 : vector<1x16xf32>
      %16 = arith.subf %14, %15 : vector<1x16xf32>
      %cst_11 = arith.constant 0.000000e+00 : f32
      %17 = vector.broadcast %cst_11 : f32 to vector<1x16xf32>
      %18 = arith.maximumf %16, %17 : vector<1x16xf32>
      %cst_12 = arith.constant 9.99999974E-6 : f32
      %19 = vector.broadcast %cst_12 : f32 to vector<1x16xf32>
      %20 = arith.addf %18, %19 : vector<1x16xf32>
      %21 = math.rsqrt %20 : vector<1x16xf32>
      %c0_13 = arith.constant 0 : index
      %c0_14 = arith.constant 0 : index
      %22 = vector.load %arg4[%c0_13, %c0_14] : memref<1x16xf32, #tpu.memory_space<vmem>>, vector<1x16xf32>
      %23 = arith.mulf %22, %21 : vector<1x16xf32>
      %c0_15 = arith.constant 0 : index
      %c0_16 = arith.constant 0 : index
      %24 = vector.load %arg5[%c0_15, %c0_16] : memref<1x16xf32, #tpu.memory_space<vmem>>, vector<1x16xf32>
      %25 = arith.mulf %11, %23 : vector<1x16xf32>
      %26 = arith.subf %24, %25 : vector<1x16xf32>
      %27 = vector.broadcast %23 : vector<1x16xf32> to vector<512x16xf32>
      %28 = arith.mulf %2, %27 : vector<512x16xf32>
      %29 = vector.broadcast %26 : vector<1x16xf32> to vector<512x16xf32>
      %30 = arith.addf %28, %29 : vector<512x16xf32>
      %cst_17 = arith.constant 0.000000e+00 : f32
      %31 = vector.broadcast %cst_17 : f32 to vector<512x16xf32>
      %32 = arith.cmpf oge, %30, %31 : vector<512x16xf32>
      %cst_18 = arith.constant 2.000000e-01 : f32
      %33 = vector.broadcast %cst_18 : f32 to vector<512x16xf32>
      %34 = arith.mulf %33, %30 : vector<512x16xf32>
      %35 = arith.select %32, %30, %34 : vector<512x16xi1>, vector<512x16xf32>
      %36 = arith.truncf %35 : vector<512x16xf32> to vector<512x16xbf16>
      %c0_19 = arith.constant 0 : index
      %c0_20 = arith.constant 0 : index
      %37 = vector.load %arg6[%c0_19, %c0_20] : memref<512x16xbf16, #tpu.memory_space<vmem>>, vector<512x16xbf16>
      tpu.vector_store %arg6[%c0_19, %c0_20], %36 {strides = array<i32>} : memref<512x16xbf16, #tpu.memory_space<vmem>>, vector<512x16xbf16>,
    } else {
    }
    return
  }
  func.func @transform_0(%arg0: i32, %arg1: i32) -> (i32, i32) {
    %c0_i32 = arith.constant 0 : i32
    %c0_i32_0 = arith.constant 0 : i32
    return %arg1, %c0_i32 : i32, i32
  }
  func.func @transform_1(%arg0: i32, %arg1: i32) -> (i32, i32) {
    %c0_i32 = arith.constant 0 : i32
    %c0_i32_0 = arith.constant 0 : i32
    %c0_i32_1 = arith.constant 0 : i32
    return %c0_i32, %c0_i32_0 : i32, i32
  }
  func.func @transform_2(%arg0: i32, %arg1: i32) -> (i32, i32) {
    %c0_i32 = arith.constant 0 : i32
    %c0_i32_0 = arith.constant 0 : i32
    %c0_i32_1 = arith.constant 0 : i32
    return %c0_i32, %c0_i32_0 : i32, i32
  }
  func.func @transform_3(%arg0: i32, %arg1: i32) -> (i32, i32) {
    %c0_i32 = arith.constant 0 : i32
    %c0_i32_0 = arith.constant 0 : i32
    %c0_i32_1 = arith.constant 0 : i32
    return %c0_i32, %c0_i32_0 : i32, i32
  }
  func.func @transform_4(%arg0: i32, %arg1: i32) -> (i32, i32) {
    %c0_i32 = arith.constant 0 : i32
    %c0_i32_0 = arith.constant 0 : i32
    return %arg1, %c0_i32 : i32, i32
  }
}

module attributes {stable_mosaic.version = 11 : i64} {
  func.func @_bn_lrelu_kernel(%arg0: i32, %arg1: i32, %arg2: memref<128x256xbf16, #tpu.memory_space<vmem>>, %arg3: memref<256x32xbf16, #tpu.memory_space<vmem>>, %arg4: memref<1x32xf32, #tpu.memory_space<vmem>>, %arg5: memref<1x32xf32, #tpu.memory_space<vmem>>, %arg6: memref<128x32xbf16, #tpu.memory_space<vmem>>, %arg7: memref<1x32xf32, #tpu.memory_space<vmem>>, %arg8: memref<1x32xf32, #tpu.memory_space<vmem>>) attributes {dimension_semantics = [#tpu.dimension_semantics<arbitrary>, #tpu.dimension_semantics<arbitrary>], iteration_bounds = array<i64: 2, 1>, scalar_prefetch = 0 : i64, scratch_operands = 2 : i64, tpu.core_type = #tpu.core_type<tc>, window_params = [{transform_indices = @transform_0, window_bounds = array<i64: 128, 256>}, {pipeline_mode = #tpu.pipeline_mode<synchronous>, transform_indices = @transform_1, window_bounds = array<i64: 256, 32>}, {pipeline_mode = #tpu.pipeline_mode<synchronous>, transform_indices = @transform_2, window_bounds = array<i64: 1, 32>}, {pipeline_mode = #tpu.pipeline_mode<synchronous>, transform_indices = @transform_3, window_bounds = array<i64: 1, 32>}, {transform_indices = @transform_4, window_bounds = array<i64: 128, 32>}]} {
    %c0 = arith.constant 0 : index
    %c0_0 = arith.constant 0 : index
    %0 = vector.load %arg2[%c0, %c0_0] : memref<128x256xbf16, #tpu.memory_space<vmem>>, vector<128x256xbf16>
    %c0_1 = arith.constant 0 : index
    %c0_2 = arith.constant 0 : index
    %1 = vector.load %arg3[%c0_1, %c0_2] : memref<256x32xbf16, #tpu.memory_space<vmem>>, vector<256x32xbf16>
    %cst = arith.constant dense<0.000000e+00> : vector<128x32xf32>
    %2 = tpu.matmul %0, %1, %cst {dimension_numbers = #tpu.dot_dimension_numbers<[1], [0], [0], [1], [0, 0, 1, 1], [], []>} : vector<128x256xbf16>, vector<256x32xbf16>, vector<128x32xf32> -> vector<128x32xf32>
    %c0_i32 = arith.constant 0 : i32
    %3 = arith.cmpi eq, %arg0, %c0_i32 : i32
    %4 = arith.extui %3 : i1 to i32
    %c0_i32_3 = arith.constant 0 : i32
    %5 = arith.cmpi ne, %4, %c0_i32_3 : i32
    scf.if %5 {
      %c0_i32_5 = arith.constant 0 : i32
      %9 = arith.cmpi eq, %arg1, %c0_i32_5 : i32
      %10 = arith.extui %9 : i1 to i32
      %c0_i32_6 = arith.constant 0 : i32
      %11 = arith.cmpi ne, %10, %c0_i32_6 : i32
      scf.if %11 {
        %cst_17 = arith.constant 0.000000e+00 : f32
        %23 = vector.broadcast %cst_17 : f32 to vector<1x32xf32>
        %c0_18 = arith.constant 0 : index
        %c0_19 = arith.constant 0 : index
        %24 = vector.load %arg7[%c0_18, %c0_19] : memref<1x32xf32, #tpu.memory_space<vmem>>, vector<1x32xf32>
        tpu.vector_store %arg7[%c0_18, %c0_19], %23 {strides = array<i32>} : memref<1x32xf32, #tpu.memory_space<vmem>>, vector<1x32xf32>,
        %cst_20 = arith.constant 0.000000e+00 : f32
        %25 = vector.broadcast %cst_20 : f32 to vector<1x32xf32>
        %c0_21 = arith.constant 0 : index
        %c0_22 = arith.constant 0 : index
        %26 = vector.load %arg8[%c0_21, %c0_22] : memref<1x32xf32, #tpu.memory_space<vmem>>, vector<1x32xf32>
        tpu.vector_store %arg8[%c0_21, %c0_22], %25 {strides = array<i32>} : memref<1x32xf32, #tpu.memory_space<vmem>>, vector<1x32xf32>,
      } else {
      }
      %c0_7 = arith.constant 0 : index
      %c0_8 = arith.constant 0 : index
      %12 = vector.load %arg7[%c0_7, %c0_8] : memref<1x32xf32, #tpu.memory_space<vmem>>, vector<1x32xf32>
      %cst_9 = arith.constant dense<0.000000e+00> : vector<32xf32>
      %13 = vector.multi_reduction <add>, %2, %cst_9 [0] : vector<128x32xf32> to vector<32xf32>
      %14 = vector.shape_cast %13 : vector<32xf32> to vector<1x32xf32>
      %15 = arith.addf %12, %14 : vector<1x32xf32>
      %c0_10 = arith.constant 0 : index
      %c0_11 = arith.constant 0 : index
      %16 = vector.load %arg7[%c0_10, %c0_11] : memref<1x32xf32, #tpu.memory_space<vmem>>, vector<1x32xf32>
      tpu.vector_store %arg7[%c0_10, %c0_11], %15 {strides = array<i32>} : memref<1x32xf32, #tpu.memory_space<vmem>>, vector<1x32xf32>,
      %c0_12 = arith.constant 0 : index
      %c0_13 = arith.constant 0 : index
      %17 = vector.load %arg8[%c0_12, %c0_13] : memref<1x32xf32, #tpu.memory_space<vmem>>, vector<1x32xf32>
      %18 = arith.mulf %2, %2 : vector<128x32xf32>
      %cst_14 = arith.constant dense<0.000000e+00> : vector<32xf32>
      %19 = vector.multi_reduction <add>, %18, %cst_14 [0] : vector<128x32xf32> to vector<32xf32>
      %20 = vector.shape_cast %19 : vector<32xf32> to vector<1x32xf32>
      %21 = arith.addf %17, %20 : vector<1x32xf32>
      %c0_15 = arith.constant 0 : index
      %c0_16 = arith.constant 0 : index
      %22 = vector.load %arg8[%c0_15, %c0_16] : memref<1x32xf32, #tpu.memory_space<vmem>>, vector<1x32xf32>
      tpu.vector_store %arg8[%c0_15, %c0_16], %21 {strides = array<i32>} : memref<1x32xf32, #tpu.memory_space<vmem>>, vector<1x32xf32>,
    } else {
    }
    %c1_i32 = arith.constant 1 : i32
    %6 = arith.cmpi eq, %arg0, %c1_i32 : i32
    %7 = arith.extui %6 : i1 to i32
    %c0_i32_4 = arith.constant 0 : i32
    %8 = arith.cmpi ne, %7, %c0_i32_4 : i32
    scf.if %8 {
      %c0_5 = arith.constant 0 : index
      %c0_6 = arith.constant 0 : index
      %9 = vector.load %arg7[%c0_5, %c0_6] : memref<1x32xf32, #tpu.memory_space<vmem>>, vector<1x32xf32>
      %cst_7 = arith.constant 7.812500e-03 : f32
      %10 = vector.broadcast %cst_7 : f32 to vector<1x32xf32>
      %11 = arith.mulf %9, %10 : vector<1x32xf32>
      %c0_8 = arith.constant 0 : index
      %c0_9 = arith.constant 0 : index
      %12 = vector.load %arg8[%c0_8, %c0_9] : memref<1x32xf32, #tpu.memory_space<vmem>>, vector<1x32xf32>
      %cst_10 = arith.constant 7.812500e-03 : f32
      %13 = vector.broadcast %cst_10 : f32 to vector<1x32xf32>
      %14 = arith.mulf %12, %13 : vector<1x32xf32>
      %15 = arith.mulf %11, %11 : vector<1x32xf32>
      %16 = arith.subf %14, %15 : vector<1x32xf32>
      %cst_11 = arith.constant 0.000000e+00 : f32
      %17 = vector.broadcast %cst_11 : f32 to vector<1x32xf32>
      %18 = arith.maximumf %16, %17 : vector<1x32xf32>
      %cst_12 = arith.constant 9.99999974E-6 : f32
      %19 = vector.broadcast %cst_12 : f32 to vector<1x32xf32>
      %20 = arith.addf %18, %19 : vector<1x32xf32>
      %21 = math.rsqrt %20 : vector<1x32xf32>
      %c0_13 = arith.constant 0 : index
      %c0_14 = arith.constant 0 : index
      %22 = vector.load %arg4[%c0_13, %c0_14] : memref<1x32xf32, #tpu.memory_space<vmem>>, vector<1x32xf32>
      %23 = arith.mulf %22, %21 : vector<1x32xf32>
      %c0_15 = arith.constant 0 : index
      %c0_16 = arith.constant 0 : index
      %24 = vector.load %arg5[%c0_15, %c0_16] : memref<1x32xf32, #tpu.memory_space<vmem>>, vector<1x32xf32>
      %25 = arith.mulf %11, %23 : vector<1x32xf32>
      %26 = arith.subf %24, %25 : vector<1x32xf32>
      %27 = vector.broadcast %23 : vector<1x32xf32> to vector<128x32xf32>
      %28 = arith.mulf %2, %27 : vector<128x32xf32>
      %29 = vector.broadcast %26 : vector<1x32xf32> to vector<128x32xf32>
      %30 = arith.addf %28, %29 : vector<128x32xf32>
      %cst_17 = arith.constant 0.000000e+00 : f32
      %31 = vector.broadcast %cst_17 : f32 to vector<128x32xf32>
      %32 = arith.cmpf oge, %30, %31 : vector<128x32xf32>
      %cst_18 = arith.constant 2.000000e-01 : f32
      %33 = vector.broadcast %cst_18 : f32 to vector<128x32xf32>
      %34 = arith.mulf %33, %30 : vector<128x32xf32>
      %35 = arith.select %32, %30, %34 : vector<128x32xi1>, vector<128x32xf32>
      %36 = arith.truncf %35 : vector<128x32xf32> to vector<128x32xbf16>
      %c0_19 = arith.constant 0 : index
      %c0_20 = arith.constant 0 : index
      %37 = vector.load %arg6[%c0_19, %c0_20] : memref<128x32xbf16, #tpu.memory_space<vmem>>, vector<128x32xbf16>
      tpu.vector_store %arg6[%c0_19, %c0_20], %36 {strides = array<i32>} : memref<128x32xbf16, #tpu.memory_space<vmem>>, vector<128x32xbf16>,
    } else {
    }
    return
  }
  func.func @transform_0(%arg0: i32, %arg1: i32) -> (i32, i32) {
    %c0_i32 = arith.constant 0 : i32
    %c0_i32_0 = arith.constant 0 : i32
    return %arg1, %c0_i32 : i32, i32
  }
  func.func @transform_1(%arg0: i32, %arg1: i32) -> (i32, i32) {
    %c0_i32 = arith.constant 0 : i32
    %c0_i32_0 = arith.constant 0 : i32
    %c0_i32_1 = arith.constant 0 : i32
    return %c0_i32, %c0_i32_0 : i32, i32
  }
  func.func @transform_2(%arg0: i32, %arg1: i32) -> (i32, i32) {
    %c0_i32 = arith.constant 0 : i32
    %c0_i32_0 = arith.constant 0 : i32
    %c0_i32_1 = arith.constant 0 : i32
    return %c0_i32, %c0_i32_0 : i32, i32
  }
  func.func @transform_3(%arg0: i32, %arg1: i32) -> (i32, i32) {
    %c0_i32 = arith.constant 0 : i32
    %c0_i32_0 = arith.constant 0 : i32
    %c0_i32_1 = arith.constant 0 : i32
    return %c0_i32, %c0_i32_0 : i32, i32
  }
  func.func @transform_4(%arg0: i32, %arg1: i32) -> (i32, i32) {
    %c0_i32 = arith.constant 0 : i32
    %c0_i32_0 = arith.constant 0 : i32
    return %arg1, %c0_i32 : i32, i32
  }
}

module attributes {stable_mosaic.version = 11 : i64} {
  func.func @_bn_lrelu_kernel(%arg0: i32, %arg1: i32, %arg2: memref<32x512xbf16, #tpu.memory_space<vmem>>, %arg3: memref<512x64xbf16, #tpu.memory_space<vmem>>, %arg4: memref<1x64xf32, #tpu.memory_space<vmem>>, %arg5: memref<1x64xf32, #tpu.memory_space<vmem>>, %arg6: memref<32x64xbf16, #tpu.memory_space<vmem>>, %arg7: memref<1x64xf32, #tpu.memory_space<vmem>>, %arg8: memref<1x64xf32, #tpu.memory_space<vmem>>) attributes {dimension_semantics = [#tpu.dimension_semantics<arbitrary>, #tpu.dimension_semantics<arbitrary>], iteration_bounds = array<i64: 2, 1>, scalar_prefetch = 0 : i64, scratch_operands = 2 : i64, tpu.core_type = #tpu.core_type<tc>, window_params = [{transform_indices = @transform_0, window_bounds = array<i64: 32, 512>}, {pipeline_mode = #tpu.pipeline_mode<synchronous>, transform_indices = @transform_1, window_bounds = array<i64: 512, 64>}, {pipeline_mode = #tpu.pipeline_mode<synchronous>, transform_indices = @transform_2, window_bounds = array<i64: 1, 64>}, {pipeline_mode = #tpu.pipeline_mode<synchronous>, transform_indices = @transform_3, window_bounds = array<i64: 1, 64>}, {transform_indices = @transform_4, window_bounds = array<i64: 32, 64>}]} {
    %c0 = arith.constant 0 : index
    %c0_0 = arith.constant 0 : index
    %0 = vector.load %arg2[%c0, %c0_0] : memref<32x512xbf16, #tpu.memory_space<vmem>>, vector<32x512xbf16>
    %c0_1 = arith.constant 0 : index
    %c0_2 = arith.constant 0 : index
    %1 = vector.load %arg3[%c0_1, %c0_2] : memref<512x64xbf16, #tpu.memory_space<vmem>>, vector<512x64xbf16>
    %cst = arith.constant dense<0.000000e+00> : vector<32x64xf32>
    %2 = tpu.matmul %0, %1, %cst {dimension_numbers = #tpu.dot_dimension_numbers<[1], [0], [0], [1], [0, 0, 1, 1], [], []>} : vector<32x512xbf16>, vector<512x64xbf16>, vector<32x64xf32> -> vector<32x64xf32>
    %c0_i32 = arith.constant 0 : i32
    %3 = arith.cmpi eq, %arg0, %c0_i32 : i32
    %4 = arith.extui %3 : i1 to i32
    %c0_i32_3 = arith.constant 0 : i32
    %5 = arith.cmpi ne, %4, %c0_i32_3 : i32
    scf.if %5 {
      %c0_i32_5 = arith.constant 0 : i32
      %9 = arith.cmpi eq, %arg1, %c0_i32_5 : i32
      %10 = arith.extui %9 : i1 to i32
      %c0_i32_6 = arith.constant 0 : i32
      %11 = arith.cmpi ne, %10, %c0_i32_6 : i32
      scf.if %11 {
        %cst_17 = arith.constant 0.000000e+00 : f32
        %23 = vector.broadcast %cst_17 : f32 to vector<1x64xf32>
        %c0_18 = arith.constant 0 : index
        %c0_19 = arith.constant 0 : index
        %24 = vector.load %arg7[%c0_18, %c0_19] : memref<1x64xf32, #tpu.memory_space<vmem>>, vector<1x64xf32>
        tpu.vector_store %arg7[%c0_18, %c0_19], %23 {strides = array<i32>} : memref<1x64xf32, #tpu.memory_space<vmem>>, vector<1x64xf32>,
        %cst_20 = arith.constant 0.000000e+00 : f32
        %25 = vector.broadcast %cst_20 : f32 to vector<1x64xf32>
        %c0_21 = arith.constant 0 : index
        %c0_22 = arith.constant 0 : index
        %26 = vector.load %arg8[%c0_21, %c0_22] : memref<1x64xf32, #tpu.memory_space<vmem>>, vector<1x64xf32>
        tpu.vector_store %arg8[%c0_21, %c0_22], %25 {strides = array<i32>} : memref<1x64xf32, #tpu.memory_space<vmem>>, vector<1x64xf32>,
      } else {
      }
      %c0_7 = arith.constant 0 : index
      %c0_8 = arith.constant 0 : index
      %12 = vector.load %arg7[%c0_7, %c0_8] : memref<1x64xf32, #tpu.memory_space<vmem>>, vector<1x64xf32>
      %cst_9 = arith.constant dense<0.000000e+00> : vector<64xf32>
      %13 = vector.multi_reduction <add>, %2, %cst_9 [0] : vector<32x64xf32> to vector<64xf32>
      %14 = vector.shape_cast %13 : vector<64xf32> to vector<1x64xf32>
      %15 = arith.addf %12, %14 : vector<1x64xf32>
      %c0_10 = arith.constant 0 : index
      %c0_11 = arith.constant 0 : index
      %16 = vector.load %arg7[%c0_10, %c0_11] : memref<1x64xf32, #tpu.memory_space<vmem>>, vector<1x64xf32>
      tpu.vector_store %arg7[%c0_10, %c0_11], %15 {strides = array<i32>} : memref<1x64xf32, #tpu.memory_space<vmem>>, vector<1x64xf32>,
      %c0_12 = arith.constant 0 : index
      %c0_13 = arith.constant 0 : index
      %17 = vector.load %arg8[%c0_12, %c0_13] : memref<1x64xf32, #tpu.memory_space<vmem>>, vector<1x64xf32>
      %18 = arith.mulf %2, %2 : vector<32x64xf32>
      %cst_14 = arith.constant dense<0.000000e+00> : vector<64xf32>
      %19 = vector.multi_reduction <add>, %18, %cst_14 [0] : vector<32x64xf32> to vector<64xf32>
      %20 = vector.shape_cast %19 : vector<64xf32> to vector<1x64xf32>
      %21 = arith.addf %17, %20 : vector<1x64xf32>
      %c0_15 = arith.constant 0 : index
      %c0_16 = arith.constant 0 : index
      %22 = vector.load %arg8[%c0_15, %c0_16] : memref<1x64xf32, #tpu.memory_space<vmem>>, vector<1x64xf32>
      tpu.vector_store %arg8[%c0_15, %c0_16], %21 {strides = array<i32>} : memref<1x64xf32, #tpu.memory_space<vmem>>, vector<1x64xf32>,
    } else {
    }
    %c1_i32 = arith.constant 1 : i32
    %6 = arith.cmpi eq, %arg0, %c1_i32 : i32
    %7 = arith.extui %6 : i1 to i32
    %c0_i32_4 = arith.constant 0 : i32
    %8 = arith.cmpi ne, %7, %c0_i32_4 : i32
    scf.if %8 {
      %c0_5 = arith.constant 0 : index
      %c0_6 = arith.constant 0 : index
      %9 = vector.load %arg7[%c0_5, %c0_6] : memref<1x64xf32, #tpu.memory_space<vmem>>, vector<1x64xf32>
      %cst_7 = arith.constant 3.125000e-02 : f32
      %10 = vector.broadcast %cst_7 : f32 to vector<1x64xf32>
      %11 = arith.mulf %9, %10 : vector<1x64xf32>
      %c0_8 = arith.constant 0 : index
      %c0_9 = arith.constant 0 : index
      %12 = vector.load %arg8[%c0_8, %c0_9] : memref<1x64xf32, #tpu.memory_space<vmem>>, vector<1x64xf32>
      %cst_10 = arith.constant 3.125000e-02 : f32
      %13 = vector.broadcast %cst_10 : f32 to vector<1x64xf32>
      %14 = arith.mulf %12, %13 : vector<1x64xf32>
      %15 = arith.mulf %11, %11 : vector<1x64xf32>
      %16 = arith.subf %14, %15 : vector<1x64xf32>
      %cst_11 = arith.constant 0.000000e+00 : f32
      %17 = vector.broadcast %cst_11 : f32 to vector<1x64xf32>
      %18 = arith.maximumf %16, %17 : vector<1x64xf32>
      %cst_12 = arith.constant 9.99999974E-6 : f32
      %19 = vector.broadcast %cst_12 : f32 to vector<1x64xf32>
      %20 = arith.addf %18, %19 : vector<1x64xf32>
      %21 = math.rsqrt %20 : vector<1x64xf32>
      %c0_13 = arith.constant 0 : index
      %c0_14 = arith.constant 0 : index
      %22 = vector.load %arg4[%c0_13, %c0_14] : memref<1x64xf32, #tpu.memory_space<vmem>>, vector<1x64xf32>
      %23 = arith.mulf %22, %21 : vector<1x64xf32>
      %c0_15 = arith.constant 0 : index
      %c0_16 = arith.constant 0 : index
      %24 = vector.load %arg5[%c0_15, %c0_16] : memref<1x64xf32, #tpu.memory_space<vmem>>, vector<1x64xf32>
      %25 = arith.mulf %11, %23 : vector<1x64xf32>
      %26 = arith.subf %24, %25 : vector<1x64xf32>
      %27 = vector.broadcast %23 : vector<1x64xf32> to vector<32x64xf32>
      %28 = arith.mulf %2, %27 : vector<32x64xf32>
      %29 = vector.broadcast %26 : vector<1x64xf32> to vector<32x64xf32>
      %30 = arith.addf %28, %29 : vector<32x64xf32>
      %cst_17 = arith.constant 0.000000e+00 : f32
      %31 = vector.broadcast %cst_17 : f32 to vector<32x64xf32>
      %32 = arith.cmpf oge, %30, %31 : vector<32x64xf32>
      %cst_18 = arith.constant 2.000000e-01 : f32
      %33 = vector.broadcast %cst_18 : f32 to vector<32x64xf32>
      %34 = arith.mulf %33, %30 : vector<32x64xf32>
      %35 = arith.select %32, %30, %34 : vector<32x64xi1>, vector<32x64xf32>
      %36 = arith.truncf %35 : vector<32x64xf32> to vector<32x64xbf16>
      %c0_19 = arith.constant 0 : index
      %c0_20 = arith.constant 0 : index
      %37 = vector.load %arg6[%c0_19, %c0_20] : memref<32x64xbf16, #tpu.memory_space<vmem>>, vector<32x64xbf16>
      tpu.vector_store %arg6[%c0_19, %c0_20], %36 {strides = array<i32>} : memref<32x64xbf16, #tpu.memory_space<vmem>>, vector<32x64xbf16>,
    } else {
    }
    return
  }
  func.func @transform_0(%arg0: i32, %arg1: i32) -> (i32, i32) {
    %c0_i32 = arith.constant 0 : i32
    %c0_i32_0 = arith.constant 0 : i32
    return %arg1, %c0_i32 : i32, i32
  }
  func.func @transform_1(%arg0: i32, %arg1: i32) -> (i32, i32) {
    %c0_i32 = arith.constant 0 : i32
    %c0_i32_0 = arith.constant 0 : i32
    %c0_i32_1 = arith.constant 0 : i32
    return %c0_i32, %c0_i32_0 : i32, i32
  }
  func.func @transform_2(%arg0: i32, %arg1: i32) -> (i32, i32) {
    %c0_i32 = arith.constant 0 : i32
    %c0_i32_0 = arith.constant 0 : i32
    %c0_i32_1 = arith.constant 0 : i32
    return %c0_i32, %c0_i32_0 : i32, i32
  }
  func.func @transform_3(%arg0: i32, %arg1: i32) -> (i32, i32) {
    %c0_i32 = arith.constant 0 : i32
    %c0_i32_0 = arith.constant 0 : i32
    %c0_i32_1 = arith.constant 0 : i32
    return %c0_i32, %c0_i32_0 : i32, i32
  }
  func.func @transform_4(%arg0: i32, %arg1: i32) -> (i32, i32) {
    %c0_i32 = arith.constant 0 : i32
    %c0_i32_0 = arith.constant 0 : i32
    return %arg1, %c0_i32 : i32, i32
  }
}

module attributes {stable_mosaic.version = 11 : i64} {
  func.func @_mm_sigmoid_kernel(%arg0: i32, %arg1: memref<8x1024xbf16, #tpu.memory_space<vmem>>, %arg2: memref<1024x1xbf16, #tpu.memory_space<vmem>>, %arg3: memref<8x1xf32, #tpu.memory_space<vmem>>) attributes {dimension_semantics = [#tpu.dimension_semantics<parallel>], iteration_bounds = array<i64: 1>, scalar_prefetch = 0 : i64, scratch_operands = 0 : i64, tpu.core_type = #tpu.core_type<tc>, window_params = [{transform_indices = @transform_0, window_bounds = array<i64: 8, 1024>}, {pipeline_mode = #tpu.pipeline_mode<synchronous>, transform_indices = @transform_1, window_bounds = array<i64: 1024, 1>}, {transform_indices = @transform_2, window_bounds = array<i64: 8, 1>}]} {
    %c0 = arith.constant 0 : index
    %c0_0 = arith.constant 0 : index
    %0 = vector.load %arg1[%c0, %c0_0] : memref<8x1024xbf16, #tpu.memory_space<vmem>>, vector<8x1024xbf16>
    %c0_1 = arith.constant 0 : index
    %c0_2 = arith.constant 0 : index
    %1 = vector.load %arg2[%c0_1, %c0_2] : memref<1024x1xbf16, #tpu.memory_space<vmem>>, vector<1024x1xbf16>
    %cst = arith.constant dense<0.000000e+00> : vector<8x1xf32>
    %2 = tpu.matmul %0, %1, %cst {dimension_numbers = #tpu.dot_dimension_numbers<[1], [0], [0], [1], [0, 0, 1, 1], [], []>} : vector<8x1024xbf16>, vector<1024x1xbf16>, vector<8x1xf32> -> vector<8x1xf32>
    %3 = arith.negf %2 : vector<8x1xf32>
    %4 = math.exp %3 : vector<8x1xf32>
    %cst_3 = arith.constant 1.000000e+00 : f32
    %5 = vector.broadcast %cst_3 : f32 to vector<8x1xf32>
    %6 = arith.addf %5, %4 : vector<8x1xf32>
    %7 = arith.divf %5, %6 : vector<8x1xf32>
    %c0_4 = arith.constant 0 : index
    %c0_5 = arith.constant 0 : index
    %8 = vector.load %arg3[%c0_4, %c0_5] : memref<8x1xf32, #tpu.memory_space<vmem>>, vector<8x1xf32>
    tpu.vector_store %arg3[%c0_4, %c0_5], %7 {strides = array<i32>} : memref<8x1xf32, #tpu.memory_space<vmem>>, vector<8x1xf32>,
    return
  }
  func.func @transform_0(%arg0: i32) -> (i32, i32) {
    %c0_i32 = arith.constant 0 : i32
    %c0_i32_0 = arith.constant 0 : i32
    return %arg0, %c0_i32 : i32, i32
  }
  func.func @transform_1(%arg0: i32) -> (i32, i32) {
    %c0_i32 = arith.constant 0 : i32
    %c0_i32_0 = arith.constant 0 : i32
    %c0_i32_1 = arith.constant 0 : i32
    return %c0_i32, %c0_i32_0 : i32, i32
  }
  func.func @transform_2(%arg0: i32) -> (i32, i32) {
    %c0_i32 = arith.constant 0 : i32
    %c0_i32_0 = arith.constant 0 : i32
    return %arg0, %c0_i32 : i32, i32
  }
}

</mosaic_0001>

<llo_original>
// kernel: discriminator_forward.5
$region0: #{discriminator_forward.5}
  #allocation0 [shape = 'u32[]', space=smem, size = 0x4, offset = 0x4, fixed_abs, tag = 'smem constant byte address 0x4 - core index']
  #allocation1 [shape = 'u32[144,128]{1,0:T(1,128)}', space=vmem, size = 0x12000, scoped, tag = 'internal scratch']
  %s0 = inlined_call_operand.vmem [shape: bf16[2048,32], index: 0, kind: input, shape index: {}]
  %s1 = inlined_call_operand.vmem [shape: bf16[32,8], index: 1, kind: input, shape index: {}]
  %s2 = inlined_call_operand.vmem [shape: f32[2048,8], index: 2, kind: input, shape index: {}]
  %s3 = inlined_call_operand.vmem [shape: bf16[2048,8], index: 3, kind: output, shape index: {}]
  %s4 = sld [smem:[#allocation0]]
  $region45: #{discriminator_forward.5} parent=0
    _
  %s6 = ssub.s32 1, %s4
  %s7 = scalar_select 0, %s6, %s4
  loop: start=0, step=1, limit=6
  $region2: #{discriminator_forward.5} parent=0 // loop_pre_header
    _
  $region3: #{discriminator_forward.5} parent=0 // loop_header
    %s9 = sphi 0, %s13
    %p10 = scmp.ge.s32.totalorder %s9, 6
    %s19 = sphi 0, %s21
    %s22 = sphi 0, %s19
    %s23 = sphi 0, %s22
    %s39 = sphi 0, %s23
    %s43 = sphi 0, %s43
    %s45 = sphi 0, %s43
    %s46 = sphi 0, %s45
    %s60 = sphi 0, %s46
    %s66 = sphi 0, %s68
    %s69 = sphi 0, %s66
    %s70 = sphi 0, %s69
    %s86 = sphi 0, %s70
    %s92 = sphi 0, %s94
    %s95 = sphi 0, %s92
    %s96 = sphi 0, %s95
    %s112 = sphi 0, %s96
  $region4: #{discriminator_forward.5} parent=0 // loop_header_branch
    %12 = sbr.rel (%p10) target = $region8
  $region5: #{discriminator_forward.5} parent=0 // loop_body
    %s14 = ssub.s32 %s9, 1
    %s15 = ssub.s32 %s9, 2
    %s16 = sadd.s32 %s9, 1
    %s17 = ssub.s32 %s9, %s16
    %p18 = scmp.eq.s32.totalorder %s17, 0
    %s20 = sadd.s32 %s19, 1
    %s21 = scalar_select %p18, %s19, %s20
    %p24 = pneg %p18
    %p25 = scmp.eq.s32.totalorder %s9, 3
    %p26 = por %p24, %p25
    %p27 = scmp.ne.s32.totalorder %s19, %s22
    %p28 = scmp.eq.s32.totalorder %s9, 0
    %p29 = por %p27, %p28
    %p30 = scmp.ne.s32.totalorder %s19, %s22
    %p31 = scmp.eq.s32.totalorder %s14, 3
    %p32 = por %p30, %p31
    %p33 = scmp.ne.s32.totalorder %s22, %s23
    %p34 = scmp.eq.s32.totalorder %s14, 0
    %p35 = por %p33, %p34
    %p36 = scmp.ne.s32.totalorder %s22, %s23
    %p37 = scmp.eq.s32.totalorder %s15, 3
    %p38 = por %p36, %p37
    %p40 = scmp.ne.s32.totalorder %s23, %s39
    %p41 = scmp.eq.s32.totalorder %s15, 0
    %p42 = por %p40, %p41
    %s44 = sadd.s32 %s43, 1
    %p47 = scmp.eq.s32.totalorder %s9, 3
    %p48 = scmp.ne.s32.totalorder %s43, %s45
    %p49 = scmp.eq.s32.totalorder %s9, 0
    %p50 = por %p48, %p49
    %p51 = scmp.ne.s32.totalorder %s43, %s45
    %p52 = scmp.eq.s32.totalorder %s14, 3
    %p53 = por %p51, %p52
    %p54 = scmp.ne.s32.totalorder %s45, %s46
    %p55 = scmp.eq.s32.totalorder %s14, 0
    %p56 = por %p54, %p55
    %p57 = scmp.ne.s32.totalorder %s45, %s46
    %p58 = scmp.eq.s32.totalorder %s15, 3
    %p59 = por %p57, %p58
    %p61 = scmp.ne.s32.totalorder %s46, %s60
    %p62 = scmp.eq.s32.totalorder %s15, 0
    %p63 = por %p61, %p62
    %s64 = ssub.s32 %s9, %s16
    %p65 = scmp.eq.s32.totalorder %s64, 0
    %s67 = sadd.s32 %s66, 1
    %s68 = scalar_select %p65, %s66, %s67
    %p71 = pneg %p65
    %p72 = scmp.eq.s32.totalorder %s9, 3
    %p73 = por %p71, %p72
    %p74 = scmp.ne.s32.totalorder %s66, %s69
    %p75 = scmp.eq.s32.totalorder %s9, 0
    %p76 = por %p74, %p75
    %p77 = scmp.ne.s32.totalorder %s66, %s69
    %p78 = scmp.eq.s32.totalorder %s14, 3
    %p79 = por %p77, %p78
    %p80 = scmp.ne.s32.totalorder %s69, %s70
    %p81 = scmp.eq.s32.totalorder %s14, 0
    %p82 = por %p80, %p81
    %p83 = scmp.ne.s32.totalorder %s69, %s70
    %p84 = scmp.eq.s32.totalorder %s15, 3
    %p85 = por %p83, %p84
    %p87 = scmp.ne.s32.totalorder %s70, %s86
    %p88 = scmp.eq.s32.totalorder %s15, 0
    %p89 = por %p87, %p88
    %s90 = ssub.s32 %s9, %s16
    %p91 = scmp.eq.s32.totalorder %s90, 0
    %s93 = sadd.s32 %s92, 1
    %s94 = scalar_select %p91, %s92, %s93
    %p97 = pneg %p91
    %p98 = scmp.eq.s32.totalorder %s9, 3
    %p99 = por %p97, %p98
    %p100 = scmp.ne.s32.totalorder %s92, %s95
    %p101 = scmp.eq.s32.totalorder %s9, 0
    %p102 = por %p100, %p101
    %p103 = scmp.ne.s32.totalorder %s92, %s95
    %p104 = scmp.eq.s32.totalorder %s14, 3
    %p105 = por %p103, %p104
    %p106 = scmp.ne.s32.totalorder %s95, %s96
    %p107 = scmp.eq.s32.totalorder %s14, 0
    %p108 = por %p106, %p107
    %p109 = scmp.ne.s32.totalorder %s95, %s96
    %p110 = scmp.eq.s32.totalorder %s15, 3
    %p111 = por %p109, %p110
    %p113 = scmp.ne.s32.totalorder %s96, %s112
    %p114 = scmp.eq.s32.totalorder %s15, 0
    %p115 = por %p113, %p114
    %p116 = scmp.le.s32.totalorder 1, %s9
    %p117 = scmp.lt.s32.totalorder %s9, 5
    %p118 = pnand %p116, %p117
    %p119 = pneg %p118
    // Predicated region
    $region9: #{discriminator_forward.5} parent=5 // pred_check
      _
    $region10: #{discriminator_forward.5} parent=5 // pred_check_branch
      %121 = sbr.rel (%p118) target = $region12
    $region11: #{discriminator_forward.5} parent=5 // pred_region
      %s122 = ssub.s32 %s9, 1
      // Predicated region
      $region13: #{discriminator_forward.5} parent=11 // pred_check
        %p123 = pneg %p56
      $region14: #{discriminator_forward.5} parent=11 // pred_check_branch
        %125 = sbr.rel (%p123) target = $region16
      $region15: #{discriminator_forward.5} parent=11 // pred_region
        _
      $region16: #{discriminator_forward.5} parent=11 // pred_fallthru
        _
    $region12: #{discriminator_forward.5} parent=5 // pred_fallthru
      _
    %p126 = scmp.lt.s32.totalorder %s9, 4
    // Predicated region
    $region17: #{discriminator_forward.5} parent=5 // pred_check
      %p127 = pneg %p126
    $region18: #{discriminator_forward.5} parent=5 // pred_check_branch
      %129 = sbr.rel (%p127) target = $region20
    $region19: #{discriminator_forward.5} parent=5 // pred_region
      // Predicated region
      $region21: #{discriminator_forward.5} parent=19 // pred_check
        %p130 = pneg %p29
      $region22: #{discriminator_forward.5} parent=19 // pred_check_branch
        %132 = sbr.rel (%p130) target = $region24
      $region23: #{discriminator_forward.5} parent=19 // pred_region
        %s133 = smul.u32 64, %s9
        %p134 = scmp.lt.s32.totalorder %s133, 255
        %s135 = scalar_select %p134, %s133, 255
        %s136 = smul.addr %s135, 4
        %s137 = scalar_lea.vmem %s0, %s136
        %s138 = smul.u32 64, %s9
      $region24: #{discriminator_forward.5} parent=19 // pred_fallthru
        _
      // Predicated region
      $region25: #{discriminator_forward.5} parent=19 // pred_check
        %p139 = pneg %p76
      $region26: #{discriminator_forward.5} parent=19 // pred_check_branch
        %141 = sbr.rel (%p139) target = $region28
      $region27: #{discriminator_forward.5} parent=19 // pred_region
        %s142 = smul.u32 64, %s9
        %p143 = scmp.lt.s32.totalorder %s142, 255
        %s144 = scalar_select %p143, %s142, 255
        %s145 = smul.addr %s144, 8
        %s146 = scalar_lea.vmem %s2, %s145
        %s147 = smul.u32 64, %s9
      $region28: #{discriminator_forward.5} parent=19 // pred_fallthru
        _
    $region20: #{discriminator_forward.5} parent=5 // pred_fallthru
      _
    %p148 = scmp.le.s32.totalorder 1, %s9
    %p149 = scmp.lt.s32.totalorder %s9, 5
    %p150 = pnand %p148, %p149
    %p151 = pneg %p150
    // Predicated region
    $region29: #{discriminator_forward.5} parent=5 // pred_check
      _
    $region30: #{discriminator_forward.5} parent=5 // pred_check_branch
      %153 = sbr.rel (%p150) target = $region32
    $region31: #{discriminator_forward.5} parent=5 // pred_region
      %s154 = ssub.s32 %s9, 1
      %s155 = smul.u32 64, %s14
      %p156 = scmp.lt.s32.totalorder %s155, 255
      %s157 = scalar_select %p156, %s155, 255
      %s158 = smul.addr %s157, 4
      %s159 = scalar_lea.vmem %s0, %s158
      %p160 = pneg %p35
      %p161 = pneg %p32
      %p162 = pneg %p56
      %p163 = pneg %p53
      %s164 = smul.u32 64, %s14
      %p165 = scmp.lt.s32.totalorder %s164, 255
      %s166 = scalar_select %p165, %s164, 255
      %s167 = smul.addr %s166, 8
      %s168 = scalar_lea.vmem %s2, %s167
      %p169 = pneg %p82
      %p170 = pneg %p79
      %p171 = pneg %p108
      %p172 = pneg %p105
      %s173 = smul.u32 64, %s14
      %p174 = scmp.lt.s32.totalorder %s173, 255
      %s175 = scalar_select %p174, %s173, 255
      %s176 = smul.addr %s175, 4
      %s177 = scalar_lea.vmem %s3, %s176
      %s178 = smul.u32 64, %s14
      %p179 = scmp.lt.s32.totalorder %s178, 255
      %s180 = scalar_select %p179, %s178, 255
      %s181 = smul.addr %s180, 4
      %s182 = scalar_lea.vmem %s0, %s181
      %s183 = smul.u32 64, %s14
      %s184 = smul.u32 64, %s14
      %p185 = scmp.lt.s32.totalorder %s184, 255
      %s186 = scalar_select %p185, %s184, 255
      %s187 = smul.addr %s186, 8
      %s188 = scalar_lea.vmem %s2, %s187
      %s189 = smul.u32 64, %s14
      %s190 = smul.u32 64, %s14
      %p191 = scmp.lt.s32.totalorder %s190, 255
      %s192 = scalar_select %p191, %s190, 255
      %s193 = smul.addr %s192, 4
      %s194 = scalar_lea.vmem %s3, %s193
      %s195 = smul.u32 64, %s14
      %v197 = vld [vmem:[%s182] sm:$0xf]
      %v198 = vld [vmem:[%s182 + $0x4] sm:$0xf]
      %v199 = vld [vmem:[%s182 + $0x8] sm:$0xf]
      %v200 = vld [vmem:[%s182 + $0xc] sm:$0xf]
      %v201 = vld [vmem:[%s182 + $0x10] sm:$0xf]
      %v202 = vld [vmem:[%s182 + $0x14] sm:$0xf]
      %v203 = vld [vmem:[%s182 + $0x18] sm:$0xf]
      %v204 = vld [vmem:[%s182 + $0x1c] sm:$0xf]
      %v205 = vld [vmem:[%s182 + $0x20] sm:$0xf]
      %v206 = vld [vmem:[%s182 + $0x24] sm:$0xf]
      %v207 = vld [vmem:[%s182 + $0x28] sm:$0xf]
      %v208 = vld [vmem:[%s182 + $0x2c] sm:$0xf]
      %v209 = vld [vmem:[%s182 + $0x30] sm:$0xf]
      %v210 = vld [vmem:[%s182 + $0x34] sm:$0xf]
      %v211 = vld [vmem:[%s182 + $0x38] sm:$0xf]
      %v212 = vld [vmem:[%s182 + $0x3c] sm:$0xf]
      %v213 = vld [vmem:[%s182 + $0x40] sm:$0xf]
      %v214 = vld [vmem:[%s182 + $0x44] sm:$0xf]
      %v215 = vld [vmem:[%s182 + $0x48] sm:$0xf]
      %v216 = vld [vmem:[%s182 + $0x4c] sm:$0xf]
      %v217 = vld [vmem:[%s182 + $0x50] sm:$0xf]
      %v218 = vld [vmem:[%s182 + $0x54] sm:$0xf]
      %v219 = vld [vmem:[%s182 + $0x58] sm:$0xf]
      %v220 = vld [vmem:[%s182 + $0x5c] sm:$0xf]
      %v221 = vld [vmem:[%s182 + $0x60] sm:$0xf]
      %v222 = vld [vmem:[%s182 + $0x64] sm:$0xf]
      %v223 = vld [vmem:[%s182 + $0x68] sm:$0xf]
      %v224 = vld [vmem:[%s182 + $0x6c] sm:$0xf]
      %v225 = vld [vmem:[%s182 + $0x70] sm:$0xf]
      %v226 = vld [vmem:[%s182 + $0x74] sm:$0xf]
      %v227 = vld [vmem:[%s182 + $0x78] sm:$0xf]
      %v228 = vld [vmem:[%s182 + $0x7c] sm:$0xf]
      %v229 = vld [vmem:[%s182 + $0x80] sm:$0xf]
      %v230 = vld [vmem:[%s182 + $0x84] sm:$0xf]
      %v231 = vld [vmem:[%s182 + $0x88] sm:$0xf]
      %v232 = vld [vmem:[%s182 + $0x8c] sm:$0xf]
      %v233 = vld [vmem:[%s182 + $0x90] sm:$0xf]
      %v234 = vld [vmem:[%s182 + $0x94] sm:$0xf]
      %v235 = vld [vmem:[%s182 + $0x98] sm:$0xf]
      %v236 = vld [vmem:[%s182 + $0x9c] sm:$0xf]
      %v237 = vld [vmem:[%s182 + $0xa0] sm:$0xf]
      %v238 = vld [vmem:[%s182 + $0xa4] sm:$0xf]
      %v239 = vld [vmem:[%s182 + $0xa8] sm:$0xf]
      %v240 = vld [vmem:[%s182 + $0xac] sm:$0xf]
      %v241 = vld [vmem:[%s182 + $0xb0] sm:$0xf]
      %v242 = vld [vmem:[%s182 + $0xb4] sm:$0xf]
      %v243 = vld [vmem:[%s182 + $0xb8] sm:$0xf]
      %v244 = vld [vmem:[%s182 + $0xbc] sm:$0xf]
      %v245 = vld [vmem:[%s182 + $0xc0] sm:$0xf]
      %v246 = vld [vmem:[%s182 + $0xc4] sm:$0xf]
      %v247 = vld [vmem:[%s182 + $0xc8] sm:$0xf]
      %v248 = vld [vmem:[%s182 + $0xcc] sm:$0xf]
      %v249 = vld [vmem:[%s182 + $0xd0] sm:$0xf]
      %v250 = vld [vmem:[%s182 + $0xd4] sm:$0xf]
      %v251 = vld [vmem:[%s182 + $0xd8] sm:$0xf]
      %v252 = vld [vmem:[%s182 + $0xdc] sm:$0xf]
      %v253 = vld [vmem:[%s182 + $0xe0] sm:$0xf]
      %v254 = vld [vmem:[%s182 + $0xe4] sm:$0xf]
      %v255 = vld [vmem:[%s182 + $0xe8] sm:$0xf]
      %v256 = vld [vmem:[%s182 + $0xec] sm:$0xf]
      %v257 = vld [vmem:[%s182 + $0xf0] sm:$0xf]
      %v258 = vld [vmem:[%s182 + $0xf4] sm:$0xf]
      %v259 = vld [vmem:[%s182 + $0xf8] sm:$0xf]
      %v260 = vld [vmem:[%s182 + $0xfc] sm:$0xf]
      %v261 = vld [vmem:[%s1] sm:$0xf]
      %v262 = vld [vmem:[%s1 + $0x4] sm:$0xf]
      %v263 = vld [vmem:[%s1 + $0x8] sm:$0xf]
      %v264 = vld [vmem:[%s1 + $0xc] sm:$0xf]
      %v265 = vld [vmem:[%s188] sm:$0xff]
      %v266 = vld [vmem:[%s188 + $0x8] sm:$0xff]
      %v267 = vld [vmem:[%s188 + $0x10] sm:$0xff]
      %v268 = vld [vmem:[%s188 + $0x18] sm:$0xff]
      %v269 = vld [vmem:[%s188 + $0x20] sm:$0xff]
      %v270 = vld [vmem:[%s188 + $0x28] sm:$0xff]
      %v271 = vld [vmem:[%s188 + $0x30] sm:$0xff]
      %v272 = vld [vmem:[%s188 + $0x38] sm:$0xff]
      %v273 = vld [vmem:[%s188 + $0x40] sm:$0xff]
      %v274 = vld [vmem:[%s188 + $0x48] sm:$0xff]
      %v275 = vld [vmem:[%s188 + $0x50] sm:$0xff]
      %v276 = vld [vmem:[%s188 + $0x58] sm:$0xff]
      %v277 = vld [vmem:[%s188 + $0x60] sm:$0xff]
      %v278 = vld [vmem:[%s188 + $0x68] sm:$0xff]
      %v279 = vld [vmem:[%s188 + $0x70] sm:$0xff]
      %v280 = vld [vmem:[%s188 + $0x78] sm:$0xff]
      %v281 = vld [vmem:[%s188 + $0x80] sm:$0xff]
      %v282 = vld [vmem:[%s188 + $0x88] sm:$0xff]
      %v283 = vld [vmem:[%s188 + $0x90] sm:$0xff]
      %v284 = vld [vmem:[%s188 + $0x98] sm:$0xff]
      %v285 = vld [vmem:[%s188 + $0xa0] sm:$0xff]
      %v286 = vld [vmem:[%s188 + $0xa8] sm:$0xff]
      %v287 = vld [vmem:[%s188 + $0xb0] sm:$0xff]
      %v288 = vld [vmem:[%s188 + $0xb8] sm:$0xff]
      %v289 = vld [vmem:[%s188 + $0xc0] sm:$0xff]
      %v290 = vld [vmem:[%s188 + $0xc8] sm:$0xff]
      %v291 = vld [vmem:[%s188 + $0xd0] sm:$0xff]
      %v292 = vld [vmem:[%s188 + $0xd8] sm:$0xff]
      %v293 = vld [vmem:[%s188 + $0xe0] sm:$0xff]
      %v294 = vld [vmem:[%s188 + $0xe8] sm:$0xff]
      %v295 = vld [vmem:[%s188 + $0xf0] sm:$0xff]
      %v296 = vld [vmem:[%s188 + $0xf8] sm:$0xff]
      %v297 = vld [vmem:[%s188 + $0x100] sm:$0xff]
      %v298 = vld [vmem:[%s188 + $0x108] sm:$0xff]
      %v299 = vld [vmem:[%s188 + $0x110] sm:$0xff]
      %v300 = vld [vmem:[%s188 + $0x118] sm:$0xff]
      %v301 = vld [vmem:[%s188 + $0x120] sm:$0xff]
      %v302 = vld [vmem:[%s188 + $0x128] sm:$0xff]
      %v303 = vld [vmem:[%s188 + $0x130] sm:$0xff]
      %v304 = vld [vmem:[%s188 + $0x138] sm:$0xff]
      %v305 = vld [vmem:[%s188 + $0x140] sm:$0xff]
      %v306 = vld [vmem:[%s188 + $0x148] sm:$0xff]
      %v307 = vld [vmem:[%s188 + $0x150] sm:$0xff]
      %v308 = vld [vmem:[%s188 + $0x158] sm:$0xff]
      %v309 = vld [vmem:[%s188 + $0x160] sm:$0xff]
      %v310 = vld [vmem:[%s188 + $0x168] sm:$0xff]
      %v311 = vld [vmem:[%s188 + $0x170] sm:$0xff]
      %v312 = vld [vmem:[%s188 + $0x178] sm:$0xff]
      %v313 = vld [vmem:[%s188 + $0x180] sm:$0xff]
      %v314 = vld [vmem:[%s188 + $0x188] sm:$0xff]
      %v315 = vld [vmem:[%s188 + $0x190] sm:$0xff]
      %v316 = vld [vmem:[%s188 + $0x198] sm:$0xff]
      %v317 = vld [vmem:[%s188 + $0x1a0] sm:$0xff]
      %v318 = vld [vmem:[%s188 + $0x1a8] sm:$0xff]
      %v319 = vld [vmem:[%s188 + $0x1b0] sm:$0xff]
      %v320 = vld [vmem:[%s188 + $0x1b8] sm:$0xff]
      %v321 = vld [vmem:[%s188 + $0x1c0] sm:$0xff]
      %v322 = vld [vmem:[%s188 + $0x1c8] sm:$0xff]
      %v323 = vld [vmem:[%s188 + $0x1d0] sm:$0xff]
      %v324 = vld [vmem:[%s188 + $0x1d8] sm:$0xff]
      %v325 = vld [vmem:[%s188 + $0x1e0] sm:$0xff]
      %v326 = vld [vmem:[%s188 + $0x1e8] sm:$0xff]
      %v327 = vld [vmem:[%s188 + $0x1f0] sm:$0xff]
      %v328 = vld [vmem:[%s188 + $0x1f8] sm:$0xff]
      %v393 = vunpack.c.l.b16 %v197
      %v394 = vunpack.c.l.b16 %v198
      %v395 = vunpack.c.l.b16 %v199
      %v396 = vunpack.c.l.b16 %v200
      %v397 = vunpack.c.l.b16 %v201
      %v398 = vunpack.c.l.b16 %v202
      %v399 = vunpack.c.l.b16 %v203
      %v400 = vunpack.c.l.b16 %v204
      %v401 = vunpack.c.l.b16 %v205
      %v402 = vunpack.c.l.b16 %v206
      %v403 = vunpack.c.l.b16 %v207
      %v404 = vunpack.c.l.b16 %v208
      %v405 = vunpack.c.l.b16 %v209
      %v406 = vunpack.c.l.b16 %v210
      %v407 = vunpack.c.l.b16 %v211
      %v408 = vunpack.c.l.b16 %v212
      %v409 = vunpack.c.l.b16 %v213
      %v410 = vunpack.c.l.b16 %v214
      %v411 = vunpack.c.l.b16 %v215
      %v412 = vunpack.c.l.b16 %v216
      %v413 = vunpack.c.l.b16 %v217
      %v414 = vunpack.c.l.b16 %v218
      %v415 = vunpack.c.l.b16 %v219
      %v416 = vunpack.c.l.b16 %v220
      %v417 = vunpack.c.l.b16 %v221
      %v418 = vunpack.c.l.b16 %v222
      %v419 = vunpack.c.l.b16 %v223
      %v420 = vunpack.c.l.b16 %v224
      %v421 = vunpack.c.l.b16 %v225
      %v422 = vunpack.c.l.b16 %v226
      %v423 = vunpack.c.l.b16 %v227
      %v424 = vunpack.c.l.b16 %v228
      %v425 = vunpack.c.l.b16 %v229
      %v426 = vunpack.c.l.b16 %v230
      %v427 = vunpack.c.l.b16 %v231
      %v428 = vunpack.c.l.b16 %v232
      %v429 = vunpack.c.l.b16 %v233
      %v430 = vunpack.c.l.b16 %v234
      %v431 = vunpack.c.l.b16 %v235
      %v432 = vunpack.c.l.b16 %v236
      %v433 = vunpack.c.l.b16 %v237
      %v434 = vunpack.c.l.b16 %v238
      %v435 = vunpack.c.l.b16 %v239
      %v436 = vunpack.c.l.b16 %v240
      %v437 = vunpack.c.l.b16 %v241
      %v438 = vunpack.c.l.b16 %v242
      %v439 = vunpack.c.l.b16 %v243
      %v440 = vunpack.c.l.b16 %v244
      %v441 = vunpack.c.l.b16 %v245
      %v442 = vunpack.c.l.b16 %v246
      %v443 = vunpack.c.l.b16 %v247
      %v444 = vunpack.c.l.b16 %v248
      %v445 = vunpack.c.l.b16 %v249
      %v446 = vunpack.c.l.b16 %v250
      %v447 = vunpack.c.l.b16 %v251
      %v448 = vunpack.c.l.b16 %v252
      %v449 = vunpack.c.l.b16 %v253
      %v450 = vunpack.c.l.b16 %v254
      %v451 = vunpack.c.l.b16 %v255
      %v452 = vunpack.c.l.b16 %v256
      %v453 = vunpack.c.l.b16 %v257
      %v454 = vunpack.c.l.b16 %v258
      %v455 = vunpack.c.l.b16 %v259
      %v456 = vunpack.c.l.b16 %v260
      %v457 = vpack.c.b16 %v394, %v393
      %v458 = vpack.c.b16 %v396, %v395
      %v459 = vpack.c.b16 %v398, %v397
      %v460 = vpack.c.b16 %v400, %v399
      %v461 = vpack.c.b16 %v402, %v401
      %v462 = vpack.c.b16 %v404, %v403
      %v463 = vpack.c.b16 %v406, %v405
      %v464 = vpack.c.b16 %v408, %v407
      %v465 = vpack.c.b16 %v410, %v409
      %v466 = vpack.c.b16 %v412, %v411
      %v467 = vpack.c.b16 %v414, %v413
      %v468 = vpack.c.b16 %v416, %v415
      %v469 = vpack.c.b16 %v418, %v417
      %v470 = vpack.c.b16 %v420, %v419
      %v471 = vpack.c.b16 %v422, %v421
      %v472 = vpack.c.b16 %v424, %v423
      %v473 = vpack.c.b16 %v426, %v425
      %v474 = vpack.c.b16 %v428, %v427
      %v475 = vpack.c.b16 %v430, %v429
      %v476 = vpack.c.b16 %v432, %v431
      %v477 = vpack.c.b16 %v434, %v433
      %v478 = vpack.c.b16 %v436, %v435
      %v479 = vpack.c.b16 %v438, %v437
      %v480 = vpack.c.b16 %v440, %v439
      %v481 = vpack.c.b16 %v442, %v441
      %v482 = vpack.c.b16 %v444, %v443
      %v483 = vpack.c.b16 %v446, %v445
      %v484 = vpack.c.b16 %v448, %v447
      %v485 = vpack.c.b16 %v450, %v449
      %v486 = vpack.c.b16 %v452, %v451
      %v487 = vpack.c.b16 %v454, %v453
      %v488 = vpack.c.b16 %v456, %v455
      %v493 = vunpack.c.l.b16 %v261
      %v494 = vunpack.c.l.b16 %v262
      %v495 = vunpack.c.l.b16 %v263
      %v496 = vunpack.c.l.b16 %v264
      %v497 = vpack.c.b16 %v494, %v493
      %v498 = vpack.c.b16 %v496, %v495
      %vm501 = vcmask 261120
      %v503 = vsel %vm501, %v457, 0
      %v506 = vsel %vm501, %v458, 0
      %v509 = vsel %vm501, %v459, 0
      %v512 = vsel %vm501, %v460, 0
      %v515 = vsel %vm501, %v461, 0
      %v518 = vsel %vm501, %v462, 0
      %v521 = vsel %vm501, %v463, 0
      %v524 = vsel %vm501, %v464, 0
      %v527 = vsel %vm501, %v465, 0
      %v530 = vsel %vm501, %v466, 0
      %v533 = vsel %vm501, %v467, 0
      %v536 = vsel %vm501, %v468, 0
      %v539 = vsel %vm501, %v469, 0
      %v542 = vsel %vm501, %v470, 0
      %v545 = vsel %vm501, %v471, 0
      %v548 = vsel %vm501, %v472, 0
      %v551 = vsel %vm501, %v473, 0
      %v554 = vsel %vm501, %v474, 0
      %v557 = vsel %vm501, %v475, 0
      %v560 = vsel %vm501, %v476, 0
      %v563 = vsel %vm501, %v477, 0
      %v566 = vsel %vm501, %v478, 0
      %v569 = vsel %vm501, %v479, 0
      %v572 = vsel %vm501, %v480, 0
      %v575 = vsel %vm501, %v481, 0
      %v578 = vsel %vm501, %v482, 0
      %v581 = vsel %vm501, %v483, 0
      %v584 = vsel %vm501, %v484, 0
      %v587 = vsel %vm501, %v485, 0
      %v590 = vsel %vm501, %v486, 0
      %v593 = vsel %vm501, %v487, 0
      %v596 = vsel %vm501, %v488, 0
      %598 = vmatprep.subr.bf16.mxu0 0
      %599 = vmatpush1.bf16.msra.mxu0 0
      %600 = vmatprep.subr.bf16.mxu0 0
      %601 = vmatpush1.bf16.msra.mxu0 0
      %602 = vmatprep.subr.bf16.mxu0 0
      %603 = vmatpush1.bf16.msra.mxu0 0
      %604 = vmatprep.subr.bf16.mxu0 0
      %605 = vmatpush1.bf16.msra.mxu0 0
      %606 = vmatprep.subr.bf16.mxu0 0
      %607 = vmatpush1.bf16.msra.mxu0 0
      %608 = vmatprep.subr.bf16.mxu0 0
      %609 = vmatpush1.bf16.msra.mxu0 0
      %610 = vmatprep.subr.bf16.mxu0 0
      %611 = vmatpush1.bf16.msra.mxu0 %v498
      %612 = vmatprep.subr.bf16.mxu0 0
      %613 = vmatpush1.bf16.msra.mxu0 %v497
      %614 = vmatprep.subr.bf16.mxu0 0
      %615 = vmatpush2.bf16.msra.mxu0 0
      %616 = vmatprep.subr.bf16.mxu0 0
      %617 = vmatpush2.bf16.msra.mxu0 0
      %618 = vmatprep.subr.bf16.mxu0 0
      %619 = vmatpush2.bf16.msra.mxu0 0
      %620 = vmatprep.subr.bf16.mxu0 0
      %621 = vmatpush2.bf16.msra.mxu0 0
      %622 = vmatprep.subr.bf16.mxu0 0
      %623 = vmatpush2.bf16.msra.mxu0 0
      %624 = vmatprep.subr.bf16.mxu0 0
      %625 = vmatpush2.bf16.msra.mxu0 0
      %626 = vmatprep.subr.bf16.mxu0 0
      %627 = vmatpush2.bf16.msra.mxu0 0
      %628 = vmatprep.subr.bf16.mxu0 0
      %629 = vmatpush2.bf16.msra.mxu0 0
      %630 = vmatprep.mubr.bf16.mxu0 0
      %631 = vmatmul.mubr.bf16.gmra.mxu0 %v503
      %v632 = vpop.f32.mrf.mxu0
      %v633 = vadd.f32 %v265, %v632
      %v634 = vpop.f32.mrf.mxu0
      %v635 = vpop.f32.mrf.mxu0
      %v636 = vadd.f32 %v266, %v635
      %v637 = vpop.f32.mrf.mxu0
      %638 = vmatprep.mubr.bf16.mxu0 0
      %639 = vmatmul.mubr.bf16.gmra.mxu0 %v506
      %v640 = vpop.f32.mrf.mxu0
      %v641 = vadd.f32 %v267, %v640
      %v642 = vpop.f32.mrf.mxu0
      %v643 = vpop.f32.mrf.mxu0
      %v644 = vadd.f32 %v268, %v643
      %v645 = vpop.f32.mrf.mxu0
      %646 = vmatprep.mubr.bf16.mxu0 0
      %647 = vmatmul.mubr.bf16.gmra.mxu0 %v509
      %v648 = vpop.f32.mrf.mxu0
      %v649 = vadd.f32 %v269, %v648
      %v650 = vpop.f32.mrf.mxu0
      %v651 = vpop.f32.mrf.mxu0
      %v652 = vadd.f32 %v270, %v651
      %v653 = vpop.f32.mrf.mxu0
      %654 = vmatprep.mubr.bf16.mxu0 0
      %655 = vmatmul.mubr.bf16.gmra.mxu0 %v512
      %v656 = vpop.f32.mrf.mxu0
      %v657 = vadd.f32 %v271, %v656
      %v658 = vpop.f32.mrf.mxu0
      %v659 = vpop.f32.mrf.mxu0
      %v660 = vadd.f32 %v272, %v659
      %v661 = vpop.f32.mrf.mxu0
      %662 = vmatprep.mubr.bf16.mxu0 0
      %663 = vmatmul.mubr.bf16.gmra.mxu0 %v515
      %v664 = vpop.f32.mrf.mxu0
      %v665 = vadd.f32 %v273, %v664
      %v666 = vpop.f32.mrf.mxu0
      %v667 = vpop.f32.mrf.mxu0
      %v668 = vadd.f32 %v274, %v667
      %v669 = vpop.f32.mrf.mxu0
      %670 = vmatprep.mubr.bf16.mxu0 0
      %671 = vmatmul.mubr.bf16.gmra.mxu0 %v518
      %v672 = vpop.f32.mrf.mxu0
      %v673 = vadd.f32 %v275, %v672
      %v674 = vpop.f32.mrf.mxu0
      %v675 = vpop.f32.mrf.mxu0
      %v676 = vadd.f32 %v276, %v675
      %v677 = vpop.f32.mrf.mxu0
      %678 = vmatprep.mubr.bf16.mxu0 0
      %679 = vmatmul.mubr.bf16.gmra.mxu0 %v521
      %v680 = vpop.f32.mrf.mxu0
      %v681 = vadd.f32 %v277, %v680
      %v682 = vpop.f32.mrf.mxu0
      %v683 = vpop.f32.mrf.mxu0
      %v684 = vadd.f32 %v278, %v683
      %v685 = vpop.f32.mrf.mxu0
      %686 = vmatprep.mubr.bf16.mxu0 0
      %687 = vmatmul.mubr.bf16.gmra.mxu0 %v524
      %v688 = vpop.f32.mrf.mxu0
      %v689 = vadd.f32 %v279, %v688
      %v690 = vpop.f32.mrf.mxu0
      %v691 = vpop.f32.mrf.mxu0
      %v692 = vadd.f32 %v280, %v691
      %v693 = vpop.f32.mrf.mxu0
      %694 = vmatprep.mubr.bf16.mxu0 0
      %695 = vmatmul.mubr.bf16.gmra.mxu0 %v527
      %v696 = vpop.f32.mrf.mxu0
      %v697 = vadd.f32 %v281, %v696
      %v698 = vpop.f32.mrf.mxu0
      %v699 = vpop.f32.mrf.mxu0
      %v700 = vadd.f32 %v282, %v699
      %v701 = vpop.f32.mrf.mxu0
      %702 = vmatprep.mubr.bf16.mxu0 0
      %703 = vmatmul.mubr.bf16.gmra.mxu0 %v530
      %v704 = vpop.f32.mrf.mxu0
      %v705 = vadd.f32 %v283, %v704
      %v706 = vpop.f32.mrf.mxu0
      %v707 = vpop.f32.mrf.mxu0
      %v708 = vadd.f32 %v284, %v707
      %v709 = vpop.f32.mrf.mxu0
      %710 = vmatprep.mubr.bf16.mxu0 0
      %711 = vmatmul.mubr.bf16.gmra.mxu0 %v533
      %v712 = vpop.f32.mrf.mxu0
      %v713 = vadd.f32 %v285, %v712
      %v714 = vpop.f32.mrf.mxu0
      %v715 = vpop.f32.mrf.mxu0
      %v716 = vadd.f32 %v286, %v715
      %v717 = vpop.f32.mrf.mxu0
      %718 = vmatprep.mubr.bf16.mxu0 0
      %719 = vmatmul.mubr.bf16.gmra.mxu0 %v536
      %v720 = vpop.f32.mrf.mxu0
      %v721 = vadd.f32 %v287, %v720
      %v722 = vpop.f32.mrf.mxu0
      %v723 = vpop.f32.mrf.mxu0
      %v724 = vadd.f32 %v288, %v723
      %v725 = vpop.f32.mrf.mxu0
      %726 = vmatprep.mubr.bf16.mxu0 0
      %727 = vmatmul.mubr.bf16.gmra.mxu0 %v539
      %v728 = vpop.f32.mrf.mxu0
      %v729 = vadd.f32 %v289, %v728
      %v730 = vpop.f32.mrf.mxu0
      %v731 = vpop.f32.mrf.mxu0
      %v732 = vadd.f32 %v290, %v731
      %v733 = vpop.f32.mrf.mxu0
      %734 = vmatprep.mubr.bf16.mxu0 0
      %735 = vmatmul.mubr.bf16.gmra.mxu0 %v542
      %v736 = vpop.f32.mrf.mxu0
      %v737 = vadd.f32 %v291, %v736
      %v738 = vpop.f32.mrf.mxu0
      %v739 = vpop.f32.mrf.mxu0
      %v740 = vadd.f32 %v292, %v739
      %v741 = vpop.f32.mrf.mxu0
      %742 = vmatprep.mubr.bf16.mxu0 0
      %743 = vmatmul.mubr.bf16.gmra.mxu0 %v545
      %v744 = vpop.f32.mrf.mxu0
      %v745 = vadd.f32 %v293, %v744
      %v746 = vpop.f32.mrf.mxu0
      %v747 = vpop.f32.mrf.mxu0
      %v748 = vadd.f32 %v294, %v747
      %v749 = vpop.f32.mrf.mxu0
      %750 = vmatprep.mubr.bf16.mxu0 0
      %751 = vmatmul.mubr.bf16.gmra.mxu0 %v548
      %v752 = vpop.f32.mrf.mxu0
      %v753 = vadd.f32 %v295, %v752
      %v754 = vpop.f32.mrf.mxu0
      %v755 = vpop.f32.mrf.mxu0
      %v756 = vadd.f32 %v296, %v755
      %v757 = vpop.f32.mrf.mxu0
      %758 = vmatprep.mubr.bf16.mxu0 0
      %759 = vmatmul.mubr.bf16.gmra.mxu0 %v551
      %v760 = vpop.f32.mrf.mxu0
      %v761 = vadd.f32 %v297, %v760
      %v762 = vpop.f32.mrf.mxu0
      %v763 = vpop.f32.mrf.mxu0
      %v764 = vadd.f32 %v298, %v763
      %v765 = vpop.f32.mrf.mxu0
      %766 = vmatprep.mubr.bf16.mxu0 0
      %767 = vmatmul.mubr.bf16.gmra.mxu0 %v554
      %v768 = vpop.f32.mrf.mxu0
      %v769 = vadd.f32 %v299, %v768
      %v770 = vpop.f32.mrf.mxu0
      %v771 = vpop.f32.mrf.mxu0
      %v772 = vadd.f32 %v300, %v771
      %v773 = vpop.f32.mrf.mxu0
      %774 = vmatprep.mubr.bf16.mxu0 0
      %775 = vmatmul.mubr.bf16.gmra.mxu0 %v557
      %v776 = vpop.f32.mrf.mxu0
      %v777 = vadd.f32 %v301, %v776
      %v778 = vpop.f32.mrf.mxu0
      %v779 = vpop.f32.mrf.mxu0
      %v780 = vadd.f32 %v302, %v779
      %v781 = vpop.f32.mrf.mxu0
      %782 = vmatprep.mubr.bf16.mxu0 0
      %783 = vmatmul.mubr.bf16.gmra.mxu0 %v560
      %v784 = vpop.f32.mrf.mxu0
      %v785 = vadd.f32 %v303, %v784
      %v786 = vpop.f32.mrf.mxu0
      %v787 = vpop.f32.mrf.mxu0
      %v788 = vadd.f32 %v304, %v787
      %v789 = vpop.f32.mrf.mxu0
      %790 = vmatprep.mubr.bf16.mxu0 0
      %791 = vmatmul.mubr.bf16.gmra.mxu0 %v563
      %v792 = vpop.f32.mrf.mxu0
      %v793 = vadd.f32 %v305, %v792
      %v794 = vpop.f32.mrf.mxu0
      %v795 = vpop.f32.mrf.mxu0
      %v796 = vadd.f32 %v306, %v795
      %v797 = vpop.f32.mrf.mxu0
      %798 = vmatprep.mubr.bf16.mxu0 0
      %799 = vmatmul.mubr.bf16.gmra.mxu0 %v566
      %v800 = vpop.f32.mrf.mxu0
      %v801 = vadd.f32 %v307, %v800
      %v802 = vpop.f32.mrf.mxu0
      %v803 = vpop.f32.mrf.mxu0
      %v804 = vadd.f32 %v308, %v803
      %v805 = vpop.f32.mrf.mxu0
      %806 = vmatprep.mubr.bf16.mxu0 0
      %807 = vmatmul.mubr.bf16.gmra.mxu0 %v569
      %v808 = vpop.f32.mrf.mxu0
      %v809 = vadd.f32 %v309, %v808
      %v810 = vpop.f32.mrf.mxu0
      %v811 = vpop.f32.mrf.mxu0
      %v812 = vadd.f32 %v310, %v811
      %v813 = vpop.f32.mrf.mxu0
      %814 = vmatprep.mubr.bf16.mxu0 0
      %815 = vmatmul.mubr.bf16.gmra.mxu0 %v572
      %v816 = vpop.f32.mrf.mxu0
      %v817 = vadd.f32 %v311, %v816
      %v818 = vpop.f32.mrf.mxu0
      %v819 = vpop.f32.mrf.mxu0
      %v820 = vadd.f32 %v312, %v819
      %v821 = vpop.f32.mrf.mxu0
      %822 = vmatprep.mubr.bf16.mxu0 0
      %823 = vmatmul.mubr.bf16.gmra.mxu0 %v575
      %v824 = vpop.f32.mrf.mxu0
      %v825 = vadd.f32 %v313, %v824
      %v826 = vpop.f32.mrf.mxu0
      %v827 = vpop.f32.mrf.mxu0
      %v828 = vadd.f32 %v314, %v827
      %v829 = vpop.f32.mrf.mxu0
      %830 = vmatprep.mubr.bf16.mxu0 0
      %831 = vmatmul.mubr.bf16.gmra.mxu0 %v578
      %v832 = vpop.f32.mrf.mxu0
      %v833 = vadd.f32 %v315, %v832
      %v834 = vpop.f32.mrf.mxu0
      %v835 = vpop.f32.mrf.mxu0
      %v836 = vadd.f32 %v316, %v835
      %v837 = vpop.f32.mrf.mxu0
      %838 = vmatprep.mubr.bf16.mxu0 0
      %839 = vmatmul.mubr.bf16.gmra.mxu0 %v581
      %v840 = vpop.f32.mrf.mxu0
      %v841 = vadd.f32 %v317, %v840
      %v842 = vpop.f32.mrf.mxu0
      %v843 = vpop.f32.mrf.mxu0
      %v844 = vadd.f32 %v318, %v843
      %v845 = vpop.f32.mrf.mxu0
      %846 = vmatprep.mubr.bf16.mxu0 0
      %847 = vmatmul.mubr.bf16.gmra.mxu0 %v584
      %v848 = vpop.f32.mrf.mxu0
      %v849 = vadd.f32 %v319, %v848
      %v850 = vpop.f32.mrf.mxu0
      %v851 = vpop.f32.mrf.mxu0
      %v852 = vadd.f32 %v320, %v851
      %v853 = vpop.f32.mrf.mxu0
      %854 = vmatprep.mubr.bf16.mxu0 0
      %855 = vmatmul.mubr.bf16.gmra.mxu0 %v587
      %v856 = vpop.f32.mrf.mxu0
      %v857 = vadd.f32 %v321, %v856
      %v858 = vpop.f32.mrf.mxu0
      %v859 = vpop.f32.mrf.mxu0
      %v860 = vadd.f32 %v322, %v859
      %v861 = vpop.f32.mrf.mxu0
      %862 = vmatprep.mubr.bf16.mxu0 0
      %863 = vmatmul.mubr.bf16.gmra.mxu0 %v590
      %v864 = vpop.f32.mrf.mxu0
      %v865 = vadd.f32 %v323, %v864
      %v866 = vpop.f32.mrf.mxu0
      %v867 = vpop.f32.mrf.mxu0
      %v868 = vadd.f32 %v324, %v867
      %v869 = vpop.f32.mrf.mxu0
      %870 = vmatprep.mubr.bf16.mxu0 0
      %871 = vmatmul.mubr.bf16.gmra.mxu0 %v593
      %v872 = vpop.f32.mrf.mxu0
      %v873 = vadd.f32 %v325, %v872
      %v874 = vpop.f32.mrf.mxu0
      %v875 = vpop.f32.mrf.mxu0
      %v876 = vadd.f32 %v326, %v875
      %v877 = vpop.f32.mrf.mxu0
      %878 = vmatprep.mubr.bf16.mxu0 0
      %879 = vmatmul.mubr.bf16.gmra.mxu0 %v596
      %v880 = vpop.f32.mrf.mxu0
      %v881 = vadd.f32 %v327, %v880
      %v882 = vpop.f32.mrf.mxu0
      %v883 = vpop.f32.mrf.mxu0
      %v884 = vadd.f32 %v328, %v883
      %v885 = vpop.f32.mrf.mxu0
      %886 = vdwg.mxu0
      %vm887 = vcmp.ge.f32.partialorder %v633, 0.0
      %vm888 = vcmp.ge.f32.partialorder %v636, 0.0
      %vm889 = vcmp.ge.f32.partialorder %v641, 0.0
      %vm890 = vcmp.ge.f32.partialorder %v644, 0.0
      %vm891 = vcmp.ge.f32.partialorder %v649, 0.0
      %vm892 = vcmp.ge.f32.partialorder %v652, 0.0
      %vm893 = vcmp.ge.f32.partialorder %v657, 0.0
      %vm894 = vcmp.ge.f32.partialorder %v660, 0.0
      %vm895 = vcmp.ge.f32.partialorder %v665, 0.0
      %vm896 = vcmp.ge.f32.partialorder %v668, 0.0
      %vm897 = vcmp.ge.f32.partialorder %v673, 0.0
      %vm898 = vcmp.ge.f32.partialorder %v676, 0.0
      %vm899 = vcmp.ge.f32.partialorder %v681, 0.0
      %vm900 = vcmp.ge.f32.partialorder %v684, 0.0
      %vm901 = vcmp.ge.f32.partialorder %v689, 0.0
      %vm902 = vcmp.ge.f32.partialorder %v692, 0.0
      %vm903 = vcmp.ge.f32.partialorder %v697, 0.0
      %vm904 = vcmp.ge.f32.partialorder %v700, 0.0
      %vm905 = vcmp.ge.f32.partialorder %v705, 0.0
      %vm906 = vcmp.ge.f32.partialorder %v708, 0.0
      %vm907 = vcmp.ge.f32.partialorder %v713, 0.0
      %vm908 = vcmp.ge.f32.partialorder %v716, 0.0
      %vm909 = vcmp.ge.f32.partialorder %v721, 0.0
      %vm910 = vcmp.ge.f32.partialorder %v724, 0.0
      %vm911 = vcmp.ge.f32.partialorder %v729, 0.0
      %vm912 = vcmp.ge.f32.partialorder %v732, 0.0
      %vm913 = vcmp.ge.f32.partialorder %v737, 0.0
      %vm914 = vcmp.ge.f32.partialorder %v740, 0.0
      %vm915 = vcmp.ge.f32.partialorder %v745, 0.0
      %vm916 = vcmp.ge.f32.partialorder %v748, 0.0
      %vm917 = vcmp.ge.f32.partialorder %v753, 0.0
      %vm918 = vcmp.ge.f32.partialorder %v756, 0.0
      %vm919 = vcmp.ge.f32.partialorder %v761, 0.0
      %vm920 = vcmp.ge.f32.partialorder %v764, 0.0
      %vm921 = vcmp.ge.f32.partialorder %v769, 0.0
      %vm922 = vcmp.ge.f32.partialorder %v772, 0.0
      %vm923 = vcmp.ge.f32.partialorder %v777, 0.0
      %vm924 = vcmp.ge.f32.partialorder %v780, 0.0
      %vm925 = vcmp.ge.f32.partialorder %v785, 0.0
      %vm926 = vcmp.ge.f32.partialorder %v788, 0.0
      %vm927 = vcmp.ge.f32.partialorder %v793, 0.0
      %vm928 = vcmp.ge.f32.partialorder %v796, 0.0
      %vm929 = vcmp.ge.f32.partialorder %v801, 0.0
      %vm930 = vcmp.ge.f32.partialorder %v804, 0.0
      %vm931 = vcmp.ge.f32.partialorder %v809, 0.0
      %vm932 = vcmp.ge.f32.partialorder %v812, 0.0
      %vm933 = vcmp.ge.f32.partialorder %v817, 0.0
      %vm934 = vcmp.ge.f32.partialorder %v820, 0.0
      %vm935 = vcmp.ge.f32.partialorder %v825, 0.0
      %vm936 = vcmp.ge.f32.partialorder %v828, 0.0
      %vm937 = vcmp.ge.f32.partialorder %v833, 0.0
      %vm938 = vcmp.ge.f32.partialorder %v836, 0.0
      %vm939 = vcmp.ge.f32.partialorder %v841, 0.0
      %vm940 = vcmp.ge.f32.partialorder %v844, 0.0
      %vm941 = vcmp.ge.f32.partialorder %v849, 0.0
      %vm942 = vcmp.ge.f32.partialorder %v852, 0.0
      %vm943 = vcmp.ge.f32.partialorder %v857, 0.0
      %vm944 = vcmp.ge.f32.partialorder %v860, 0.0
      %vm945 = vcmp.ge.f32.partialorder %v865, 0.0
      %vm946 = vcmp.ge.f32.partialorder %v868, 0.0
      %vm947 = vcmp.ge.f32.partialorder %v873, 0.0
      %vm948 = vcmp.ge.f32.partialorder %v876, 0.0
      %vm949 = vcmp.ge.f32.partialorder %v881, 0.0
      %vm950 = vcmp.ge.f32.partialorder %v884, 0.0
      %v951 = vmul.f32 %v633, 0.2
      %v952 = vmul.f32 %v636, 0.2
      %v953 = vmul.f32 %v641, 0.2
      %v954 = vmul.f32 %v644, 0.2
      %v955 = vmul.f32 %v649, 0.2
      %v956 = vmul.f32 %v652, 0.2
      %v957 = vmul.f32 %v657, 0.2
      %v958 = vmul.f32 %v660, 0.2
      %v959 = vmul.f32 %v665, 0.2
      %v960 = vmul.f32 %v668, 0.2
      %v961 = vmul.f32 %v673, 0.2
      %v962 = vmul.f32 %v676, 0.2
      %v963 = vmul.f32 %v681, 0.2
      %v964 = vmul.f32 %v684, 0.2
      %v965 = vmul.f32 %v689, 0.2
      %v966 = vmul.f32 %v692, 0.2
      %v967 = vmul.f32 %v697, 0.2
      %v968 = vmul.f32 %v700, 0.2
      %v969 = vmul.f32 %v705, 0.2
      %v970 = vmul.f32 %v708, 0.2
      %v971 = vmul.f32 %v713, 0.2
      %v972 = vmul.f32 %v716, 0.2
      %v973 = vmul.f32 %v721, 0.2
      %v974 = vmul.f32 %v724, 0.2
      %v975 = vmul.f32 %v729, 0.2
      %v976 = vmul.f32 %v732, 0.2
      %v977 = vmul.f32 %v737, 0.2
      %v978 = vmul.f32 %v740, 0.2
      %v979 = vmul.f32 %v745, 0.2
      %v980 = vmul.f32 %v748, 0.2
      %v981 = vmul.f32 %v753, 0.2
      %v982 = vmul.f32 %v756, 0.2
      %v983 = vmul.f32 %v761, 0.2
      %v984 = vmul.f32 %v764, 0.2
      %v985 = vmul.f32 %v769, 0.2
      %v986 = vmul.f32 %v772, 0.2
      %v987 = vmul.f32 %v777, 0.2
      %v988 = vmul.f32 %v780, 0.2
      %v989 = vmul.f32 %v785, 0.2
      %v990 = vmul.f32 %v788, 0.2
      %v991 = vmul.f32 %v793, 0.2
      %v992 = vmul.f32 %v796, 0.2
      %v993 = vmul.f32 %v801, 0.2
      %v994 = vmul.f32 %v804, 0.2
      %v995 = vmul.f32 %v809, 0.2
      %v996 = vmul.f32 %v812, 0.2
      %v997 = vmul.f32 %v817, 0.2
      %v998 = vmul.f32 %v820, 0.2
      %v999 = vmul.f32 %v825, 0.2
      %v1000 = vmul.f32 %v828, 0.2
      %v1001 = vmul.f32 %v833, 0.2
      %v1002 = vmul.f32 %v836, 0.2
      %v1003 = vmul.f32 %v841, 0.2
      %v1004 = vmul.f32 %v844, 0.2
      %v1005 = vmul.f32 %v849, 0.2
      %v1006 = vmul.f32 %v852, 0.2
      %v1007 = vmul.f32 %v857, 0.2
      %v1008 = vmul.f32 %v860, 0.2
      %v1009 = vmul.f32 %v865, 0.2
      %v1010 = vmul.f32 %v868, 0.2
      %v1011 = vmul.f32 %v873, 0.2
      %v1012 = vmul.f32 %v876, 0.2
      %v1013 = vmul.f32 %v881, 0.2
      %v1014 = vmul.f32 %v884, 0.2
      %v1015 = vsel %vm887, %v633, %v951
      %v1016 = vsel %vm888, %v636, %v952
      %v1017 = vsel %vm889, %v641, %v953
      %v1018 = vsel %vm890, %v644, %v954
      %v1019 = vsel %vm891, %v649, %v955
      %v1020 = vsel %vm892, %v652, %v956
      %v1021 = vsel %vm893, %v657, %v957
      %v1022 = vsel %vm894, %v660, %v958
      %v1023 = vsel %vm895, %v665, %v959
      %v1024 = vsel %vm896, %v668, %v960
      %v1025 = vsel %vm897, %v673, %v961
      %v1026 = vsel %vm898, %v676, %v962
      %v1027 = vsel %vm899, %v681, %v963
      %v1028 = vsel %vm900, %v684, %v964
      %v1029 = vsel %vm901, %v689, %v965
      %v1030 = vsel %vm902, %v692, %v966
      %v1031 = vsel %vm903, %v697, %v967
      %v1032 = vsel %vm904, %v700, %v968
      %v1033 = vsel %vm905, %v705, %v969
      %v1034 = vsel %vm906, %v708, %v970
      %v1035 = vsel %vm907, %v713, %v971
      %v1036 = vsel %vm908, %v716, %v972
      %v1037 = vsel %vm909, %v721, %v973
      %v1038 = vsel %vm910, %v724, %v974
      %v1039 = vsel %vm911, %v729, %v975
      %v1040 = vsel %vm912, %v732, %v976
      %v1041 = vsel %vm913, %v737, %v977
      %v1042 = vsel %vm914, %v740, %v978
      %v1043 = vsel %vm915, %v745, %v979
      %v1044 = vsel %vm916, %v748, %v980
      %v1045 = vsel %vm917, %v753, %v981
      %v1046 = vsel %vm918, %v756, %v982
      %v1047 = vsel %vm919, %v761, %v983
      %v1048 = vsel %vm920, %v764, %v984
      %v1049 = vsel %vm921, %v769, %v985
      %v1050 = vsel %vm922, %v772, %v986
      %v1051 = vsel %vm923, %v777, %v987
      %v1052 = vsel %vm924, %v780, %v988
      %v1053 = vsel %vm925, %v785, %v989
      %v1054 = vsel %vm926, %v788, %v990
      %v1055 = vsel %vm927, %v793, %v991
      %v1056 = vsel %vm928, %v796, %v992
      %v1057 = vsel %vm929, %v801, %v993
      %v1058 = vsel %vm930, %v804, %v994
      %v1059 = vsel %vm931, %v809, %v995
      %v1060 = vsel %vm932, %v812, %v996
      %v1061 = vsel %vm933, %v817, %v997
      %v1062 = vsel %vm934, %v820, %v998
      %v1063 = vsel %vm935, %v825, %v999
      %v1064 = vsel %vm936, %v828, %v1000
      %v1065 = vsel %vm937, %v833, %v1001
      %v1066 = vsel %vm938, %v836, %v1002
      %v1067 = vsel %vm939, %v841, %v1003
      %v1068 = vsel %vm940, %v844, %v1004
      %v1069 = vsel %vm941, %v849, %v1005
      %v1070 = vsel %vm942, %v852, %v1006
      %v1071 = vsel %vm943, %v857, %v1007
      %v1072 = vsel %vm944, %v860, %v1008
      %v1073 = vsel %vm945, %v865, %v1009
      %v1074 = vsel %vm946, %v868, %v1010
      %v1075 = vsel %vm947, %v873, %v1011
      %v1076 = vsel %vm948, %v876, %v1012
      %v1077 = vsel %vm949, %v881, %v1013
      %v1078 = vsel %vm950, %v884, %v1014
      %v1079 = vpack.c.bf16 %v1016, %v1015
      %v1080 = vpack.c.bf16 %v1018, %v1017
      %v1081 = vpack.c.bf16 %v1020, %v1019
      %v1082 = vpack.c.bf16 %v1022, %v1021
      %v1083 = vpack.c.bf16 %v1024, %v1023
      %v1084 = vpack.c.bf16 %v1026, %v1025
      %v1085 = vpack.c.bf16 %v1028, %v1027
      %v1086 = vpack.c.bf16 %v1030, %v1029
      %v1087 = vpack.c.bf16 %v1032, %v1031
      %v1088 = vpack.c.bf16 %v1034, %v1033
      %v1089 = vpack.c.bf16 %v1036, %v1035
      %v1090 = vpack.c.bf16 %v1038, %v1037
      %v1091 = vpack.c.bf16 %v1040, %v1039
      %v1092 = vpack.c.bf16 %v1042, %v1041
      %v1093 = vpack.c.bf16 %v1044, %v1043
      %v1094 = vpack.c.bf16 %v1046, %v1045
      %v1095 = vpack.c.bf16 %v1048, %v1047
      %v1096 = vpack.c.bf16 %v1050, %v1049
      %v1097 = vpack.c.bf16 %v1052, %v1051
      %v1098 = vpack.c.bf16 %v1054, %v1053
      %v1099 = vpack.c.bf16 %v1056, %v1055
      %v1100 = vpack.c.bf16 %v1058, %v1057
      %v1101 = vpack.c.bf16 %v1060, %v1059
      %v1102 = vpack.c.bf16 %v1062, %v1061
      %v1103 = vpack.c.bf16 %v1064, %v1063
      %v1104 = vpack.c.bf16 %v1066, %v1065
      %v1105 = vpack.c.bf16 %v1068, %v1067
      %v1106 = vpack.c.bf16 %v1070, %v1069
      %v1107 = vpack.c.bf16 %v1072, %v1071
      %v1108 = vpack.c.bf16 %v1074, %v1073
      %v1109 = vpack.c.bf16 %v1076, %v1075
      %v1110 = vpack.c.bf16 %v1078, %v1077
      %v1143 = vunpack.c.l.b16 %v1079
      %v1144 = vunpack.c.h.b16 %v1079
      %v1145 = vunpack.c.l.b16 %v1080
      %v1146 = vunpack.c.h.b16 %v1080
      %v1147 = vunpack.c.l.b16 %v1081
      %v1148 = vunpack.c.h.b16 %v1081
      %v1149 = vunpack.c.l.b16 %v1082
      %v1150 = vunpack.c.h.b16 %v1082
      %v1151 = vunpack.c.l.b16 %v1083
      %v1152 = vunpack.c.h.b16 %v1083
      %v1153 = vunpack.c.l.b16 %v1084
      %v1154 = vunpack.c.h.b16 %v1084
      %v1155 = vunpack.c.l.b16 %v1085
      %v1156 = vunpack.c.h.b16 %v1085
      %v1157 = vunpack.c.l.b16 %v1086
      %v1158 = vunpack.c.h.b16 %v1086
      %v1159 = vunpack.c.l.b16 %v1087
      %v1160 = vunpack.c.h.b16 %v1087
      %v1161 = vunpack.c.l.b16 %v1088
      %v1162 = vunpack.c.h.b16 %v1088
      %v1163 = vunpack.c.l.b16 %v1089
      %v1164 = vunpack.c.h.b16 %v1089
      %v1165 = vunpack.c.l.b16 %v1090
      %v1166 = vunpack.c.h.b16 %v1090
      %v1167 = vunpack.c.l.b16 %v1091
      %v1168 = vunpack.c.h.b16 %v1091
      %v1169 = vunpack.c.l.b16 %v1092
      %v1170 = vunpack.c.h.b16 %v1092
      %v1171 = vunpack.c.l.b16 %v1093
      %v1172 = vunpack.c.h.b16 %v1093
      %v1173 = vunpack.c.l.b16 %v1094
      %v1174 = vunpack.c.h.b16 %v1094
      %v1175 = vunpack.c.l.b16 %v1095
      %v1176 = vunpack.c.h.b16 %v1095
      %v1177 = vunpack.c.l.b16 %v1096
      %v1178 = vunpack.c.h.b16 %v1096
      %v1179 = vunpack.c.l.b16 %v1097
      %v1180 = vunpack.c.h.b16 %v1097
      %v1181 = vunpack.c.l.b16 %v1098
      %v1182 = vunpack.c.h.b16 %v1098
      %v1183 = vunpack.c.l.b16 %v1099
      %v1184 = vunpack.c.h.b16 %v1099
      %v1185 = vunpack.c.l.b16 %v1100
      %v1186 = vunpack.c.h.b16 %v1100
      %v1187 = vunpack.c.l.b16 %v1101
      %v1188 = vunpack.c.h.b16 %v1101
      %v1189 = vunpack.c.l.b16 %v1102
      %v1190 = vunpack.c.h.b16 %v1102
      %v1191 = vunpack.c.l.b16 %v1103
      %v1192 = vunpack.c.h.b16 %v1103
      %v1193 = vunpack.c.l.b16 %v1104
      %v1194 = vunpack.c.h.b16 %v1104
      %v1195 = vunpack.c.l.b16 %v1105
      %v1196 = vunpack.c.h.b16 %v1105
      %v1197 = vunpack.c.l.b16 %v1106
      %v1198 = vunpack.c.h.b16 %v1106
      %v1199 = vunpack.c.l.b16 %v1107
      %v1200 = vunpack.c.h.b16 %v1107
      %v1201 = vunpack.c.l.b16 %v1108
      %v1202 = vunpack.c.h.b16 %v1108
      %v1203 = vunpack.c.l.b16 %v1109
      %v1204 = vunpack.c.h.b16 %v1109
      %v1205 = vunpack.c.l.b16 %v1110
      %v1206 = vunpack.c.h.b16 %v1110
      %v1207 = vpack.c.b16 %v1143, %v1143
      %v1208 = vpack.c.b16 %v1144, %v1144
      %v1209 = vpack.c.b16 %v1145, %v1145
      %v1210 = vpack.c.b16 %v1146, %v1146
      %v1211 = vpack.c.b16 %v1147, %v1147
      %v1212 = vpack.c.b16 %v1148, %v1148
      %v1213 = vpack.c.b16 %v1149, %v1149
      %v1214 = vpack.c.b16 %v1150, %v1150
      %v1215 = vpack.c.b16 %v1151, %v1151
      %v1216 = vpack.c.b16 %v1152, %v1152
      %v1217 = vpack.c.b16 %v1153, %v1153
      %v1218 = vpack.c.b16 %v1154, %v1154
      %v1219 = vpack.c.b16 %v1155, %v1155
      %v1220 = vpack.c.b16 %v1156, %v1156
      %v1221 = vpack.c.b16 %v1157, %v1157
      %v1222 = vpack.c.b16 %v1158, %v1158
      %v1223 = vpack.c.b16 %v1159, %v1159
      %v1224 = vpack.c.b16 %v1160, %v1160
      %v1225 = vpack.c.b16 %v1161, %v1161
      %v1226 = vpack.c.b16 %v1162, %v1162
      %v1227 = vpack.c.b16 %v1163, %v1163
      %v1228 = vpack.c.b16 %v1164, %v1164
      %v1229 = vpack.c.b16 %v1165, %v1165
      %v1230 = vpack.c.b16 %v1166, %v1166
      %v1231 = vpack.c.b16 %v1167, %v1167
      %v1232 = vpack.c.b16 %v1168, %v1168
      %v1233 = vpack.c.b16 %v1169, %v1169
      %v1234 = vpack.c.b16 %v1170, %v1170
      %v1235 = vpack.c.b16 %v1171, %v1171
      %v1236 = vpack.c.b16 %v1172, %v1172
      %v1237 = vpack.c.b16 %v1173, %v1173
      %v1238 = vpack.c.b16 %v1174, %v1174
      %v1239 = vpack.c.b16 %v1175, %v1175
      %v1240 = vpack.c.b16 %v1176, %v1176
      %v1241 = vpack.c.b16 %v1177, %v1177
      %v1242 = vpack.c.b16 %v1178, %v1178
      %v1243 = vpack.c.b16 %v1179, %v1179
      %v1244 = vpack.c.b16 %v1180, %v1180
      %v1245 = vpack.c.b16 %v1181, %v1181
      %v1246 = vpack.c.b16 %v1182, %v1182
      %v1247 = vpack.c.b16 %v1183, %v1183
      %v1248 = vpack.c.b16 %v1184, %v1184
      %v1249 = vpack.c.b16 %v1185, %v1185
      %v1250 = vpack.c.b16 %v1186, %v1186
      %v1251 = vpack.c.b16 %v1187, %v1187
      %v1252 = vpack.c.b16 %v1188, %v1188
      %v1253 = vpack.c.b16 %v1189, %v1189
      %v1254 = vpack.c.b16 %v1190, %v1190
      %v1255 = vpack.c.b16 %v1191, %v1191
      %v1256 = vpack.c.b16 %v1192, %v1192
      %v1257 = vpack.c.b16 %v1193, %v1193
      %v1258 = vpack.c.b16 %v1194, %v1194
      %v1259 = vpack.c.b16 %v1195, %v1195
      %v1260 = vpack.c.b16 %v1196, %v1196
      %v1261 = vpack.c.b16 %v1197, %v1197
      %v1262 = vpack.c.b16 %v1198, %v1198
      %v1263 = vpack.c.b16 %v1199, %v1199
      %v1264 = vpack.c.b16 %v1200, %v1200
      %v1265 = vpack.c.b16 %v1201, %v1201
      %v1266 = vpack.c.b16 %v1202, %v1202
      %v1267 = vpack.c.b16 %v1203, %v1203
      %v1268 = vpack.c.b16 %v1204, %v1204
      %v1269 = vpack.c.b16 %v1205, %v1205
      %v1270 = vpack.c.b16 %v1206, %v1206
      %vm1335 = vcmask 60416
      %1336 = vst.msk [vmem:[%s194] sm:$0xf] %vm1335, %v1207
      %1337 = vst.msk [vmem:[%s194 + $0x4] sm:$0xf] %vm1335, %v1208
      %1338 = vst.msk [vmem:[%s194 + $0x8] sm:$0xf] %vm1335, %v1209
      %1339 = vst.msk [vmem:[%s194 + $0xc] sm:$0xf] %vm1335, %v1210
      %1340 = vst.msk [vmem:[%s194 + $0x10] sm:$0xf] %vm1335, %v1211
      %1341 = vst.msk [vmem:[%s194 + $0x14] sm:$0xf] %vm1335, %v1212
      %1342 = vst.msk [vmem:[%s194 + $0x18] sm:$0xf] %vm1335, %v1213
      %1343 = vst.msk [vmem:[%s194 + $0x1c] sm:$0xf] %vm1335, %v1214
      %1344 = vst.msk [vmem:[%s194 + $0x20] sm:$0xf] %vm1335, %v1215
      %1345 = vst.msk [vmem:[%s194 + $0x24] sm:$0xf] %vm1335, %v1216
      %1346 = vst.msk [vmem:[%s194 + $0x28] sm:$0xf] %vm1335, %v1217
      %1347 = vst.msk [vmem:[%s194 + $0x2c] sm:$0xf] %vm1335, %v1218
      %1348 = vst.msk [vmem:[%s194 + $0x30] sm:$0xf] %vm1335, %v1219
      %1349 = vst.msk [vmem:[%s194 + $0x34] sm:$0xf] %vm1335, %v1220
      %1350 = vst.msk [vmem:[%s194 + $0x38] sm:$0xf] %vm1335, %v1221
      %1351 = vst.msk [vmem:[%s194 + $0x3c] sm:$0xf] %vm1335, %v1222
      %1352 = vst.msk [vmem:[%s194 + $0x40] sm:$0xf] %vm1335, %v1223
      %1353 = vst.msk [vmem:[%s194 + $0x44] sm:$0xf] %vm1335, %v1224
      %1354 = vst.msk [vmem:[%s194 + $0x48] sm:$0xf] %vm1335, %v1225
      %1355 = vst.msk [vmem:[%s194 + $0x4c] sm:$0xf] %vm1335, %v1226
      %1356 = vst.msk [vmem:[%s194 + $0x50] sm:$0xf] %vm1335, %v1227
      %1357 = vst.msk [vmem:[%s194 + $0x54] sm:$0xf] %vm1335, %v1228
      %1358 = vst.msk [vmem:[%s194 + $0x58] sm:$0xf] %vm1335, %v1229
      %1359 = vst.msk [vmem:[%s194 + $0x5c] sm:$0xf] %vm1335, %v1230
      %1360 = vst.msk [vmem:[%s194 + $0x60] sm:$0xf] %vm1335, %v1231
      %1361 = vst.msk [vmem:[%s194 + $0x64] sm:$0xf] %vm1335, %v1232
      %1362 = vst.msk [vmem:[%s194 + $0x68] sm:$0xf] %vm1335, %v1233
      %1363 = vst.msk [vmem:[%s194 + $0x6c] sm:$0xf] %vm1335, %v1234
      %1364 = vst.msk [vmem:[%s194 + $0x70] sm:$0xf] %vm1335, %v1235
      %1365 = vst.msk [vmem:[%s194 + $0x74] sm:$0xf] %vm1335, %v1236
      %1366 = vst.msk [vmem:[%s194 + $0x78] sm:$0xf] %vm1335, %v1237
      %1367 = vst.msk [vmem:[%s194 + $0x7c] sm:$0xf] %vm1335, %v1238
      %1368 = vst.msk [vmem:[%s194 + $0x80] sm:$0xf] %vm1335, %v1239
      %1369 = vst.msk [vmem:[%s194 + $0x84] sm:$0xf] %vm1335, %v1240
      %1370 = vst.msk [vmem:[%s194 + $0x88] sm:$0xf] %vm1335, %v1241
      %1371 = vst.msk [vmem:[%s194 + $0x8c] sm:$0xf] %vm1335, %v1242
      %1372 = vst.msk [vmem:[%s194 + $0x90] sm:$0xf] %vm1335, %v1243
      %1373 = vst.msk [vmem:[%s194 + $0x94] sm:$0xf] %vm1335, %v1244
      %1374 = vst.msk [vmem:[%s194 + $0x98] sm:$0xf] %vm1335, %v1245
      %1375 = vst.msk [vmem:[%s194 + $0x9c] sm:$0xf] %vm1335, %v1246
      %1376 = vst.msk [vmem:[%s194 + $0xa0] sm:$0xf] %vm1335, %v1247
      %1377 = vst.msk [vmem:[%s194 + $0xa4] sm:$0xf] %vm1335, %v1248
      %1378 = vst.msk [vmem:[%s194 + $0xa8] sm:$0xf] %vm1335, %v1249
      %1379 = vst.msk [vmem:[%s194 + $0xac] sm:$0xf] %vm1335, %v1250
      %1380 = vst.msk [vmem:[%s194 + $0xb0] sm:$0xf] %vm1335, %v1251
      %1381 = vst.msk [vmem:[%s194 + $0xb4] sm:$0xf] %vm1335, %v1252
      %1382 = vst.msk [vmem:[%s194 + $0xb8] sm:$0xf] %vm1335, %v1253
      %1383 = vst.msk [vmem:[%s194 + $0xbc] sm:$0xf] %vm1335, %v1254
      %1384 = vst.msk [vmem:[%s194 + $0xc0] sm:$0xf] %vm1335, %v1255
      %1385 = vst.msk [vmem:[%s194 + $0xc4] sm:$0xf] %vm1335, %v1256
      %1386 = vst.msk [vmem:[%s194 + $0xc8] sm:$0xf] %vm1335, %v1257
      %1387 = vst.msk [vmem:[%s194 + $0xcc] sm:$0xf] %vm1335, %v1258
      %1388 = vst.msk [vmem:[%s194 + $0xd0] sm:$0xf] %vm1335, %v1259
      %1389 = vst.msk [vmem:[%s194 + $0xd4] sm:$0xf] %vm1335, %v1260
      %1390 = vst.msk [vmem:[%s194 + $0xd8] sm:$0xf] %vm1335, %v1261
      %1391 = vst.msk [vmem:[%s194 + $0xdc] sm:$0xf] %vm1335, %v1262
      %1392 = vst.msk [vmem:[%s194 + $0xe0] sm:$0xf] %vm1335, %v1263
      %1393 = vst.msk [vmem:[%s194 + $0xe4] sm:$0xf] %vm1335, %v1264
      %1394 = vst.msk [vmem:[%s194 + $0xe8] sm:$0xf] %vm1335, %v1265
      %1395 = vst.msk [vmem:[%s194 + $0xec] sm:$0xf] %vm1335, %v1266
      %1396 = vst.msk [vmem:[%s194 + $0xf0] sm:$0xf] %vm1335, %v1267
      %1397 = vst.msk [vmem:[%s194 + $0xf4] sm:$0xf] %vm1335, %v1268
      %1398 = vst.msk [vmem:[%s194 + $0xf8] sm:$0xf] %vm1335, %v1269
      %1399 = vst.msk [vmem:[%s194 + $0xfc] sm:$0xf] %vm1335, %v1270
      %s1400 = smul.u32 64, %s14
      %p1401 = scmp.lt.s32.totalorder %s1400, 255
      %s1402 = scalar_select %p1401, %s1400, 255
      %s1403 = smul.addr %s1402, 4
      %s1404 = scalar_lea.vmem %s3, %s1403
      // Predicated region
      $region33: #{discriminator_forward.5} parent=31 // pred_check
        %p1405 = pneg %p105
      $region34: #{discriminator_forward.5} parent=31 // pred_check_branch
        %1407 = sbr.rel (%p1405) target = $region36
      $region35: #{discriminator_forward.5} parent=31 // pred_region
        %s1408 = smul.u32 64, %s14
      $region36: #{discriminator_forward.5} parent=31 // pred_fallthru
        _
    $region32: #{discriminator_forward.5} parent=5 // pred_fallthru
      _
    %p1409 = scmp.le.s32.totalorder 2, %s9
    // Predicated region
    $region37: #{discriminator_forward.5} parent=5 // pred_check
      %p1410 = pneg %p1409
    $region38: #{discriminator_forward.5} parent=5 // pred_check_branch
      %1412 = sbr.rel (%p1410) target = $region40
    $region39: #{discriminator_forward.5} parent=5 // pred_region
      %s1413 = ssub.s32 %s9, 2
      // Predicated region
      $region41: #{discriminator_forward.5} parent=39 // pred_check
        %p1414 = pneg %p111
      $region42: #{discriminator_forward.5} parent=39 // pred_check_branch
        %1416 = sbr.rel (%p1414) target = $region44
      $region43: #{discriminator_forward.5} parent=39 // pred_region
        %s1417 = smul.u32 64, %s15
        %p1418 = scmp.lt.s32.totalorder %s1417, 255
        %s1419 = scalar_select %p1418, %s1417, 255
        %s1420 = smul.addr %s1419, 4
        %s1421 = scalar_lea.vmem %s3, %s1420
      $region44: #{discriminator_forward.5} parent=39 // pred_fallthru
        _
    $region40: #{discriminator_forward.5} parent=5 // pred_fallthru
      _
  $region6: #{discriminator_forward.5} parent=0 // loop_footer
    %s13 = sadd.s32 1, %s9
  $region7: #{discriminator_forward.5} parent=0 // loop_footer_branch
    %8 = sbr.rel target = $region3
  $region8: #{discriminator_forward.5} parent=0 // loop_exit
    _

// kernel: discriminator_forward.6
$region0: #{discriminator_forward.6}
  #allocation0 [shape = 'u32[]', space=smem, size = 0x4, offset = 0x4, fixed_abs, tag = 'smem constant byte address 0x4 - core index']
  #allocation1 [shape = 'u32[144,128]{1,0:T(1,128)}', space=vmem, size = 0x12000, scoped, tag = 'internal scratch']
  #allocation2 [shape = 'f32[1,16]{1,0:T(1,128)}', space=vmem, size = 0x200, scoped, tag = 'scratch operand']
  #allocation3 [shape = 'f32[1,16]{1,0:T(1,128)}', space=vmem, size = 0x200, scoped, tag = 'scratch operand']
  %s0 = inlined_call_operand.vmem [shape: bf16[512,128], index: 0, kind: input, shape index: {}]
  %s1 = inlined_call_operand.vmem [shape: bf16[128,16], index: 1, kind: input, shape index: {}]
  %s2 = inlined_call_operand.vmem [shape: f32[1,16], index: 2, kind: input, shape index: {}]
  %s3 = inlined_call_operand.vmem [shape: f32[1,16], index: 3, kind: input, shape index: {}]
  %s4 = inlined_call_operand.vmem [shape: bf16[512,16], index: 4, kind: output, shape index: {}]
  %s5 = sld [smem:[#allocation0]]
  $region61: #{discriminator_forward.6} parent=0
    _
  %s7 = ssub.s32 1, %s5
  %s8 = scalar_select 0, %s7, %s5
  loop: start=0, step=1, limit=4
  $region2: #{discriminator_forward.6} parent=0 // loop_pre_header
    _
  $region3: #{discriminator_forward.6} parent=0 // loop_header
    %s10 = sphi 0, %s14
    %p11 = scmp.ge.s32.totalorder %s10, 4
    %s17 = sphi 0, %s29
    %s18 = sphi 0, %s25
    %s19 = sphi 0, %s17
    %s20 = sphi 0, %s18
    %s21 = sphi 0, %s19
    %s22 = sphi 0, %s20
    %s32 = sphi 0, %s34
    %s35 = sphi 0, %s32
    %s36 = sphi 0, %s35
    %s52 = sphi 0, %s36
    %s56 = sphi 0, %s56
    %s58 = sphi 0, %s56
    %s59 = sphi 0, %s58
    %s73 = sphi 0, %s59
    %s77 = sphi 0, %s77
    %s79 = sphi 0, %s77
    %s80 = sphi 0, %s79
    %s94 = sphi 0, %s80
    %s98 = sphi 0, %s98
    %s100 = sphi 0, %s98
    %s101 = sphi 0, %s100
    %s115 = sphi 0, %s101
    %s121 = sphi 0, %s123
    %s124 = sphi 0, %s121
    %s125 = sphi 0, %s124
    %s141 = sphi 0, %s125
  $region4: #{discriminator_forward.6} parent=0 // loop_header_branch
    %13 = sbr.rel (%p11) target = $region8
  $region5: #{discriminator_forward.6} parent=0 // loop_body
    %s15 = ssub.s32 %s10, 1
    %s16 = ssub.s32 %s10, 2
    %s23 = sadd.s32 1, %s18
    %p24 = scmp.ge.s32.totalorder %s23, 1
    %s25 = scalar_select %p24, 0, %s23
    %s26 = sadd.s32 1, %s17
    %s27 = scalar_select %p24, %s26, %s17
    %p28 = scmp.ge.s32.totalorder %s27, 2
    %s29 = scalar_select %p28, 0, %s27
    %s30 = ssub.s32 %s18, %s25
    %p31 = scmp.eq.s32.totalorder %s30, 0
    %s33 = sadd.s32 %s32, 1
    %s34 = scalar_select %p31, %s32, %s33
    %p37 = pneg %p31
    %p38 = scmp.eq.s32.totalorder %s10, 1
    %p39 = por %p37, %p38
    %p40 = scmp.ne.s32.totalorder %s32, %s35
    %p41 = scmp.eq.s32.totalorder %s10, 0
    %p42 = por %p40, %p41
    %p43 = scmp.ne.s32.totalorder %s32, %s35
    %p44 = scmp.eq.s32.totalorder %s15, 1
    %p45 = por %p43, %p44
    %p46 = scmp.ne.s32.totalorder %s35, %s36
    %p47 = scmp.eq.s32.totalorder %s15, 0
    %p48 = por %p46, %p47
    %p49 = scmp.ne.s32.totalorder %s35, %s36
    %p50 = scmp.eq.s32.totalorder %s16, 1
    %p51 = por %p49, %p50
    %p53 = scmp.ne.s32.totalorder %s36, %s52
    %p54 = scmp.eq.s32.totalorder %s16, 0
    %p55 = por %p53, %p54
    %s57 = sadd.s32 %s56, 1
    %p60 = scmp.eq.s32.totalorder %s10, 1
    %p61 = scmp.ne.s32.totalorder %s56, %s58
    %p62 = scmp.eq.s32.totalorder %s10, 0
    %p63 = por %p61, %p62
    %p64 = scmp.ne.s32.totalorder %s56, %s58
    %p65 = scmp.eq.s32.totalorder %s15, 1
    %p66 = por %p64, %p65
    %p67 = scmp.ne.s32.totalorder %s58, %s59
    %p68 = scmp.eq.s32.totalorder %s15, 0
    %p69 = por %p67, %p68
    %p70 = scmp.ne.s32.totalorder %s58, %s59
    %p71 = scmp.eq.s32.totalorder %s16, 1
    %p72 = por %p70, %p71
    %p74 = scmp.ne.s32.totalorder %s59, %s73
    %p75 = scmp.eq.s32.totalorder %s16, 0
    %p76 = por %p74, %p75
    %s78 = sadd.s32 %s77, 1
    %p81 = scmp.eq.s32.totalorder %s10, 1
    %p82 = scmp.ne.s32.totalorder %s77, %s79
    %p83 = scmp.eq.s32.totalorder %s10, 0
    %p84 = por %p82, %p83
    %p85 = scmp.ne.s32.totalorder %s77, %s79
    %p86 = scmp.eq.s32.totalorder %s15, 1
    %p87 = por %p85, %p86
    %p88 = scmp.ne.s32.totalorder %s79, %s80
    %p89 = scmp.eq.s32.totalorder %s15, 0
    %p90 = por %p88, %p89
    %p91 = scmp.ne.s32.totalorder %s79, %s80
    %p92 = scmp.eq.s32.totalorder %s16, 1
    %p93 = por %p91, %p92
    %p95 = scmp.ne.s32.totalorder %s80, %s94
    %p96 = scmp.eq.s32.totalorder %s16, 0
    %p97 = por %p95, %p96
    %s99 = sadd.s32 %s98, 1
    %p102 = scmp.eq.s32.totalorder %s10, 1
    %p103 = scmp.ne.s32.totalorder %s98, %s100
    %p104 = scmp.eq.s32.totalorder %s10, 0
    %p105 = por %p103, %p104
    %p106 = scmp.ne.s32.totalorder %s98, %s100
    %p107 = scmp.eq.s32.totalorder %s15, 1
    %p108 = por %p106, %p107
    %p109 = scmp.ne.s32.totalorder %s100, %s101
    %p110 = scmp.eq.s32.totalorder %s15, 0
    %p111 = por %p109, %p110
    %p112 = scmp.ne.s32.totalorder %s100, %s101
    %p113 = scmp.eq.s32.totalorder %s16, 1
    %p114 = por %p112, %p113
    %p116 = scmp.ne.s32.totalorder %s101, %s115
    %p117 = scmp.eq.s32.totalorder %s16, 0
    %p118 = por %p116, %p117
    %s119 = ssub.s32 %s18, %s25
    %p120 = scmp.eq.s32.totalorder %s119, 0
    %s122 = sadd.s32 %s121, 1
    %s123 = scalar_select %p120, %s121, %s122
    %p126 = pneg %p120
    %p127 = scmp.eq.s32.totalorder %s10, 1
    %p128 = por %p126, %p127
    %p129 = scmp.ne.s32.totalorder %s121, %s124
    %p130 = scmp.eq.s32.totalorder %s10, 0
    %p131 = por %p129, %p130
    %p132 = scmp.ne.s32.totalorder %s121, %s124
    %p133 = scmp.eq.s32.totalorder %s15, 1
    %p134 = por %p132, %p133
    %p135 = scmp.ne.s32.totalorder %s124, %s125
    %p136 = scmp.eq.s32.totalorder %s15, 0
    %p137 = por %p135, %p136
    %p138 = scmp.ne.s32.totalorder %s124, %s125
    %p139 = scmp.eq.s32.totalorder %s16, 1
    %p140 = por %p138, %p139
    %p142 = scmp.ne.s32.totalorder %s125, %s141
    %p143 = scmp.eq.s32.totalorder %s16, 0
    %p144 = por %p142, %p143
    %p145 = scmp.le.s32.totalorder 1, %s10
    %p146 = scmp.lt.s32.totalorder %s10, 3
    %p147 = pnand %p145, %p146
    %p148 = pneg %p147
    // Predicated region
    $region9: #{discriminator_forward.6} parent=5 // pred_check
      _
    $region10: #{discriminator_forward.6} parent=5 // pred_check_branch
      %150 = sbr.rel (%p147) target = $region12
    $region11: #{discriminator_forward.6} parent=5 // pred_region
      %s151 = ssub.s32 %s10, 1
      // Predicated region
      $region13: #{discriminator_forward.6} parent=11 // pred_check
        %p152 = pneg %p48
      $region14: #{discriminator_forward.6} parent=11 // pred_check_branch
        %154 = sbr.rel (%p152) target = $region16
      $region15: #{discriminator_forward.6} parent=11 // pred_region
        %s155 = smul.u32 64, %s20
        %p156 = scmp.lt.s32.totalorder %s155, 63
        %s157 = scalar_select %p156, %s155, 63
        %s158 = smul.addr %s157, 4
        %s159 = scalar_lea.vmem %s0, %s158
        %s160 = smul.u32 64, %s20
      $region16: #{discriminator_forward.6} parent=11 // pred_fallthru
        _
      // Predicated region
      $region17: #{discriminator_forward.6} parent=11 // pred_check
        %p161 = pneg %p69
      $region18: #{discriminator_forward.6} parent=11 // pred_check_branch
        %163 = sbr.rel (%p161) target = $region20
      $region19: #{discriminator_forward.6} parent=11 // pred_region
        _
      $region20: #{discriminator_forward.6} parent=11 // pred_fallthru
        _
      // Predicated region
      $region21: #{discriminator_forward.6} parent=11 // pred_check
        %p164 = pneg %p90
      $region22: #{discriminator_forward.6} parent=11 // pred_check_branch
        %166 = sbr.rel (%p164) target = $region24
      $region23: #{discriminator_forward.6} parent=11 // pred_region
        _
      $region24: #{discriminator_forward.6} parent=11 // pred_fallthru
        _
      // Predicated region
      $region25: #{discriminator_forward.6} parent=11 // pred_check
        %p167 = pneg %p111
      $region26: #{discriminator_forward.6} parent=11 // pred_check_branch
        %169 = sbr.rel (%p167) target = $region28
      $region27: #{discriminator_forward.6} parent=11 // pred_region
        _
      $region28: #{discriminator_forward.6} parent=11 // pred_fallthru
        _
    $region12: #{discriminator_forward.6} parent=5 // pred_fallthru
      _
    %p170 = scmp.lt.s32.totalorder %s10, 2
    // Predicated region
    $region29: #{discriminator_forward.6} parent=5 // pred_check
      %p171 = pneg %p170
    $region30: #{discriminator_forward.6} parent=5 // pred_check_branch
      %173 = sbr.rel (%p171) target = $region32
    $region31: #{discriminator_forward.6} parent=5 // pred_region
      _
    $region32: #{discriminator_forward.6} parent=5 // pred_fallthru
      _
    %p174 = scmp.le.s32.totalorder 1, %s10
    %p175 = scmp.lt.s32.totalorder %s10, 3
    %p176 = pnand %p174, %p175
    %p177 = pneg %p176
    // Predicated region
    $region33: #{discriminator_forward.6} parent=5 // pred_check
      _
    $region34: #{discriminator_forward.6} parent=5 // pred_check_branch
      %179 = sbr.rel (%p176) target = $region36
    $region35: #{discriminator_forward.6} parent=5 // pred_region
      %s180 = ssub.s32 %s10, 1
      %s181 = smul.u32 64, %s20
      %p182 = scmp.lt.s32.totalorder %s181, 63
      %s183 = scalar_select %p182, %s181, 63
      %s184 = smul.addr %s183, 4
      %s185 = scalar_lea.vmem %s0, %s184
      %p186 = pneg %p48
      %p187 = pneg %p45
      %p188 = pneg %p69
      %p189 = pneg %p66
      %p190 = pneg %p90
      %p191 = pneg %p87
      %p192 = pneg %p111
      %p193 = pneg %p108
      %p194 = pneg %p137
      %p195 = pneg %p134
      %s196 = smul.u32 64, %s20
      %p197 = scmp.lt.s32.totalorder %s196, 63
      %s198 = scalar_select %p197, %s196, 63
      %s199 = smul.addr %s198, 4
      %s200 = scalar_lea.vmem %s4, %s199
      %s201 = smul.u32 64, %s20
      %p202 = scmp.lt.s32.totalorder %s201, 63
      %s203 = scalar_select %p202, %s201, 63
      %s204 = smul.addr %s203, 4
      %s205 = scalar_lea.vmem %s0, %s204
      %s206 = smul.u32 64, %s20
      %s207 = smul.u32 64, %s20
      %p208 = scmp.lt.s32.totalorder %s207, 63
      %s209 = scalar_select %p208, %s207, 63
      %s210 = smul.addr %s209, 4
      %s211 = scalar_lea.vmem %s4, %s210
      %s212 = smul.u32 64, %s20
      %v214 = vld [vmem:[%s205] sm:$0xf]
      %v215 = vld [vmem:[%s205 + $0x4] sm:$0xf]
      %v216 = vld [vmem:[%s205 + $0x8] sm:$0xf]
      %v217 = vld [vmem:[%s205 + $0xc] sm:$0xf]
      %v218 = vld [vmem:[%s205 + $0x10] sm:$0xf]
      %v219 = vld [vmem:[%s205 + $0x14] sm:$0xf]
      %v220 = vld [vmem:[%s205 + $0x18] sm:$0xf]
      %v221 = vld [vmem:[%s205 + $0x1c] sm:$0xf]
      %v222 = vld [vmem:[%s205 + $0x20] sm:$0xf]
      %v223 = vld [vmem:[%s205 + $0x24] sm:$0xf]
      %v224 = vld [vmem:[%s205 + $0x28] sm:$0xf]
      %v225 = vld [vmem:[%s205 + $0x2c] sm:$0xf]
      %v226 = vld [vmem:[%s205 + $0x30] sm:$0xf]
      %v227 = vld [vmem:[%s205 + $0x34] sm:$0xf]
      %v228 = vld [vmem:[%s205 + $0x38] sm:$0xf]
      %v229 = vld [vmem:[%s205 + $0x3c] sm:$0xf]
      %v230 = vld [vmem:[%s205 + $0x40] sm:$0xf]
      %v231 = vld [vmem:[%s205 + $0x44] sm:$0xf]
      %v232 = vld [vmem:[%s205 + $0x48] sm:$0xf]
      %v233 = vld [vmem:[%s205 + $0x4c] sm:$0xf]
      %v234 = vld [vmem:[%s205 + $0x50] sm:$0xf]
      %v235 = vld [vmem:[%s205 + $0x54] sm:$0xf]
      %v236 = vld [vmem:[%s205 + $0x58] sm:$0xf]
      %v237 = vld [vmem:[%s205 + $0x5c] sm:$0xf]
      %v238 = vld [vmem:[%s205 + $0x60] sm:$0xf]
      %v239 = vld [vmem:[%s205 + $0x64] sm:$0xf]
      %v240 = vld [vmem:[%s205 + $0x68] sm:$0xf]
      %v241 = vld [vmem:[%s205 + $0x6c] sm:$0xf]
      %v242 = vld [vmem:[%s205 + $0x70] sm:$0xf]
      %v243 = vld [vmem:[%s205 + $0x74] sm:$0xf]
      %v244 = vld [vmem:[%s205 + $0x78] sm:$0xf]
      %v245 = vld [vmem:[%s205 + $0x7c] sm:$0xf]
      %v246 = vld [vmem:[%s205 + $0x80] sm:$0xf]
      %v247 = vld [vmem:[%s205 + $0x84] sm:$0xf]
      %v248 = vld [vmem:[%s205 + $0x88] sm:$0xf]
      %v249 = vld [vmem:[%s205 + $0x8c] sm:$0xf]
      %v250 = vld [vmem:[%s205 + $0x90] sm:$0xf]
      %v251 = vld [vmem:[%s205 + $0x94] sm:$0xf]
      %v252 = vld [vmem:[%s205 + $0x98] sm:$0xf]
      %v253 = vld [vmem:[%s205 + $0x9c] sm:$0xf]
      %v254 = vld [vmem:[%s205 + $0xa0] sm:$0xf]
      %v255 = vld [vmem:[%s205 + $0xa4] sm:$0xf]
      %v256 = vld [vmem:[%s205 + $0xa8] sm:$0xf]
      %v257 = vld [vmem:[%s205 + $0xac] sm:$0xf]
      %v258 = vld [vmem:[%s205 + $0xb0] sm:$0xf]
      %v259 = vld [vmem:[%s205 + $0xb4] sm:$0xf]
      %v260 = vld [vmem:[%s205 + $0xb8] sm:$0xf]
      %v261 = vld [vmem:[%s205 + $0xbc] sm:$0xf]
      %v262 = vld [vmem:[%s205 + $0xc0] sm:$0xf]
      %v263 = vld [vmem:[%s205 + $0xc4] sm:$0xf]
      %v264 = vld [vmem:[%s205 + $0xc8] sm:$0xf]
      %v265 = vld [vmem:[%s205 + $0xcc] sm:$0xf]
      %v266 = vld [vmem:[%s205 + $0xd0] sm:$0xf]
      %v267 = vld [vmem:[%s205 + $0xd4] sm:$0xf]
      %v268 = vld [vmem:[%s205 + $0xd8] sm:$0xf]
      %v269 = vld [vmem:[%s205 + $0xdc] sm:$0xf]
      %v270 = vld [vmem:[%s205 + $0xe0] sm:$0xf]
      %v271 = vld [vmem:[%s205 + $0xe4] sm:$0xf]
      %v272 = vld [vmem:[%s205 + $0xe8] sm:$0xf]
      %v273 = vld [vmem:[%s205 + $0xec] sm:$0xf]
      %v274 = vld [vmem:[%s205 + $0xf0] sm:$0xf]
      %v275 = vld [vmem:[%s205 + $0xf4] sm:$0xf]
      %v276 = vld [vmem:[%s205 + $0xf8] sm:$0xf]
      %v277 = vld [vmem:[%s205 + $0xfc] sm:$0xf]
      %v278 = vld [vmem:[%s1] sm:$0xf]
      %v279 = vld [vmem:[%s1 + $0x4] sm:$0xf]
      %v280 = vld [vmem:[%s1 + $0x8] sm:$0xf]
      %v281 = vld [vmem:[%s1 + $0xc] sm:$0xf]
      %v282 = vld [vmem:[%s1 + $0x10] sm:$0xf]
      %v283 = vld [vmem:[%s1 + $0x14] sm:$0xf]
      %v284 = vld [vmem:[%s1 + $0x18] sm:$0xf]
      %v285 = vld [vmem:[%s1 + $0x1c] sm:$0xf]
      %v286 = vld [vmem:[%s1 + $0x20] sm:$0xf]
      %v287 = vld [vmem:[%s1 + $0x24] sm:$0xf]
      %v288 = vld [vmem:[%s1 + $0x28] sm:$0xf]
      %v289 = vld [vmem:[%s1 + $0x2c] sm:$0xf]
      %v290 = vld [vmem:[%s1 + $0x30] sm:$0xf]
      %v291 = vld [vmem:[%s1 + $0x34] sm:$0xf]
      %v292 = vld [vmem:[%s1 + $0x38] sm:$0xf]
      %v293 = vld [vmem:[%s1 + $0x3c] sm:$0xf]
      %v358 = vunpack.c.l.b16 %v214
      %v359 = vunpack.c.l.b16 %v215
      %v360 = vunpack.c.l.b16 %v216
      %v361 = vunpack.c.l.b16 %v217
      %v362 = vunpack.c.l.b16 %v218
      %v363 = vunpack.c.l.b16 %v219
      %v364 = vunpack.c.l.b16 %v220
      %v365 = vunpack.c.l.b16 %v221
      %v366 = vunpack.c.l.b16 %v222
      %v367 = vunpack.c.l.b16 %v223
      %v368 = vunpack.c.l.b16 %v224
      %v369 = vunpack.c.l.b16 %v225
      %v370 = vunpack.c.l.b16 %v226
      %v371 = vunpack.c.l.b16 %v227
      %v372 = vunpack.c.l.b16 %v228
      %v373 = vunpack.c.l.b16 %v229
      %v374 = vunpack.c.l.b16 %v230
      %v375 = vunpack.c.l.b16 %v231
      %v376 = vunpack.c.l.b16 %v232
      %v377 = vunpack.c.l.b16 %v233
      %v378 = vunpack.c.l.b16 %v234
      %v379 = vunpack.c.l.b16 %v235
      %v380 = vunpack.c.l.b16 %v236
      %v381 = vunpack.c.l.b16 %v237
      %v382 = vunpack.c.l.b16 %v238
      %v383 = vunpack.c.l.b16 %v239
      %v384 = vunpack.c.l.b16 %v240
      %v385 = vunpack.c.l.b16 %v241
      %v386 = vunpack.c.l.b16 %v242
      %v387 = vunpack.c.l.b16 %v243
      %v388 = vunpack.c.l.b16 %v244
      %v389 = vunpack.c.l.b16 %v245
      %v390 = vunpack.c.l.b16 %v246
      %v391 = vunpack.c.l.b16 %v247
      %v392 = vunpack.c.l.b16 %v248
      %v393 = vunpack.c.l.b16 %v249
      %v394 = vunpack.c.l.b16 %v250
      %v395 = vunpack.c.l.b16 %v251
      %v396 = vunpack.c.l.b16 %v252
      %v397 = vunpack.c.l.b16 %v253
      %v398 = vunpack.c.l.b16 %v254
      %v399 = vunpack.c.l.b16 %v255
      %v400 = vunpack.c.l.b16 %v256
      %v401 = vunpack.c.l.b16 %v257
      %v402 = vunpack.c.l.b16 %v258
      %v403 = vunpack.c.l.b16 %v259
      %v404 = vunpack.c.l.b16 %v260
      %v405 = vunpack.c.l.b16 %v261
      %v406 = vunpack.c.l.b16 %v262
      %v407 = vunpack.c.l.b16 %v263
      %v408 = vunpack.c.l.b16 %v264
      %v409 = vunpack.c.l.b16 %v265
      %v410 = vunpack.c.l.b16 %v266
      %v411 = vunpack.c.l.b16 %v267
      %v412 = vunpack.c.l.b16 %v268
      %v413 = vunpack.c.l.b16 %v269
      %v414 = vunpack.c.l.b16 %v270
      %v415 = vunpack.c.l.b16 %v271
      %v416 = vunpack.c.l.b16 %v272
      %v417 = vunpack.c.l.b16 %v273
      %v418 = vunpack.c.l.b16 %v274
      %v419 = vunpack.c.l.b16 %v275
      %v420 = vunpack.c.l.b16 %v276
      %v421 = vunpack.c.l.b16 %v277
      %v422 = vpack.c.b16 %v359, %v358
      %v423 = vpack.c.b16 %v361, %v360
      %v424 = vpack.c.b16 %v363, %v362
      %v425 = vpack.c.b16 %v365, %v364
      %v426 = vpack.c.b16 %v367, %v366
      %v427 = vpack.c.b16 %v369, %v368
      %v428 = vpack.c.b16 %v371, %v370
      %v429 = vpack.c.b16 %v373, %v372
      %v430 = vpack.c.b16 %v375, %v374
      %v431 = vpack.c.b16 %v377, %v376
      %v432 = vpack.c.b16 %v379, %v378
      %v433 = vpack.c.b16 %v381, %v380
      %v434 = vpack.c.b16 %v383, %v382
      %v435 = vpack.c.b16 %v385, %v384
      %v436 = vpack.c.b16 %v387, %v386
      %v437 = vpack.c.b16 %v389, %v388
      %v438 = vpack.c.b16 %v391, %v390
      %v439 = vpack.c.b16 %v393, %v392
      %v440 = vpack.c.b16 %v395, %v394
      %v441 = vpack.c.b16 %v397, %v396
      %v442 = vpack.c.b16 %v399, %v398
      %v443 = vpack.c.b16 %v401, %v400
      %v444 = vpack.c.b16 %v403, %v402
      %v445 = vpack.c.b16 %v405, %v404
      %v446 = vpack.c.b16 %v407, %v406
      %v447 = vpack.c.b16 %v409, %v408
      %v448 = vpack.c.b16 %v411, %v410
      %v449 = vpack.c.b16 %v413, %v412
      %v450 = vpack.c.b16 %v415, %v414
      %v451 = vpack.c.b16 %v417, %v416
      %v452 = vpack.c.b16 %v419, %v418
      %v453 = vpack.c.b16 %v421, %v420
      %v502 = vunpack.c.l.b16 %v278
      %v503 = vunpack.c.l.b16 %v279
      %v504 = vunpack.c.l.b16 %v280
      %v505 = vunpack.c.l.b16 %v281
      %v506 = vunpack.c.l.b16 %v282
      %v507 = vunpack.c.l.b16 %v283
      %v508 = vunpack.c.l.b16 %v284
      %v509 = vunpack.c.l.b16 %v285
      %v510 = vunpack.c.l.b16 %v286
      %v511 = vunpack.c.l.b16 %v287
      %v512 = vunpack.c.l.b16 %v288
      %v513 = vunpack.c.l.b16 %v289
      %v514 = vunpack.c.l.b16 %v290
      %v515 = vunpack.c.l.b16 %v291
      %v516 = vunpack.c.l.b16 %v292
      %v517 = vunpack.c.l.b16 %v293
      %v518 = vpack.c.b16 %v503, %v502
      %v519 = vpack.c.b16 %v505, %v504
      %v520 = vpack.c.b16 %v507, %v506
      %v521 = vpack.c.b16 %v509, %v508
      %v522 = vpack.c.b16 %v511, %v510
      %v523 = vpack.c.b16 %v513, %v512
      %v524 = vpack.c.b16 %v515, %v514
      %v525 = vpack.c.b16 %v517, %v516
      %534 = vmatprep.subr.bf16.mxu0 0
      %535 = vmatpush1.bf16.msra.mxu0 %v525
      %536 = vmatprep.subr.bf16.mxu0 0
      %537 = vmatpush1.bf16.msra.mxu0 %v524
      %538 = vmatprep.subr.bf16.mxu0 0
      %539 = vmatpush1.bf16.msra.mxu0 %v523
      %540 = vmatprep.subr.bf16.mxu0 0
      %541 = vmatpush1.bf16.msra.mxu0 %v522
      %542 = vmatprep.subr.bf16.mxu0 0
      %543 = vmatpush1.bf16.msra.mxu0 %v521
      %544 = vmatprep.subr.bf16.mxu0 0
      %545 = vmatpush1.bf16.msra.mxu0 %v520
      %546 = vmatprep.subr.bf16.mxu0 0
      %547 = vmatpush1.bf16.msra.mxu0 %v519
      %548 = vmatprep.subr.bf16.mxu0 0
      %549 = vmatpush1.bf16.msra.mxu0 %v518
      %550 = vmatprep.subr.bf16.mxu0 0
      %551 = vmatpush2.bf16.msra.mxu0 0
      %552 = vmatprep.subr.bf16.mxu0 0
      %553 = vmatpush2.bf16.msra.mxu0 0
      %554 = vmatprep.subr.bf16.mxu0 0
      %555 = vmatpush2.bf16.msra.mxu0 0
      %556 = vmatprep.subr.bf16.mxu0 0
      %557 = vmatpush2.bf16.msra.mxu0 0
      %558 = vmatprep.subr.bf16.mxu0 0
      %559 = vmatpush2.bf16.msra.mxu0 0
      %560 = vmatprep.subr.bf16.mxu0 0
      %561 = vmatpush2.bf16.msra.mxu0 0
      %562 = vmatprep.subr.bf16.mxu0 0
      %563 = vmatpush2.bf16.msra.mxu0 0
      %564 = vmatprep.subr.bf16.mxu0 0
      %565 = vmatpush2.bf16.msra.mxu0 0
      %566 = vmatprep.mubr.bf16.mxu0 0
      %567 = vmatmul.mubr.bf16.gmra.mxu0 %v422
      %v568 = vpop.f32.mrf.mxu0
      %v569 = vadd.f32 0.0, %v568
      %v570 = vpop.f32.mrf.mxu0
      %v571 = vpop.f32.mrf.mxu0
      %v572 = vadd.f32 0.0, %v571
      %v573 = vpop.f32.mrf.mxu0
      %574 = vmatprep.mubr.bf16.mxu0 0
      %575 = vmatmul.mubr.bf16.gmra.mxu0 %v423
      %v576 = vpop.f32.mrf.mxu0
      %v577 = vadd.f32 0.0, %v576
      %v578 = vpop.f32.mrf.mxu0
      %v579 = vpop.f32.mrf.mxu0
      %v580 = vadd.f32 0.0, %v579
      %v581 = vpop.f32.mrf.mxu0
      %582 = vmatprep.mubr.bf16.mxu0 0
      %583 = vmatmul.mubr.bf16.gmra.mxu0 %v424
      %v584 = vpop.f32.mrf.mxu0
      %v585 = vadd.f32 0.0, %v584
      %v586 = vpop.f32.mrf.mxu0
      %v587 = vpop.f32.mrf.mxu0
      %v588 = vadd.f32 0.0, %v587
      %v589 = vpop.f32.mrf.mxu0
      %590 = vmatprep.mubr.bf16.mxu0 0
      %591 = vmatmul.mubr.bf16.gmra.mxu0 %v425
      %v592 = vpop.f32.mrf.mxu0
      %v593 = vadd.f32 0.0, %v592
      %v594 = vpop.f32.mrf.mxu0
      %v595 = vpop.f32.mrf.mxu0
      %v596 = vadd.f32 0.0, %v595
      %v597 = vpop.f32.mrf.mxu0
      %598 = vmatprep.mubr.bf16.mxu0 0
      %599 = vmatmul.mubr.bf16.gmra.mxu0 %v426
      %v600 = vpop.f32.mrf.mxu0
      %v601 = vadd.f32 0.0, %v600
      %v602 = vpop.f32.mrf.mxu0
      %v603 = vpop.f32.mrf.mxu0
      %v604 = vadd.f32 0.0, %v603
      %v605 = vpop.f32.mrf.mxu0
      %606 = vmatprep.mubr.bf16.mxu0 0
      %607 = vmatmul.mubr.bf16.gmra.mxu0 %v427
      %v608 = vpop.f32.mrf.mxu0
      %v609 = vadd.f32 0.0, %v608
      %v610 = vpop.f32.mrf.mxu0
      %v611 = vpop.f32.mrf.mxu0
      %v612 = vadd.f32 0.0, %v611
      %v613 = vpop.f32.mrf.mxu0
      %614 = vmatprep.mubr.bf16.mxu0 0
      %615 = vmatmul.mubr.bf16.gmra.mxu0 %v428
      %v616 = vpop.f32.mrf.mxu0
      %v617 = vadd.f32 0.0, %v616
      %v618 = vpop.f32.mrf.mxu0
      %v619 = vpop.f32.mrf.mxu0
      %v620 = vadd.f32 0.0, %v619
      %v621 = vpop.f32.mrf.mxu0
      %622 = vmatprep.mubr.bf16.mxu0 0
      %623 = vmatmul.mubr.bf16.gmra.mxu0 %v429
      %v624 = vpop.f32.mrf.mxu0
      %v625 = vadd.f32 0.0, %v624
      %v626 = vpop.f32.mrf.mxu0
      %v627 = vpop.f32.mrf.mxu0
      %v628 = vadd.f32 0.0, %v627
      %v629 = vpop.f32.mrf.mxu0
      %630 = vmatprep.mubr.bf16.mxu0 0
      %631 = vmatmul.mubr.bf16.gmra.mxu0 %v430
      %v632 = vpop.f32.mrf.mxu0
      %v633 = vadd.f32 0.0, %v632
      %v634 = vpop.f32.mrf.mxu0
      %v635 = vpop.f32.mrf.mxu0
      %v636 = vadd.f32 0.0, %v635
      %v637 = vpop.f32.mrf.mxu0
      %638 = vmatprep.mubr.bf16.mxu0 0
      %639 = vmatmul.mubr.bf16.gmra.mxu0 %v431
      %v640 = vpop.f32.mrf.mxu0
      %v641 = vadd.f32 0.0, %v640
      %v642 = vpop.f32.mrf.mxu0
      %v643 = vpop.f32.mrf.mxu0
      %v644 = vadd.f32 0.0, %v643
      %v645 = vpop.f32.mrf.mxu0
      %646 = vmatprep.mubr.bf16.mxu0 0
      %647 = vmatmul.mubr.bf16.gmra.mxu0 %v432
      %v648 = vpop.f32.mrf.mxu0
      %v649 = vadd.f32 0.0, %v648
      %v650 = vpop.f32.mrf.mxu0
      %v651 = vpop.f32.mrf.mxu0
      %v652 = vadd.f32 0.0, %v651
      %v653 = vpop.f32.mrf.mxu0
      %654 = vmatprep.mubr.bf16.mxu0 0
      %655 = vmatmul.mubr.bf16.gmra.mxu0 %v433
      %v656 = vpop.f32.mrf.mxu0
      %v657 = vadd.f32 0.0, %v656
      %v658 = vpop.f32.mrf.mxu0
      %v659 = vpop.f32.mrf.mxu0
      %v660 = vadd.f32 0.0, %v659
      %v661 = vpop.f32.mrf.mxu0
      %662 = vmatprep.mubr.bf16.mxu0 0
      %663 = vmatmul.mubr.bf16.gmra.mxu0 %v434
      %v664 = vpop.f32.mrf.mxu0
      %v665 = vadd.f32 0.0, %v664
      %v666 = vpop.f32.mrf.mxu0
      %v667 = vpop.f32.mrf.mxu0
      %v668 = vadd.f32 0.0, %v667
      %v669 = vpop.f32.mrf.mxu0
      %670 = vmatprep.mubr.bf16.mxu0 0
      %671 = vmatmul.mubr.bf16.gmra.mxu0 %v435
      %v672 = vpop.f32.mrf.mxu0
      %v673 = vadd.f32 0.0, %v672
      %v674 = vpop.f32.mrf.mxu0
      %v675 = vpop.f32.mrf.mxu0
      %v676 = vadd.f32 0.0, %v675
      %v677 = vpop.f32.mrf.mxu0
      %678 = vmatprep.mubr.bf16.mxu0 0
      %679 = vmatmul.mubr.bf16.gmra.mxu0 %v436
      %v680 = vpop.f32.mrf.mxu0
      %v681 = vadd.f32 0.0, %v680
      %v682 = vpop.f32.mrf.mxu0
      %v683 = vpop.f32.mrf.mxu0
      %v684 = vadd.f32 0.0, %v683
      %v685 = vpop.f32.mrf.mxu0
      %686 = vmatprep.mubr.bf16.mxu0 0
      %687 = vmatmul.mubr.bf16.gmra.mxu0 %v437
      %v688 = vpop.f32.mrf.mxu0
      %v689 = vadd.f32 0.0, %v688
      %v690 = vpop.f32.mrf.mxu0
      %v691 = vpop.f32.mrf.mxu0
      %v692 = vadd.f32 0.0, %v691
      %v693 = vpop.f32.mrf.mxu0
      %694 = vmatprep.mubr.bf16.mxu0 0
      %695 = vmatmul.mubr.bf16.gmra.mxu0 %v438
      %v696 = vpop.f32.mrf.mxu0
      %v697 = vadd.f32 0.0, %v696
      %v698 = vpop.f32.mrf.mxu0
      %v699 = vpop.f32.mrf.mxu0
      %v700 = vadd.f32 0.0, %v699
      %v701 = vpop.f32.mrf.mxu0
      %702 = vmatprep.mubr.bf16.mxu0 0
      %703 = vmatmul.mubr.bf16.gmra.mxu0 %v439
      %v704 = vpop.f32.mrf.mxu0
      %v705 = vadd.f32 0.0, %v704
      %v706 = vpop.f32.mrf.mxu0
      %v707 = vpop.f32.mrf.mxu0
      %v708 = vadd.f32 0.0, %v707
      %v709 = vpop.f32.mrf.mxu0
      %710 = vmatprep.mubr.bf16.mxu0 0
      %711 = vmatmul.mubr.bf16.gmra.mxu0 %v440
      %v712 = vpop.f32.mrf.mxu0
      %v713 = vadd.f32 0.0, %v712
      %v714 = vpop.f32.mrf.mxu0
      %v715 = vpop.f32.mrf.mxu0
      %v716 = vadd.f32 0.0, %v715
      %v717 = vpop.f32.mrf.mxu0
      %718 = vmatprep.mubr.bf16.mxu0 0
      %719 = vmatmul.mubr.bf16.gmra.mxu0 %v441
      %v720 = vpop.f32.mrf.mxu0
      %v721 = vadd.f32 0.0, %v720
      %v722 = vpop.f32.mrf.mxu0
      %v723 = vpop.f32.mrf.mxu0
      %v724 = vadd.f32 0.0, %v723
      %v725 = vpop.f32.mrf.mxu0
      %726 = vmatprep.mubr.bf16.mxu0 0
      %727 = vmatmul.mubr.bf16.gmra.mxu0 %v442
      %v728 = vpop.f32.mrf.mxu0
      %v729 = vadd.f32 0.0, %v728
      %v730 = vpop.f32.mrf.mxu0
      %v731 = vpop.f32.mrf.mxu0
      %v732 = vadd.f32 0.0, %v731
      %v733 = vpop.f32.mrf.mxu0
      %734 = vmatprep.mubr.bf16.mxu0 0
      %735 = vmatmul.mubr.bf16.gmra.mxu0 %v443
      %v736 = vpop.f32.mrf.mxu0
      %v737 = vadd.f32 0.0, %v736
      %v738 = vpop.f32.mrf.mxu0
      %v739 = vpop.f32.mrf.mxu0
      %v740 = vadd.f32 0.0, %v739
      %v741 = vpop.f32.mrf.mxu0
      %742 = vmatprep.mubr.bf16.mxu0 0
      %743 = vmatmul.mubr.bf16.gmra.mxu0 %v444
      %v744 = vpop.f32.mrf.mxu0
      %v745 = vadd.f32 0.0, %v744
      %v746 = vpop.f32.mrf.mxu0
      %v747 = vpop.f32.mrf.mxu0
      %v748 = vadd.f32 0.0, %v747
      %v749 = vpop.f32.mrf.mxu0
      %750 = vmatprep.mubr.bf16.mxu0 0
      %751 = vmatmul.mubr.bf16.gmra.mxu0 %v445
      %v752 = vpop.f32.mrf.mxu0
      %v753 = vadd.f32 0.0, %v752
      %v754 = vpop.f32.mrf.mxu0
      %v755 = vpop.f32.mrf.mxu0
      %v756 = vadd.f32 0.0, %v755
      %v757 = vpop.f32.mrf.mxu0
      %758 = vmatprep.mubr.bf16.mxu0 0
      %759 = vmatmul.mubr.bf16.gmra.mxu0 %v446
      %v760 = vpop.f32.mrf.mxu0
      %v761 = vadd.f32 0.0, %v760
      %v762 = vpop.f32.mrf.mxu0
      %v763 = vpop.f32.mrf.mxu0
      %v764 = vadd.f32 0.0, %v763
      %v765 = vpop.f32.mrf.mxu0
      %766 = vmatprep.mubr.bf16.mxu0 0
      %767 = vmatmul.mubr.bf16.gmra.mxu0 %v447
      %v768 = vpop.f32.mrf.mxu0
      %v769 = vadd.f32 0.0, %v768
      %v770 = vpop.f32.mrf.mxu0
      %v771 = vpop.f32.mrf.mxu0
      %v772 = vadd.f32 0.0, %v771
      %v773 = vpop.f32.mrf.mxu0
      %774 = vmatprep.mubr.bf16.mxu0 0
      %775 = vmatmul.mubr.bf16.gmra.mxu0 %v448
      %v776 = vpop.f32.mrf.mxu0
      %v777 = vadd.f32 0.0, %v776
      %v778 = vpop.f32.mrf.mxu0
      %v779 = vpop.f32.mrf.mxu0
      %v780 = vadd.f32 0.0, %v779
      %v781 = vpop.f32.mrf.mxu0
      %782 = vmatprep.mubr.bf16.mxu0 0
      %783 = vmatmul.mubr.bf16.gmra.mxu0 %v449
      %v784 = vpop.f32.mrf.mxu0
      %v785 = vadd.f32 0.0, %v784
      %v786 = vpop.f32.mrf.mxu0
      %v787 = vpop.f32.mrf.mxu0
      %v788 = vadd.f32 0.0, %v787
      %v789 = vpop.f32.mrf.mxu0
      %790 = vmatprep.mubr.bf16.mxu0 0
      %791 = vmatmul.mubr.bf16.gmra.mxu0 %v450
      %v792 = vpop.f32.mrf.mxu0
      %v793 = vadd.f32 0.0, %v792
      %v794 = vpop.f32.mrf.mxu0
      %v795 = vpop.f32.mrf.mxu0
      %v796 = vadd.f32 0.0, %v795
      %v797 = vpop.f32.mrf.mxu0
      %798 = vmatprep.mubr.bf16.mxu0 0
      %799 = vmatmul.mubr.bf16.gmra.mxu0 %v451
      %v800 = vpop.f32.mrf.mxu0
      %v801 = vadd.f32 0.0, %v800
      %v802 = vpop.f32.mrf.mxu0
      %v803 = vpop.f32.mrf.mxu0
      %v804 = vadd.f32 0.0, %v803
      %v805 = vpop.f32.mrf.mxu0
      %806 = vmatprep.mubr.bf16.mxu0 0
      %807 = vmatmul.mubr.bf16.gmra.mxu0 %v452
      %v808 = vpop.f32.mrf.mxu0
      %v809 = vadd.f32 0.0, %v808
      %v810 = vpop.f32.mrf.mxu0
      %v811 = vpop.f32.mrf.mxu0
      %v812 = vadd.f32 0.0, %v811
      %v813 = vpop.f32.mrf.mxu0
      %814 = vmatprep.mubr.bf16.mxu0 0
      %815 = vmatmul.mubr.bf16.gmra.mxu0 %v453
      %v816 = vpop.f32.mrf.mxu0
      %v817 = vadd.f32 0.0, %v816
      %v818 = vpop.f32.mrf.mxu0
      %v819 = vpop.f32.mrf.mxu0
      %v820 = vadd.f32 0.0, %v819
      %v821 = vpop.f32.mrf.mxu0
      %822 = vdwg.mxu0
      %p823 = scmp.eq.s32.totalorder %s19, 0
      // Predicated region
      $region37: #{discriminator_forward.6} parent=35 // pred_check
        %p824 = pneg %p823
      $region38: #{discriminator_forward.6} parent=35 // pred_check_branch
        %826 = sbr.rel (%p824) target = $region40
      $region39: #{discriminator_forward.6} parent=35 // pred_region
        %p827 = scmp.eq.s32.totalorder %s20, 0
        // Predicated region
        $region41: #{discriminator_forward.6} parent=39 // pred_check
          %p828 = pneg %p827
        $region42: #{discriminator_forward.6} parent=39 // pred_check_branch
          %830 = sbr.rel (%p828) target = $region44
        $region43: #{discriminator_forward.6} parent=39 // pred_region
          %vm831 = vcmask 122880
          %832 = vst.msk [vmem:[#allocation2] sm:$0x1] %vm831, 0.0
          %833 = vst.msk [vmem:[#allocation3] sm:$0x1] %vm831, 0.0
        $region44: #{discriminator_forward.6} parent=39 // pred_fallthru
          _
        %v834 = vld [vmem:[#allocation2] sm:$0x1]
        %vm835 = vcmask 130048
        %v836 = vsel %vm835, %v569, 0.0
        %v837 = vsel %vm835, %v572, 0.0
        %v838 = vadd.f32 %v836, %v837
        %v839 = vsel %vm835, %v577, 0.0
        %v840 = vadd.f32 %v838, %v839
        %v841 = vsel %vm835, %v580, 0.0
        %v842 = vadd.f32 %v840, %v841
        %v843 = vsel %vm835, %v585, 0.0
        %v844 = vadd.f32 %v842, %v843
        %v845 = vsel %vm835, %v588, 0.0
        %v846 = vadd.f32 %v844, %v845
        %v847 = vsel %vm835, %v593, 0.0
        %v848 = vadd.f32 %v846, %v847
        %v849 = vsel %vm835, %v596, 0.0
        %v850 = vadd.f32 %v848, %v849
        %v851 = vsel %vm835, %v601, 0.0
        %v852 = vadd.f32 %v850, %v851
        %v853 = vsel %vm835, %v604, 0.0
        %v854 = vadd.f32 %v852, %v853
        %v855 = vsel %vm835, %v609, 0.0
        %v856 = vadd.f32 %v854, %v855
        %v857 = vsel %vm835, %v612, 0.0
        %v858 = vadd.f32 %v856, %v857
        %v859 = vsel %vm835, %v617, 0.0
        %v860 = vadd.f32 %v858, %v859
        %v861 = vsel %vm835, %v620, 0.0
        %v862 = vadd.f32 %v860, %v861
        %v863 = vsel %vm835, %v625, 0.0
        %v864 = vadd.f32 %v862, %v863
        %v865 = vsel %vm835, %v628, 0.0
        %v866 = vadd.f32 %v864, %v865
        %v867 = vsel %vm835, %v633, 0.0
        %v868 = vadd.f32 %v866, %v867
        %v869 = vsel %vm835, %v636, 0.0
        %v870 = vadd.f32 %v868, %v869
        %v871 = vsel %vm835, %v641, 0.0
        %v872 = vadd.f32 %v870, %v871
        %v873 = vsel %vm835, %v644, 0.0
        %v874 = vadd.f32 %v872, %v873
        %v875 = vsel %vm835, %v649, 0.0
        %v876 = vadd.f32 %v874, %v875
        %v877 = vsel %vm835, %v652, 0.0
        %v878 = vadd.f32 %v876, %v877
        %v879 = vsel %vm835, %v657, 0.0
        %v880 = vadd.f32 %v878, %v879
        %v881 = vsel %vm835, %v660, 0.0
        %v882 = vadd.f32 %v880, %v881
        %v883 = vsel %vm835, %v665, 0.0
        %v884 = vadd.f32 %v882, %v883
        %v885 = vsel %vm835, %v668, 0.0
        %v886 = vadd.f32 %v884, %v885
        %v887 = vsel %vm835, %v673, 0.0
        %v888 = vadd.f32 %v886, %v887
        %v889 = vsel %vm835, %v676, 0.0
        %v890 = vadd.f32 %v888, %v889
        %v891 = vsel %vm835, %v681, 0.0
        %v892 = vadd.f32 %v890, %v891
        %v893 = vsel %vm835, %v684, 0.0
        %v894 = vadd.f32 %v892, %v893
        %v895 = vsel %vm835, %v689, 0.0
        %v896 = vadd.f32 %v894, %v895
        %v897 = vsel %vm835, %v692, 0.0
        %v898 = vadd.f32 %v896, %v897
        %v899 = vsel %vm835, %v697, 0.0
        %v900 = vadd.f32 %v898, %v899
        %v901 = vsel %vm835, %v700, 0.0
        %v902 = vadd.f32 %v900, %v901
        %v903 = vsel %vm835, %v705, 0.0
        %v904 = vadd.f32 %v902, %v903
        %v905 = vsel %vm835, %v708, 0.0
        %v906 = vadd.f32 %v904, %v905
        %v907 = vsel %vm835, %v713, 0.0
        %v908 = vadd.f32 %v906, %v907
        %v909 = vsel %vm835, %v716, 0.0
        %v910 = vadd.f32 %v908, %v909
        %v911 = vsel %vm835, %v721, 0.0
        %v912 = vadd.f32 %v910, %v911
        %v913 = vsel %vm835, %v724, 0.0
        %v914 = vadd.f32 %v912, %v913
        %v915 = vsel %vm835, %v729, 0.0
        %v916 = vadd.f32 %v914, %v915
        %v917 = vsel %vm835, %v732, 0.0
        %v918 = vadd.f32 %v916, %v917
        %v919 = vsel %vm835, %v737, 0.0
        %v920 = vadd.f32 %v918, %v919
        %v921 = vsel %vm835, %v740, 0.0
        %v922 = vadd.f32 %v920, %v921
        %v923 = vsel %vm835, %v745, 0.0
        %v924 = vadd.f32 %v922, %v923
        %v925 = vsel %vm835, %v748, 0.0
        %v926 = vadd.f32 %v924, %v925
        %v927 = vsel %vm835, %v753, 0.0
        %v928 = vadd.f32 %v926, %v927
        %v929 = vsel %vm835, %v756, 0.0
        %v930 = vadd.f32 %v928, %v929
        %v931 = vsel %vm835, %v761, 0.0
        %v932 = vadd.f32 %v930, %v931
        %v933 = vsel %vm835, %v764, 0.0
        %v934 = vadd.f32 %v932, %v933
        %v935 = vsel %vm835, %v769, 0.0
        %v936 = vadd.f32 %v934, %v935
        %v937 = vsel %vm835, %v772, 0.0
        %v938 = vadd.f32 %v936, %v937
        %v939 = vsel %vm835, %v777, 0.0
        %v940 = vadd.f32 %v938, %v939
        %v941 = vsel %vm835, %v780, 0.0
        %v942 = vadd.f32 %v940, %v941
        %v943 = vsel %vm835, %v785, 0.0
        %v944 = vadd.f32 %v942, %v943
        %v945 = vsel %vm835, %v788, 0.0
        %v946 = vadd.f32 %v944, %v945
        %v947 = vsel %vm835, %v793, 0.0
        %v948 = vadd.f32 %v946, %v947
        %v949 = vsel %vm835, %v796, 0.0
        %v950 = vadd.f32 %v948, %v949
        %v951 = vsel %vm835, %v801, 0.0
        %v952 = vadd.f32 %v950, %v951
        %v953 = vsel %vm835, %v804, 0.0
        %v954 = vadd.f32 %v952, %v953
        %v955 = vsel %vm835, %v809, 0.0
        %v956 = vadd.f32 %v954, %v955
        %v957 = vsel %vm835, %v812, 0.0
        %v958 = vadd.f32 %v956, %v957
        %v959 = vsel %vm835, %v817, 0.0
        %v960 = vadd.f32 %v958, %v959
        %v961 = vsel %vm835, %v820, 0.0
        %v962 = vadd.f32 %v960, %v961
        %v963 = vrot.slane %v962, 4
        %v964 = vadd.f32 %v962, %v963
        %v965 = vrot.slane %v964, 2
        %v966 = vadd.f32 %v964, %v965
        %v967 = vrot.slane %v966, 1
        %v968 = vadd.f32 %v966, %v967
        %v969 = vadd.f32 %v834, %v968
        %vm970 = vcmask 122880
        %971 = vst.msk [vmem:[#allocation2] sm:$0x1] %vm970, %v969
        %v972 = vld [vmem:[#allocation3] sm:$0x1]
        %v973 = vmul.f32 %v569, %v569
        %v974 = vmul.f32 %v572, %v572
        %v975 = vmul.f32 %v577, %v577
        %v976 = vmul.f32 %v580, %v580
        %v977 = vmul.f32 %v585, %v585
        %v978 = vmul.f32 %v588, %v588
        %v979 = vmul.f32 %v593, %v593
        %v980 = vmul.f32 %v596, %v596
        %v981 = vmul.f32 %v601, %v601
        %v982 = vmul.f32 %v604, %v604
        %v983 = vmul.f32 %v609, %v609
        %v984 = vmul.f32 %v612, %v612
        %v985 = vmul.f32 %v617, %v617
        %v986 = vmul.f32 %v620, %v620
        %v987 = vmul.f32 %v625, %v625
        %v988 = vmul.f32 %v628, %v628
        %v989 = vmul.f32 %v633, %v633
        %v990 = vmul.f32 %v636, %v636
        %v991 = vmul.f32 %v641, %v641
        %v992 = vmul.f32 %v644, %v644
        %v993 = vmul.f32 %v649, %v649
        %v994 = vmul.f32 %v652, %v652
        %v995 = vmul.f32 %v657, %v657
        %v996 = vmul.f32 %v660, %v660
        %v997 = vmul.f32 %v665, %v665
        %v998 = vmul.f32 %v668, %v668
        %v999 = vmul.f32 %v673, %v673
        %v1000 = vmul.f32 %v676, %v676
        %v1001 = vmul.f32 %v681, %v681
        %v1002 = vmul.f32 %v684, %v684
        %v1003 = vmul.f32 %v689, %v689
        %v1004 = vmul.f32 %v692, %v692
        %v1005 = vmul.f32 %v697, %v697
        %v1006 = vmul.f32 %v700, %v700
        %v1007 = vmul.f32 %v705, %v705
        %v1008 = vmul.f32 %v708, %v708
        %v1009 = vmul.f32 %v713, %v713
        %v1010 = vmul.f32 %v716, %v716
        %v1011 = vmul.f32 %v721, %v721
        %v1012 = vmul.f32 %v724, %v724
        %v1013 = vmul.f32 %v729, %v729
        %v1014 = vmul.f32 %v732, %v732
        %v1015 = vmul.f32 %v737, %v737
        %v1016 = vmul.f32 %v740, %v740
        %v1017 = vmul.f32 %v745, %v745
        %v1018 = vmul.f32 %v748, %v748
        %v1019 = vmul.f32 %v753, %v753
        %v1020 = vmul.f32 %v756, %v756
        %v1021 = vmul.f32 %v761, %v761
        %v1022 = vmul.f32 %v764, %v764
        %v1023 = vmul.f32 %v769, %v769
        %v1024 = vmul.f32 %v772, %v772
        %v1025 = vmul.f32 %v777, %v777
        %v1026 = vmul.f32 %v780, %v780
        %v1027 = vmul.f32 %v785, %v785
        %v1028 = vmul.f32 %v788, %v788
        %v1029 = vmul.f32 %v793, %v793
        %v1030 = vmul.f32 %v796, %v796
        %v1031 = vmul.f32 %v801, %v801
        %v1032 = vmul.f32 %v804, %v804
        %v1033 = vmul.f32 %v809, %v809
        %v1034 = vmul.f32 %v812, %v812
        %v1035 = vmul.f32 %v817, %v817
        %v1036 = vmul.f32 %v820, %v820
        %v1037 = vsel %vm835, %v973, 0.0
        %v1038 = vsel %vm835, %v974, 0.0
        %v1039 = vadd.f32 %v1037, %v1038
        %v1040 = vsel %vm835, %v975, 0.0
        %v1041 = vadd.f32 %v1039, %v1040
        %v1042 = vsel %vm835, %v976, 0.0
        %v1043 = vadd.f32 %v1041, %v1042
        %v1044 = vsel %vm835, %v977, 0.0
        %v1045 = vadd.f32 %v1043, %v1044
        %v1046 = vsel %vm835, %v978, 0.0
        %v1047 = vadd.f32 %v1045, %v1046
        %v1048 = vsel %vm835, %v979, 0.0
        %v1049 = vadd.f32 %v1047, %v1048
        %v1050 = vsel %vm835, %v980, 0.0
        %v1051 = vadd.f32 %v1049, %v1050
        %v1052 = vsel %vm835, %v981, 0.0
        %v1053 = vadd.f32 %v1051, %v1052
        %v1054 = vsel %vm835, %v982, 0.0
        %v1055 = vadd.f32 %v1053, %v1054
        %v1056 = vsel %vm835, %v983, 0.0
        %v1057 = vadd.f32 %v1055, %v1056
        %v1058 = vsel %vm835, %v984, 0.0
        %v1059 = vadd.f32 %v1057, %v1058
        %v1060 = vsel %vm835, %v985, 0.0
        %v1061 = vadd.f32 %v1059, %v1060
        %v1062 = vsel %vm835, %v986, 0.0
        %v1063 = vadd.f32 %v1061, %v1062
        %v1064 = vsel %vm835, %v987, 0.0
        %v1065 = vadd.f32 %v1063, %v1064
        %v1066 = vsel %vm835, %v988, 0.0
        %v1067 = vadd.f32 %v1065, %v1066
        %v1068 = vsel %vm835, %v989, 0.0
        %v1069 = vadd.f32 %v1067, %v1068
        %v1070 = vsel %vm835, %v990, 0.0
        %v1071 = vadd.f32 %v1069, %v1070
        %v1072 = vsel %vm835, %v991, 0.0
        %v1073 = vadd.f32 %v1071, %v1072
        %v1074 = vsel %vm835, %v992, 0.0
        %v1075 = vadd.f32 %v1073, %v1074
        %v1076 = vsel %vm835, %v993, 0.0
        %v1077 = vadd.f32 %v1075, %v1076
        %v1078 = vsel %vm835, %v994, 0.0
        %v1079 = vadd.f32 %v1077, %v1078
        %v1080 = vsel %vm835, %v995, 0.0
        %v1081 = vadd.f32 %v1079, %v1080
        %v1082 = vsel %vm835, %v996, 0.0
        %v1083 = vadd.f32 %v1081, %v1082
        %v1084 = vsel %vm835, %v997, 0.0
        %v1085 = vadd.f32 %v1083, %v1084
        %v1086 = vsel %vm835, %v998, 0.0
        %v1087 = vadd.f32 %v1085, %v1086
        %v1088 = vsel %vm835, %v999, 0.0
        %v1089 = vadd.f32 %v1087, %v1088
        %v1090 = vsel %vm835, %v1000, 0.0
        %v1091 = vadd.f32 %v1089, %v1090
        %v1092 = vsel %vm835, %v1001, 0.0
        %v1093 = vadd.f32 %v1091, %v1092
        %v1094 = vsel %vm835, %v1002, 0.0
        %v1095 = vadd.f32 %v1093, %v1094
        %v1096 = vsel %vm835, %v1003, 0.0
        %v1097 = vadd.f32 %v1095, %v1096
        %v1098 = vsel %vm835, %v1004, 0.0
        %v1099 = vadd.f32 %v1097, %v1098
        %v1100 = vsel %vm835, %v1005, 0.0
        %v1101 = vadd.f32 %v1099, %v1100
        %v1102 = vsel %vm835, %v1006, 0.0
        %v1103 = vadd.f32 %v1101, %v1102
        %v1104 = vsel %vm835, %v1007, 0.0
        %v1105 = vadd.f32 %v1103, %v1104
        %v1106 = vsel %vm835, %v1008, 0.0
        %v1107 = vadd.f32 %v1105, %v1106
        %v1108 = vsel %vm835, %v1009, 0.0
        %v1109 = vadd.f32 %v1107, %v1108
        %v1110 = vsel %vm835, %v1010, 0.0
        %v1111 = vadd.f32 %v1109, %v1110
        %v1112 = vsel %vm835, %v1011, 0.0
        %v1113 = vadd.f32 %v1111, %v1112
        %v1114 = vsel %vm835, %v1012, 0.0
        %v1115 = vadd.f32 %v1113, %v1114
        %v1116 = vsel %vm835, %v1013, 0.0
        %v1117 = vadd.f32 %v1115, %v1116
        %v1118 = vsel %vm835, %v1014, 0.0
        %v1119 = vadd.f32 %v1117, %v1118
        %v1120 = vsel %vm835, %v1015, 0.0
        %v1121 = vadd.f32 %v1119, %v1120
        %v1122 = vsel %vm835, %v1016, 0.0
        %v1123 = vadd.f32 %v1121, %v1122
        %v1124 = vsel %vm835, %v1017, 0.0
        %v1125 = vadd.f32 %v1123, %v1124
        %v1126 = vsel %vm835, %v1018, 0.0
        %v1127 = vadd.f32 %v1125, %v1126
        %v1128 = vsel %vm835, %v1019, 0.0
        %v1129 = vadd.f32 %v1127, %v1128
        %v1130 = vsel %vm835, %v1020, 0.0
        %v1131 = vadd.f32 %v1129, %v1130
        %v1132 = vsel %vm835, %v1021, 0.0
        %v1133 = vadd.f32 %v1131, %v1132
        %v1134 = vsel %vm835, %v1022, 0.0
        %v1135 = vadd.f32 %v1133, %v1134
        %v1136 = vsel %vm835, %v1023, 0.0
        %v1137 = vadd.f32 %v1135, %v1136
        %v1138 = vsel %vm835, %v1024, 0.0
        %v1139 = vadd.f32 %v1137, %v1138
        %v1140 = vsel %vm835, %v1025, 0.0
        %v1141 = vadd.f32 %v1139, %v1140
        %v1142 = vsel %vm835, %v1026, 0.0
        %v1143 = vadd.f32 %v1141, %v1142
        %v1144 = vsel %vm835, %v1027, 0.0
        %v1145 = vadd.f32 %v1143, %v1144
        %v1146 = vsel %vm835, %v1028, 0.0
        %v1147 = vadd.f32 %v1145, %v1146
        %v1148 = vsel %vm835, %v1029, 0.0
        %v1149 = vadd.f32 %v1147, %v1148
        %v1150 = vsel %vm835, %v1030, 0.0
        %v1151 = vadd.f32 %v1149, %v1150
        %v1152 = vsel %vm835, %v1031, 0.0
        %v1153 = vadd.f32 %v1151, %v1152
        %v1154 = vsel %vm835, %v1032, 0.0
        %v1155 = vadd.f32 %v1153, %v1154
        %v1156 = vsel %vm835, %v1033, 0.0
        %v1157 = vadd.f32 %v1155, %v1156
        %v1158 = vsel %vm835, %v1034, 0.0
        %v1159 = vadd.f32 %v1157, %v1158
        %v1160 = vsel %vm835, %v1035, 0.0
        %v1161 = vadd.f32 %v1159, %v1160
        %v1162 = vsel %vm835, %v1036, 0.0
        %v1163 = vadd.f32 %v1161, %v1162
        %v1164 = vrot.slane %v1163, 4
        %v1165 = vadd.f32 %v1163, %v1164
        %v1166 = vrot.slane %v1165, 2
        %v1167 = vadd.f32 %v1165, %v1166
        %v1168 = vrot.slane %v1167, 1
        %v1169 = vadd.f32 %v1167, %v1168
        %v1170 = vadd.f32 %v972, %v1169
        %1171 = vst.msk [vmem:[#allocation3] sm:$0x1] %vm970, %v1170
      $region40: #{discriminator_forward.6} parent=35 // pred_fallthru
        _
      %p1172 = scmp.eq.s32.totalorder %s19, 1
      // Predicated region
      $region45: #{discriminator_forward.6} parent=35 // pred_check
        %p1173 = pneg %p1172
      $region46: #{discriminator_forward.6} parent=35 // pred_check_branch
        %1175 = sbr.rel (%p1173) target = $region48
      $region47: #{discriminator_forward.6} parent=35 // pred_region
        %v1176 = vld [vmem:[#allocation2] sm:$0x1]
        %v1177 = vmul.f32 %v1176, 0.001953125
        %v1178 = vld [vmem:[#allocation3] sm:$0x1]
        %v1179 = vmul.f32 %v1178, 0.001953125
        %v1180 = vmul.f32 %v1177, %v1177
        %v1181 = vsub.f32 %v1179, %v1180
        %v1182 = vmax.f32 %v1181, 0.0
        %v1183 = vadd.f32 %v1182, 1e-05
        %v1184 = vrsqrt.pop %v1183
        %v1185 = vld [vmem:[%s2] sm:$0x1]
        %v1186 = vmul.f32 %v1185, %v1184
        %v1187 = vld [vmem:[%s3] sm:$0x1]
        %v1188 = vmul.f32 %v1177, %v1186
        %v1189 = vsub.f32 %v1187, %v1188
        %v1191 = vlaneseq
        %v1192 = vshrl.u32 %v1191, 7
        %v1193 = vsub.s32 0, %v1192
        %v1194 = vrot.slane %v1186, %v1193
        %v1196 = vmul.f32 %v569, %v1194
        %v1197 = vmul.f32 %v572, %v1194
        %v1198 = vmul.f32 %v577, %v1194
        %v1199 = vmul.f32 %v580, %v1194
        %v1200 = vmul.f32 %v585, %v1194
        %v1201 = vmul.f32 %v588, %v1194
        %v1202 = vmul.f32 %v593, %v1194
        %v1203 = vmul.f32 %v596, %v1194
        %v1204 = vmul.f32 %v601, %v1194
        %v1205 = vmul.f32 %v604, %v1194
        %v1206 = vmul.f32 %v609, %v1194
        %v1207 = vmul.f32 %v612, %v1194
        %v1208 = vmul.f32 %v617, %v1194
        %v1209 = vmul.f32 %v620, %v1194
        %v1210 = vmul.f32 %v625, %v1194
        %v1211 = vmul.f32 %v628, %v1194
        %v1212 = vmul.f32 %v633, %v1194
        %v1213 = vmul.f32 %v636, %v1194
        %v1214 = vmul.f32 %v641, %v1194
        %v1215 = vmul.f32 %v644, %v1194
        %v1216 = vmul.f32 %v649, %v1194
        %v1217 = vmul.f32 %v652, %v1194
        %v1218 = vmul.f32 %v657, %v1194
        %v1219 = vmul.f32 %v660, %v1194
        %v1220 = vmul.f32 %v665, %v1194
        %v1221 = vmul.f32 %v668, %v1194
        %v1222 = vmul.f32 %v673, %v1194
        %v1223 = vmul.f32 %v676, %v1194
        %v1224 = vmul.f32 %v681, %v1194
        %v1225 = vmul.f32 %v684, %v1194
        %v1226 = vmul.f32 %v689, %v1194
        %v1227 = vmul.f32 %v692, %v1194
        %v1228 = vmul.f32 %v697, %v1194
        %v1229 = vmul.f32 %v700, %v1194
        %v1230 = vmul.f32 %v705, %v1194
        %v1231 = vmul.f32 %v708, %v1194
        %v1232 = vmul.f32 %v713, %v1194
        %v1233 = vmul.f32 %v716, %v1194
        %v1234 = vmul.f32 %v721, %v1194
        %v1235 = vmul.f32 %v724, %v1194
        %v1236 = vmul.f32 %v729, %v1194
        %v1237 = vmul.f32 %v732, %v1194
        %v1238 = vmul.f32 %v737, %v1194
        %v1239 = vmul.f32 %v740, %v1194
        %v1240 = vmul.f32 %v745, %v1194
        %v1241 = vmul.f32 %v748, %v1194
        %v1242 = vmul.f32 %v753, %v1194
        %v1243 = vmul.f32 %v756, %v1194
        %v1244 = vmul.f32 %v761, %v1194
        %v1245 = vmul.f32 %v764, %v1194
        %v1246 = vmul.f32 %v769, %v1194
        %v1247 = vmul.f32 %v772, %v1194
        %v1248 = vmul.f32 %v777, %v1194
        %v1249 = vmul.f32 %v780, %v1194
        %v1250 = vmul.f32 %v785, %v1194
        %v1251 = vmul.f32 %v788, %v1194
        %v1252 = vmul.f32 %v793, %v1194
        %v1253 = vmul.f32 %v796, %v1194
        %v1254 = vmul.f32 %v801, %v1194
        %v1255 = vmul.f32 %v804, %v1194
        %v1256 = vmul.f32 %v809, %v1194
        %v1257 = vmul.f32 %v812, %v1194
        %v1258 = vmul.f32 %v817, %v1194
        %v1259 = vmul.f32 %v820, %v1194
        %v1261 = vlaneseq
        %v1262 = vshrl.u32 %v1261, 7
        %v1263 = vsub.s32 0, %v1262
        %v1264 = vrot.slane %v1189, %v1263
        %v1266 = vadd.f32 %v1196, %v1264
        %v1267 = vadd.f32 %v1197, %v1264
        %v1268 = vadd.f32 %v1198, %v1264
        %v1269 = vadd.f32 %v1199, %v1264
        %v1270 = vadd.f32 %v1200, %v1264
        %v1271 = vadd.f32 %v1201, %v1264
        %v1272 = vadd.f32 %v1202, %v1264
        %v1273 = vadd.f32 %v1203, %v1264
        %v1274 = vadd.f32 %v1204, %v1264
        %v1275 = vadd.f32 %v1205, %v1264
        %v1276 = vadd.f32 %v1206, %v1264
        %v1277 = vadd.f32 %v1207, %v1264
        %v1278 = vadd.f32 %v1208, %v1264
        %v1279 = vadd.f32 %v1209, %v1264
        %v1280 = vadd.f32 %v1210, %v1264
        %v1281 = vadd.f32 %v1211, %v1264
        %v1282 = vadd.f32 %v1212, %v1264
        %v1283 = vadd.f32 %v1213, %v1264
        %v1284 = vadd.f32 %v1214, %v1264
        %v1285 = vadd.f32 %v1215, %v1264
        %v1286 = vadd.f32 %v1216, %v1264
        %v1287 = vadd.f32 %v1217, %v1264
        %v1288 = vadd.f32 %v1218, %v1264
        %v1289 = vadd.f32 %v1219, %v1264
        %v1290 = vadd.f32 %v1220, %v1264
        %v1291 = vadd.f32 %v1221, %v1264
        %v1292 = vadd.f32 %v1222, %v1264
        %v1293 = vadd.f32 %v1223, %v1264
        %v1294 = vadd.f32 %v1224, %v1264
        %v1295 = vadd.f32 %v1225, %v1264
        %v1296 = vadd.f32 %v1226, %v1264
        %v1297 = vadd.f32 %v1227, %v1264
        %v1298 = vadd.f32 %v1228, %v1264
        %v1299 = vadd.f32 %v1229, %v1264
        %v1300 = vadd.f32 %v1230, %v1264
        %v1301 = vadd.f32 %v1231, %v1264
        %v1302 = vadd.f32 %v1232, %v1264
        %v1303 = vadd.f32 %v1233, %v1264
        %v1304 = vadd.f32 %v1234, %v1264
        %v1305 = vadd.f32 %v1235, %v1264
        %v1306 = vadd.f32 %v1236, %v1264
        %v1307 = vadd.f32 %v1237, %v1264
        %v1308 = vadd.f32 %v1238, %v1264
        %v1309 = vadd.f32 %v1239, %v1264
        %v1310 = vadd.f32 %v1240, %v1264
        %v1311 = vadd.f32 %v1241, %v1264
        %v1312 = vadd.f32 %v1242, %v1264
        %v1313 = vadd.f32 %v1243, %v1264
        %v1314 = vadd.f32 %v1244, %v1264
        %v1315 = vadd.f32 %v1245, %v1264
        %v1316 = vadd.f32 %v1246, %v1264
        %v1317 = vadd.f32 %v1247, %v1264
        %v1318 = vadd.f32 %v1248, %v1264
        %v1319 = vadd.f32 %v1249, %v1264
        %v1320 = vadd.f32 %v1250, %v1264
        %v1321 = vadd.f32 %v1251, %v1264
        %v1322 = vadd.f32 %v1252, %v1264
        %v1323 = vadd.f32 %v1253, %v1264
        %v1324 = vadd.f32 %v1254, %v1264
        %v1325 = vadd.f32 %v1255, %v1264
        %v1326 = vadd.f32 %v1256, %v1264
        %v1327 = vadd.f32 %v1257, %v1264
        %v1328 = vadd.f32 %v1258, %v1264
        %v1329 = vadd.f32 %v1259, %v1264
        %vm1330 = vcmp.ge.f32.partialorder %v1266, 0.0
        %vm1331 = vcmp.ge.f32.partialorder %v1267, 0.0
        %vm1332 = vcmp.ge.f32.partialorder %v1268, 0.0
        %vm1333 = vcmp.ge.f32.partialorder %v1269, 0.0
        %vm1334 = vcmp.ge.f32.partialorder %v1270, 0.0
        %vm1335 = vcmp.ge.f32.partialorder %v1271, 0.0
        %vm1336 = vcmp.ge.f32.partialorder %v1272, 0.0
        %vm1337 = vcmp.ge.f32.partialorder %v1273, 0.0
        %vm1338 = vcmp.ge.f32.partialorder %v1274, 0.0
        %vm1339 = vcmp.ge.f32.partialorder %v1275, 0.0
        %vm1340 = vcmp.ge.f32.partialorder %v1276, 0.0
        %vm1341 = vcmp.ge.f32.partialorder %v1277, 0.0
        %vm1342 = vcmp.ge.f32.partialorder %v1278, 0.0
        %vm1343 = vcmp.ge.f32.partialorder %v1279, 0.0
        %vm1344 = vcmp.ge.f32.partialorder %v1280, 0.0
        %vm1345 = vcmp.ge.f32.partialorder %v1281, 0.0
        %vm1346 = vcmp.ge.f32.partialorder %v1282, 0.0
        %vm1347 = vcmp.ge.f32.partialorder %v1283, 0.0
        %vm1348 = vcmp.ge.f32.partialorder %v1284, 0.0
        %vm1349 = vcmp.ge.f32.partialorder %v1285, 0.0
        %vm1350 = vcmp.ge.f32.partialorder %v1286, 0.0
        %vm1351 = vcmp.ge.f32.partialorder %v1287, 0.0
        %vm1352 = vcmp.ge.f32.partialorder %v1288, 0.0
        %vm1353 = vcmp.ge.f32.partialorder %v1289, 0.0
        %vm1354 = vcmp.ge.f32.partialorder %v1290, 0.0
        %vm1355 = vcmp.ge.f32.partialorder %v1291, 0.0
        %vm1356 = vcmp.ge.f32.partialorder %v1292, 0.0
        %vm1357 = vcmp.ge.f32.partialorder %v1293, 0.0
        %vm1358 = vcmp.ge.f32.partialorder %v1294, 0.0
        %vm1359 = vcmp.ge.f32.partialorder %v1295, 0.0
        %vm1360 = vcmp.ge.f32.partialorder %v1296, 0.0
        %vm1361 = vcmp.ge.f32.partialorder %v1297, 0.0
        %vm1362 = vcmp.ge.f32.partialorder %v1298, 0.0
        %vm1363 = vcmp.ge.f32.partialorder %v1299, 0.0
        %vm1364 = vcmp.ge.f32.partialorder %v1300, 0.0
        %vm1365 = vcmp.ge.f32.partialorder %v1301, 0.0
        %vm1366 = vcmp.ge.f32.partialorder %v1302, 0.0
        %vm1367 = vcmp.ge.f32.partialorder %v1303, 0.0
        %vm1368 = vcmp.ge.f32.partialorder %v1304, 0.0
        %vm1369 = vcmp.ge.f32.partialorder %v1305, 0.0
        %vm1370 = vcmp.ge.f32.partialorder %v1306, 0.0
        %vm1371 = vcmp.ge.f32.partialorder %v1307, 0.0
        %vm1372 = vcmp.ge.f32.partialorder %v1308, 0.0
        %vm1373 = vcmp.ge.f32.partialorder %v1309, 0.0
        %vm1374 = vcmp.ge.f32.partialorder %v1310, 0.0
        %vm1375 = vcmp.ge.f32.partialorder %v1311, 0.0
        %vm1376 = vcmp.ge.f32.partialorder %v1312, 0.0
        %vm1377 = vcmp.ge.f32.partialorder %v1313, 0.0
        %vm1378 = vcmp.ge.f32.partialorder %v1314, 0.0
        %vm1379 = vcmp.ge.f32.partialorder %v1315, 0.0
        %vm1380 = vcmp.ge.f32.partialorder %v1316, 0.0
        %vm1381 = vcmp.ge.f32.partialorder %v1317, 0.0
        %vm1382 = vcmp.ge.f32.partialorder %v1318, 0.0
        %vm1383 = vcmp.ge.f32.partialorder %v1319, 0.0
        %vm1384 = vcmp.ge.f32.partialorder %v1320, 0.0
        %vm1385 = vcmp.ge.f32.partialorder %v1321, 0.0
        %vm1386 = vcmp.ge.f32.partialorder %v1322, 0.0
        %vm1387 = vcmp.ge.f32.partialorder %v1323, 0.0
        %vm1388 = vcmp.ge.f32.partialorder %v1324, 0.0
        %vm1389 = vcmp.ge.f32.partialorder %v1325, 0.0
        %vm1390 = vcmp.ge.f32.partialorder %v1326, 0.0
        %vm1391 = vcmp.ge.f32.partialorder %v1327, 0.0
        %vm1392 = vcmp.ge.f32.partialorder %v1328, 0.0
        %vm1393 = vcmp.ge.f32.partialorder %v1329, 0.0
        %v1394 = vmul.f32 %v1266, 0.2
        %v1395 = vmul.f32 %v1267, 0.2
        %v1396 = vmul.f32 %v1268, 0.2
        %v1397 = vmul.f32 %v1269, 0.2
        %v1398 = vmul.f32 %v1270, 0.2
        %v1399 = vmul.f32 %v1271, 0.2
        %v1400 = vmul.f32 %v1272, 0.2
        %v1401 = vmul.f32 %v1273, 0.2
        %v1402 = vmul.f32 %v1274, 0.2
        %v1403 = vmul.f32 %v1275, 0.2
        %v1404 = vmul.f32 %v1276, 0.2
        %v1405 = vmul.f32 %v1277, 0.2
        %v1406 = vmul.f32 %v1278, 0.2
        %v1407 = vmul.f32 %v1279, 0.2
        %v1408 = vmul.f32 %v1280, 0.2
        %v1409 = vmul.f32 %v1281, 0.2
        %v1410 = vmul.f32 %v1282, 0.2
        %v1411 = vmul.f32 %v1283, 0.2
        %v1412 = vmul.f32 %v1284, 0.2
        %v1413 = vmul.f32 %v1285, 0.2
        %v1414 = vmul.f32 %v1286, 0.2
        %v1415 = vmul.f32 %v1287, 0.2
        %v1416 = vmul.f32 %v1288, 0.2
        %v1417 = vmul.f32 %v1289, 0.2
        %v1418 = vmul.f32 %v1290, 0.2
        %v1419 = vmul.f32 %v1291, 0.2
        %v1420 = vmul.f32 %v1292, 0.2
        %v1421 = vmul.f32 %v1293, 0.2
        %v1422 = vmul.f32 %v1294, 0.2
        %v1423 = vmul.f32 %v1295, 0.2
        %v1424 = vmul.f32 %v1296, 0.2
        %v1425 = vmul.f32 %v1297, 0.2
        %v1426 = vmul.f32 %v1298, 0.2
        %v1427 = vmul.f32 %v1299, 0.2
        %v1428 = vmul.f32 %v1300, 0.2
        %v1429 = vmul.f32 %v1301, 0.2
        %v1430 = vmul.f32 %v1302, 0.2
        %v1431 = vmul.f32 %v1303, 0.2
        %v1432 = vmul.f32 %v1304, 0.2
        %v1433 = vmul.f32 %v1305, 0.2
        %v1434 = vmul.f32 %v1306, 0.2
        %v1435 = vmul.f32 %v1307, 0.2
        %v1436 = vmul.f32 %v1308, 0.2
        %v1437 = vmul.f32 %v1309, 0.2
        %v1438 = vmul.f32 %v1310, 0.2
        %v1439 = vmul.f32 %v1311, 0.2
        %v1440 = vmul.f32 %v1312, 0.2
        %v1441 = vmul.f32 %v1313, 0.2
        %v1442 = vmul.f32 %v1314, 0.2
        %v1443 = vmul.f32 %v1315, 0.2
        %v1444 = vmul.f32 %v1316, 0.2
        %v1445 = vmul.f32 %v1317, 0.2
        %v1446 = vmul.f32 %v1318, 0.2
        %v1447 = vmul.f32 %v1319, 0.2
        %v1448 = vmul.f32 %v1320, 0.2
        %v1449 = vmul.f32 %v1321, 0.2
        %v1450 = vmul.f32 %v1322, 0.2
        %v1451 = vmul.f32 %v1323, 0.2
        %v1452 = vmul.f32 %v1324, 0.2
        %v1453 = vmul.f32 %v1325, 0.2
        %v1454 = vmul.f32 %v1326, 0.2
        %v1455 = vmul.f32 %v1327, 0.2
        %v1456 = vmul.f32 %v1328, 0.2
        %v1457 = vmul.f32 %v1329, 0.2
        %v1458 = vsel %vm1330, %v1266, %v1394
        %v1459 = vsel %vm1331, %v1267, %v1395
        %v1460 = vsel %vm1332, %v1268, %v1396
        %v1461 = vsel %vm1333, %v1269, %v1397
        %v1462 = vsel %vm1334, %v1270, %v1398
        %v1463 = vsel %vm1335, %v1271, %v1399
        %v1464 = vsel %vm1336, %v1272, %v1400
        %v1465 = vsel %vm1337, %v1273, %v1401
        %v1466 = vsel %vm1338, %v1274, %v1402
        %v1467 = vsel %vm1339, %v1275, %v1403
        %v1468 = vsel %vm1340, %v1276, %v1404
        %v1469 = vsel %vm1341, %v1277, %v1405
        %v1470 = vsel %vm1342, %v1278, %v1406
        %v1471 = vsel %vm1343, %v1279, %v1407
        %v1472 = vsel %vm1344, %v1280, %v1408
        %v1473 = vsel %vm1345, %v1281, %v1409
        %v1474 = vsel %vm1346, %v1282, %v1410
        %v1475 = vsel %vm1347, %v1283, %v1411
        %v1476 = vsel %vm1348, %v1284, %v1412
        %v1477 = vsel %vm1349, %v1285, %v1413
        %v1478 = vsel %vm1350, %v1286, %v1414
        %v1479 = vsel %vm1351, %v1287, %v1415
        %v1480 = vsel %vm1352, %v1288, %v1416
        %v1481 = vsel %vm1353, %v1289, %v1417
        %v1482 = vsel %vm1354, %v1290, %v1418
        %v1483 = vsel %vm1355, %v1291, %v1419
        %v1484 = vsel %vm1356, %v1292, %v1420
        %v1485 = vsel %vm1357, %v1293, %v1421
        %v1486 = vsel %vm1358, %v1294, %v1422
        %v1487 = vsel %vm1359, %v1295, %v1423
        %v1488 = vsel %vm1360, %v1296, %v1424
        %v1489 = vsel %vm1361, %v1297, %v1425
        %v1490 = vsel %vm1362, %v1298, %v1426
        %v1491 = vsel %vm1363, %v1299, %v1427
        %v1492 = vsel %vm1364, %v1300, %v1428
        %v1493 = vsel %vm1365, %v1301, %v1429
        %v1494 = vsel %vm1366, %v1302, %v1430
        %v1495 = vsel %vm1367, %v1303, %v1431
        %v1496 = vsel %vm1368, %v1304, %v1432
        %v1497 = vsel %vm1369, %v1305, %v1433
        %v1498 = vsel %vm1370, %v1306, %v1434
        %v1499 = vsel %vm1371, %v1307, %v1435
        %v1500 = vsel %vm1372, %v1308, %v1436
        %v1501 = vsel %vm1373, %v1309, %v1437
        %v1502 = vsel %vm1374, %v1310, %v1438
        %v1503 = vsel %vm1375, %v1311, %v1439
        %v1504 = vsel %vm1376, %v1312, %v1440
        %v1505 = vsel %vm1377, %v1313, %v1441
        %v1506 = vsel %vm1378, %v1314, %v1442
        %v1507 = vsel %vm1379, %v1315, %v1443
        %v1508 = vsel %vm1380, %v1316, %v1444
        %v1509 = vsel %vm1381, %v1317, %v1445
        %v1510 = vsel %vm1382, %v1318, %v1446
        %v1511 = vsel %vm1383, %v1319, %v1447
        %v1512 = vsel %vm1384, %v1320, %v1448
        %v1513 = vsel %vm1385, %v1321, %v1449
        %v1514 = vsel %vm1386, %v1322, %v1450
        %v1515 = vsel %vm1387, %v1323, %v1451
        %v1516 = vsel %vm1388, %v1324, %v1452
        %v1517 = vsel %vm1389, %v1325, %v1453
        %v1518 = vsel %vm1390, %v1326, %v1454
        %v1519 = vsel %vm1391, %v1327, %v1455
        %v1520 = vsel %vm1392, %v1328, %v1456
        %v1521 = vsel %vm1393, %v1329, %v1457
        %v1522 = vpack.c.bf16 %v1459, %v1458
        %v1523 = vpack.c.bf16 %v1461, %v1460
        %v1524 = vpack.c.bf16 %v1463, %v1462
        %v1525 = vpack.c.bf16 %v1465, %v1464
        %v1526 = vpack.c.bf16 %v1467, %v1466
        %v1527 = vpack.c.bf16 %v1469, %v1468
        %v1528 = vpack.c.bf16 %v1471, %v1470
        %v1529 = vpack.c.bf16 %v1473, %v1472
        %v1530 = vpack.c.bf16 %v1475, %v1474
        %v1531 = vpack.c.bf16 %v1477, %v1476
        %v1532 = vpack.c.bf16 %v1479, %v1478
        %v1533 = vpack.c.bf16 %v1481, %v1480
        %v1534 = vpack.c.bf16 %v1483, %v1482
        %v1535 = vpack.c.bf16 %v1485, %v1484
        %v1536 = vpack.c.bf16 %v1487, %v1486
        %v1537 = vpack.c.bf16 %v1489, %v1488
        %v1538 = vpack.c.bf16 %v1491, %v1490
        %v1539 = vpack.c.bf16 %v1493, %v1492
        %v1540 = vpack.c.bf16 %v1495, %v1494
        %v1541 = vpack.c.bf16 %v1497, %v1496
        %v1542 = vpack.c.bf16 %v1499, %v1498
        %v1543 = vpack.c.bf16 %v1501, %v1500
        %v1544 = vpack.c.bf16 %v1503, %v1502
        %v1545 = vpack.c.bf16 %v1505, %v1504
        %v1546 = vpack.c.bf16 %v1507, %v1506
        %v1547 = vpack.c.bf16 %v1509, %v1508
        %v1548 = vpack.c.bf16 %v1511, %v1510
        %v1549 = vpack.c.bf16 %v1513, %v1512
        %v1550 = vpack.c.bf16 %v1515, %v1514
        %v1551 = vpack.c.bf16 %v1517, %v1516
        %v1552 = vpack.c.bf16 %v1519, %v1518
        %v1553 = vpack.c.bf16 %v1521, %v1520
        %v1586 = vunpack.c.l.b16 %v1522
        %v1587 = vunpack.c.h.b16 %v1522
        %v1588 = vunpack.c.l.b16 %v1523
        %v1589 = vunpack.c.h.b16 %v1523
        %v1590 = vunpack.c.l.b16 %v1524
        %v1591 = vunpack.c.h.b16 %v1524
        %v1592 = vunpack.c.l.b16 %v1525
        %v1593 = vunpack.c.h.b16 %v1525
        %v1594 = vunpack.c.l.b16 %v1526
        %v1595 = vunpack.c.h.b16 %v1526
        %v1596 = vunpack.c.l.b16 %v1527
        %v1597 = vunpack.c.h.b16 %v1527
        %v1598 = vunpack.c.l.b16 %v1528
        %v1599 = vunpack.c.h.b16 %v1528
        %v1600 = vunpack.c.l.b16 %v1529
        %v1601 = vunpack.c.h.b16 %v1529
        %v1602 = vunpack.c.l.b16 %v1530
        %v1603 = vunpack.c.h.b16 %v1530
        %v1604 = vunpack.c.l.b16 %v1531
        %v1605 = vunpack.c.h.b16 %v1531
        %v1606 = vunpack.c.l.b16 %v1532
        %v1607 = vunpack.c.h.b16 %v1532
        %v1608 = vunpack.c.l.b16 %v1533
        %v1609 = vunpack.c.h.b16 %v1533
        %v1610 = vunpack.c.l.b16 %v1534
        %v1611 = vunpack.c.h.b16 %v1534
        %v1612 = vunpack.c.l.b16 %v1535
        %v1613 = vunpack.c.h.b16 %v1535
        %v1614 = vunpack.c.l.b16 %v1536
        %v1615 = vunpack.c.h.b16 %v1536
        %v1616 = vunpack.c.l.b16 %v1537
        %v1617 = vunpack.c.h.b16 %v1537
        %v1618 = vunpack.c.l.b16 %v1538
        %v1619 = vunpack.c.h.b16 %v1538
        %v1620 = vunpack.c.l.b16 %v1539
        %v1621 = vunpack.c.h.b16 %v1539
        %v1622 = vunpack.c.l.b16 %v1540
        %v1623 = vunpack.c.h.b16 %v1540
        %v1624 = vunpack.c.l.b16 %v1541
        %v1625 = vunpack.c.h.b16 %v1541
        %v1626 = vunpack.c.l.b16 %v1542
        %v1627 = vunpack.c.h.b16 %v1542
        %v1628 = vunpack.c.l.b16 %v1543
        %v1629 = vunpack.c.h.b16 %v1543
        %v1630 = vunpack.c.l.b16 %v1544
        %v1631 = vunpack.c.h.b16 %v1544
        %v1632 = vunpack.c.l.b16 %v1545
        %v1633 = vunpack.c.h.b16 %v1545
        %v1634 = vunpack.c.l.b16 %v1546
        %v1635 = vunpack.c.h.b16 %v1546
        %v1636 = vunpack.c.l.b16 %v1547
        %v1637 = vunpack.c.h.b16 %v1547
        %v1638 = vunpack.c.l.b16 %v1548
        %v1639 = vunpack.c.h.b16 %v1548
        %v1640 = vunpack.c.l.b16 %v1549
        %v1641 = vunpack.c.h.b16 %v1549
        %v1642 = vunpack.c.l.b16 %v1550
        %v1643 = vunpack.c.h.b16 %v1550
        %v1644 = vunpack.c.l.b16 %v1551
        %v1645 = vunpack.c.h.b16 %v1551
        %v1646 = vunpack.c.l.b16 %v1552
        %v1647 = vunpack.c.h.b16 %v1552
        %v1648 = vunpack.c.l.b16 %v1553
        %v1649 = vunpack.c.h.b16 %v1553
        %v1650 = vpack.c.b16 %v1586, %v1586
        %v1651 = vpack.c.b16 %v1587, %v1587
        %v1652 = vpack.c.b16 %v1588, %v1588
        %v1653 = vpack.c.b16 %v1589, %v1589
        %v1654 = vpack.c.b16 %v1590, %v1590
        %v1655 = vpack.c.b16 %v1591, %v1591
        %v1656 = vpack.c.b16 %v1592, %v1592
        %v1657 = vpack.c.b16 %v1593, %v1593
        %v1658 = vpack.c.b16 %v1594, %v1594
        %v1659 = vpack.c.b16 %v1595, %v1595
        %v1660 = vpack.c.b16 %v1596, %v1596
        %v1661 = vpack.c.b16 %v1597, %v1597
        %v1662 = vpack.c.b16 %v1598, %v1598
        %v1663 = vpack.c.b16 %v1599, %v1599
        %v1664 = vpack.c.b16 %v1600, %v1600
        %v1665 = vpack.c.b16 %v1601, %v1601
        %v1666 = vpack.c.b16 %v1602, %v1602
        %v1667 = vpack.c.b16 %v1603, %v1603
        %v1668 = vpack.c.b16 %v1604, %v1604
        %v1669 = vpack.c.b16 %v1605, %v1605
        %v1670 = vpack.c.b16 %v1606, %v1606
        %v1671 = vpack.c.b16 %v1607, %v1607
        %v1672 = vpack.c.b16 %v1608, %v1608
        %v1673 = vpack.c.b16 %v1609, %v1609
        %v1674 = vpack.c.b16 %v1610, %v1610
        %v1675 = vpack.c.b16 %v1611, %v1611
        %v1676 = vpack.c.b16 %v1612, %v1612
        %v1677 = vpack.c.b16 %v1613, %v1613
        %v1678 = vpack.c.b16 %v1614, %v1614
        %v1679 = vpack.c.b16 %v1615, %v1615
        %v1680 = vpack.c.b16 %v1616, %v1616
        %v1681 = vpack.c.b16 %v1617, %v1617
        %v1682 = vpack.c.b16 %v1618, %v1618
        %v1683 = vpack.c.b16 %v1619, %v1619
        %v1684 = vpack.c.b16 %v1620, %v1620
        %v1685 = vpack.c.b16 %v1621, %v1621
        %v1686 = vpack.c.b16 %v1622, %v1622
        %v1687 = vpack.c.b16 %v1623, %v1623
        %v1688 = vpack.c.b16 %v1624, %v1624
        %v1689 = vpack.c.b16 %v1625, %v1625
        %v1690 = vpack.c.b16 %v1626, %v1626
        %v1691 = vpack.c.b16 %v1627, %v1627
        %v1692 = vpack.c.b16 %v1628, %v1628
        %v1693 = vpack.c.b16 %v1629, %v1629
        %v1694 = vpack.c.b16 %v1630, %v1630
        %v1695 = vpack.c.b16 %v1631, %v1631
        %v1696 = vpack.c.b16 %v1632, %v1632
        %v1697 = vpack.c.b16 %v1633, %v1633
        %v1698 = vpack.c.b16 %v1634, %v1634
        %v1699 = vpack.c.b16 %v1635, %v1635
        %v1700 = vpack.c.b16 %v1636, %v1636
        %v1701 = vpack.c.b16 %v1637, %v1637
        %v1702 = vpack.c.b16 %v1638, %v1638
        %v1703 = vpack.c.b16 %v1639, %v1639
        %v1704 = vpack.c.b16 %v1640, %v1640
        %v1705 = vpack.c.b16 %v1641, %v1641
        %v1706 = vpack.c.b16 %v1642, %v1642
        %v1707 = vpack.c.b16 %v1643, %v1643
        %v1708 = vpack.c.b16 %v1644, %v1644
        %v1709 = vpack.c.b16 %v1645, %v1645
        %v1710 = vpack.c.b16 %v1646, %v1646
        %v1711 = vpack.c.b16 %v1647, %v1647
        %v1712 = vpack.c.b16 %v1648, %v1648
        %v1713 = vpack.c.b16 %v1649, %v1649
        %vm1778 = vcmask 125952
        %1779 = vst.msk [vmem:[%s211] sm:$0xf] %vm1778, %v1650
        %1780 = vst.msk [vmem:[%s211 + $0x4] sm:$0xf] %vm1778, %v1651
        %1781 = vst.msk [vmem:[%s211 + $0x8] sm:$0xf] %vm1778, %v1652
        %1782 = vst.msk [vmem:[%s211 + $0xc] sm:$0xf] %vm1778, %v1653
        %1783 = vst.msk [vmem:[%s211 + $0x10] sm:$0xf] %vm1778, %v1654
        %1784 = vst.msk [vmem:[%s211 + $0x14] sm:$0xf] %vm1778, %v1655
        %1785 = vst.msk [vmem:[%s211 + $0x18] sm:$0xf] %vm1778, %v1656
        %1786 = vst.msk [vmem:[%s211 + $0x1c] sm:$0xf] %vm1778, %v1657
        %1787 = vst.msk [vmem:[%s211 + $0x20] sm:$0xf] %vm1778, %v1658
        %1788 = vst.msk [vmem:[%s211 + $0x24] sm:$0xf] %vm1778, %v1659
        %1789 = vst.msk [vmem:[%s211 + $0x28] sm:$0xf] %vm1778, %v1660
        %1790 = vst.msk [vmem:[%s211 + $0x2c] sm:$0xf] %vm1778, %v1661
        %1791 = vst.msk [vmem:[%s211 + $0x30] sm:$0xf] %vm1778, %v1662
        %1792 = vst.msk [vmem:[%s211 + $0x34] sm:$0xf] %vm1778, %v1663
        %1793 = vst.msk [vmem:[%s211 + $0x38] sm:$0xf] %vm1778, %v1664
        %1794 = vst.msk [vmem:[%s211 + $0x3c] sm:$0xf] %vm1778, %v1665
        %1795 = vst.msk [vmem:[%s211 + $0x40] sm:$0xf] %vm1778, %v1666
        %1796 = vst.msk [vmem:[%s211 + $0x44] sm:$0xf] %vm1778, %v1667
        %1797 = vst.msk [vmem:[%s211 + $0x48] sm:$0xf] %vm1778, %v1668
        %1798 = vst.msk [vmem:[%s211 + $0x4c] sm:$0xf] %vm1778, %v1669
        %1799 = vst.msk [vmem:[%s211 + $0x50] sm:$0xf] %vm1778, %v1670
        %1800 = vst.msk [vmem:[%s211 + $0x54] sm:$0xf] %vm1778, %v1671
        %1801 = vst.msk [vmem:[%s211 + $0x58] sm:$0xf] %vm1778, %v1672
        %1802 = vst.msk [vmem:[%s211 + $0x5c] sm:$0xf] %vm1778, %v1673
        %1803 = vst.msk [vmem:[%s211 + $0x60] sm:$0xf] %vm1778, %v1674
        %1804 = vst.msk [vmem:[%s211 + $0x64] sm:$0xf] %vm1778, %v1675
        %1805 = vst.msk [vmem:[%s211 + $0x68] sm:$0xf] %vm1778, %v1676
        %1806 = vst.msk [vmem:[%s211 + $0x6c] sm:$0xf] %vm1778, %v1677
        %1807 = vst.msk [vmem:[%s211 + $0x70] sm:$0xf] %vm1778, %v1678
        %1808 = vst.msk [vmem:[%s211 + $0x74] sm:$0xf] %vm1778, %v1679
        %1809 = vst.msk [vmem:[%s211 + $0x78] sm:$0xf] %vm1778, %v1680
        %1810 = vst.msk [vmem:[%s211 + $0x7c] sm:$0xf] %vm1778, %v1681
        %1811 = vst.msk [vmem:[%s211 + $0x80] sm:$0xf] %vm1778, %v1682
        %1812 = vst.msk [vmem:[%s211 + $0x84] sm:$0xf] %vm1778, %v1683
        %1813 = vst.msk [vmem:[%s211 + $0x88] sm:$0xf] %vm1778, %v1684
        %1814 = vst.msk [vmem:[%s211 + $0x8c] sm:$0xf] %vm1778, %v1685
        %1815 = vst.msk [vmem:[%s211 + $0x90] sm:$0xf] %vm1778, %v1686
        %1816 = vst.msk [vmem:[%s211 + $0x94] sm:$0xf] %vm1778, %v1687
        %1817 = vst.msk [vmem:[%s211 + $0x98] sm:$0xf] %vm1778, %v1688
        %1818 = vst.msk [vmem:[%s211 + $0x9c] sm:$0xf] %vm1778, %v1689
        %1819 = vst.msk [vmem:[%s211 + $0xa0] sm:$0xf] %vm1778, %v1690
        %1820 = vst.msk [vmem:[%s211 + $0xa4] sm:$0xf] %vm1778, %v1691
        %1821 = vst.msk [vmem:[%s211 + $0xa8] sm:$0xf] %vm1778, %v1692
        %1822 = vst.msk [vmem:[%s211 + $0xac] sm:$0xf] %vm1778, %v1693
        %1823 = vst.msk [vmem:[%s211 + $0xb0] sm:$0xf] %vm1778, %v1694
        %1824 = vst.msk [vmem:[%s211 + $0xb4] sm:$0xf] %vm1778, %v1695
        %1825 = vst.msk [vmem:[%s211 + $0xb8] sm:$0xf] %vm1778, %v1696
        %1826 = vst.msk [vmem:[%s211 + $0xbc] sm:$0xf] %vm1778, %v1697
        %1827 = vst.msk [vmem:[%s211 + $0xc0] sm:$0xf] %vm1778, %v1698
        %1828 = vst.msk [vmem:[%s211 + $0xc4] sm:$0xf] %vm1778, %v1699
        %1829 = vst.msk [vmem:[%s211 + $0xc8] sm:$0xf] %vm1778, %v1700
        %1830 = vst.msk [vmem:[%s211 + $0xcc] sm:$0xf] %vm1778, %v1701
        %1831 = vst.msk [vmem:[%s211 + $0xd0] sm:$0xf] %vm1778, %v1702
        %1832 = vst.msk [vmem:[%s211 + $0xd4] sm:$0xf] %vm1778, %v1703
        %1833 = vst.msk [vmem:[%s211 + $0xd8] sm:$0xf] %vm1778, %v1704
        %1834 = vst.msk [vmem:[%s211 + $0xdc] sm:$0xf] %vm1778, %v1705
        %1835 = vst.msk [vmem:[%s211 + $0xe0] sm:$0xf] %vm1778, %v1706
        %1836 = vst.msk [vmem:[%s211 + $0xe4] sm:$0xf] %vm1778, %v1707
        %1837 = vst.msk [vmem:[%s211 + $0xe8] sm:$0xf] %vm1778, %v1708
        %1838 = vst.msk [vmem:[%s211 + $0xec] sm:$0xf] %vm1778, %v1709
        %1839 = vst.msk [vmem:[%s211 + $0xf0] sm:$0xf] %vm1778, %v1710
        %1840 = vst.msk [vmem:[%s211 + $0xf4] sm:$0xf] %vm1778, %v1711
        %1841 = vst.msk [vmem:[%s211 + $0xf8] sm:$0xf] %vm1778, %v1712
        %1842 = vst.msk [vmem:[%s211 + $0xfc] sm:$0xf] %vm1778, %v1713
      $region48: #{discriminator_forward.6} parent=35 // pred_fallthru
        _
      %s1843 = smul.u32 64, %s20
      %p1844 = scmp.lt.s32.totalorder %s1843, 63
      %s1845 = scalar_select %p1844, %s1843, 63
      %s1846 = smul.addr %s1845, 4
      %s1847 = scalar_lea.vmem %s4, %s1846
      // Predicated region
      $region49: #{discriminator_forward.6} parent=35 // pred_check
        %p1848 = pneg %p134
      $region50: #{discriminator_forward.6} parent=35 // pred_check_branch
        %1850 = sbr.rel (%p1848) target = $region52
      $region51: #{discriminator_forward.6} parent=35 // pred_region
        %s1851 = smul.u32 64, %s20
      $region52: #{discriminator_forward.6} parent=35 // pred_fallthru
        _
      // Predicated region
      $region53: #{discriminator_forward.6} parent=35 // pred_check
        %p1852 = pneg %p134
      $region54: #{discriminator_forward.6} parent=35 // pred_check_branch
        %1854 = sbr.rel (%p1852) target = $region56
      $region55: #{discriminator_forward.6} parent=35 // pred_region
        %s1855 = smul.u32 64, %s20
        %p1856 = scmp.lt.s32.totalorder %s1855, 63
        %s1857 = scalar_select %p1856, %s1855, 63
        %s1858 = smul.addr %s1857, 4
        %s1859 = scalar_lea.vmem %s4, %s1858
      $region56: #{discriminator_forward.6} parent=35 // pred_fallthru
        _
    $region36: #{discriminator_forward.6} parent=5 // pred_fallthru
      _
    %p1860 = scmp.le.s32.totalorder 2, %s10
    // Predicated region
    $region57: #{discriminator_forward.6} parent=5 // pred_check
      %p1861 = pneg %p1860
    $region58: #{discriminator_forward.6} parent=5 // pred_check_branch
      %1863 = sbr.rel (%p1861) target = $region60
    $region59: #{discriminator_forward.6} parent=5 // pred_region
      %s1864 = ssub.s32 %s10, 2
    $region60: #{discriminator_forward.6} parent=5 // pred_fallthru
      _
  $region6: #{discriminator_forward.6} parent=0 // loop_footer
    %s14 = sadd.s32 1, %s10
  $region7: #{discriminator_forward.6} parent=0 // loop_footer_branch
    %9 = sbr.rel target = $region3
  $region8: #{discriminator_forward.6} parent=0 // loop_exit
    _

// kernel: discriminator_forward.7
$region0: #{discriminator_forward.7}
  #allocation0 [shape = 'u32[]', space=smem, size = 0x4, offset = 0x4, fixed_abs, tag = 'smem constant byte address 0x4 - core index']
  #allocation1 [shape = 'u32[144,128]{1,0:T(1,128)}', space=vmem, size = 0x12000, scoped, tag = 'internal scratch']
  #allocation2 [shape = 'f32[1,32]{1,0:T(1,128)}', space=vmem, size = 0x200, scoped, tag = 'scratch operand']
  #allocation3 [shape = 'f32[1,32]{1,0:T(1,128)}', space=vmem, size = 0x200, scoped, tag = 'scratch operand']
  %s0 = inlined_call_operand.vmem [shape: bf16[128,256], index: 0, kind: input, shape index: {}]
  %s1 = inlined_call_operand.vmem [shape: bf16[256,32], index: 1, kind: input, shape index: {}]
  %s2 = inlined_call_operand.vmem [shape: f32[1,32], index: 2, kind: input, shape index: {}]
  %s3 = inlined_call_operand.vmem [shape: f32[1,32], index: 3, kind: input, shape index: {}]
  %s4 = inlined_call_operand.vmem [shape: bf16[128,32], index: 4, kind: output, shape index: {}]
  %s5 = sld [smem:[#allocation0]]
  $region61: #{discriminator_forward.7} parent=0
    _
  %s7 = ssub.s32 1, %s5
  %s8 = scalar_select 0, %s7, %s5
  loop: start=0, step=1, limit=4
  $region2: #{discriminator_forward.7} parent=0 // loop_pre_header
    _
  $region3: #{discriminator_forward.7} parent=0 // loop_header
    %s10 = sphi 0, %s14
    %p11 = scmp.ge.s32.totalorder %s10, 4
    %s17 = sphi 0, %s29
    %s18 = sphi 0, %s25
    %s19 = sphi 0, %s17
    %s20 = sphi 0, %s18
    %s21 = sphi 0, %s19
    %s22 = sphi 0, %s20
    %s32 = sphi 0, %s34
    %s35 = sphi 0, %s32
    %s36 = sphi 0, %s35
    %s52 = sphi 0, %s36
    %s56 = sphi 0, %s56
    %s58 = sphi 0, %s56
    %s59 = sphi 0, %s58
    %s73 = sphi 0, %s59
    %s77 = sphi 0, %s77
    %s79 = sphi 0, %s77
    %s80 = sphi 0, %s79
    %s94 = sphi 0, %s80
    %s98 = sphi 0, %s98
    %s100 = sphi 0, %s98
    %s101 = sphi 0, %s100
    %s115 = sphi 0, %s101
    %s121 = sphi 0, %s123
    %s124 = sphi 0, %s121
    %s125 = sphi 0, %s124
    %s141 = sphi 0, %s125
  $region4: #{discriminator_forward.7} parent=0 // loop_header_branch
    %13 = sbr.rel (%p11) target = $region8
  $region5: #{discriminator_forward.7} parent=0 // loop_body
    %s15 = ssub.s32 %s10, 1
    %s16 = ssub.s32 %s10, 2
    %s23 = sadd.s32 1, %s18
    %p24 = scmp.ge.s32.totalorder %s23, 1
    %s25 = scalar_select %p24, 0, %s23
    %s26 = sadd.s32 1, %s17
    %s27 = scalar_select %p24, %s26, %s17
    %p28 = scmp.ge.s32.totalorder %s27, 2
    %s29 = scalar_select %p28, 0, %s27
    %s30 = ssub.s32 %s18, %s25
    %p31 = scmp.eq.s32.totalorder %s30, 0
    %s33 = sadd.s32 %s32, 1
    %s34 = scalar_select %p31, %s32, %s33
    %p37 = pneg %p31
    %p38 = scmp.eq.s32.totalorder %s10, 1
    %p39 = por %p37, %p38
    %p40 = scmp.ne.s32.totalorder %s32, %s35
    %p41 = scmp.eq.s32.totalorder %s10, 0
    %p42 = por %p40, %p41
    %p43 = scmp.ne.s32.totalorder %s32, %s35
    %p44 = scmp.eq.s32.totalorder %s15, 1
    %p45 = por %p43, %p44
    %p46 = scmp.ne.s32.totalorder %s35, %s36
    %p47 = scmp.eq.s32.totalorder %s15, 0
    %p48 = por %p46, %p47
    %p49 = scmp.ne.s32.totalorder %s35, %s36
    %p50 = scmp.eq.s32.totalorder %s16, 1
    %p51 = por %p49, %p50
    %p53 = scmp.ne.s32.totalorder %s36, %s52
    %p54 = scmp.eq.s32.totalorder %s16, 0
    %p55 = por %p53, %p54
    %s57 = sadd.s32 %s56, 1
    %p60 = scmp.eq.s32.totalorder %s10, 1
    %p61 = scmp.ne.s32.totalorder %s56, %s58
    %p62 = scmp.eq.s32.totalorder %s10, 0
    %p63 = por %p61, %p62
    %p64 = scmp.ne.s32.totalorder %s56, %s58
    %p65 = scmp.eq.s32.totalorder %s15, 1
    %p66 = por %p64, %p65
    %p67 = scmp.ne.s32.totalorder %s58, %s59
    %p68 = scmp.eq.s32.totalorder %s15, 0
    %p69 = por %p67, %p68
    %p70 = scmp.ne.s32.totalorder %s58, %s59
    %p71 = scmp.eq.s32.totalorder %s16, 1
    %p72 = por %p70, %p71
    %p74 = scmp.ne.s32.totalorder %s59, %s73
    %p75 = scmp.eq.s32.totalorder %s16, 0
    %p76 = por %p74, %p75
    %s78 = sadd.s32 %s77, 1
    %p81 = scmp.eq.s32.totalorder %s10, 1
    %p82 = scmp.ne.s32.totalorder %s77, %s79
    %p83 = scmp.eq.s32.totalorder %s10, 0
    %p84 = por %p82, %p83
    %p85 = scmp.ne.s32.totalorder %s77, %s79
    %p86 = scmp.eq.s32.totalorder %s15, 1
    %p87 = por %p85, %p86
    %p88 = scmp.ne.s32.totalorder %s79, %s80
    %p89 = scmp.eq.s32.totalorder %s15, 0
    %p90 = por %p88, %p89
    %p91 = scmp.ne.s32.totalorder %s79, %s80
    %p92 = scmp.eq.s32.totalorder %s16, 1
    %p93 = por %p91, %p92
    %p95 = scmp.ne.s32.totalorder %s80, %s94
    %p96 = scmp.eq.s32.totalorder %s16, 0
    %p97 = por %p95, %p96
    %s99 = sadd.s32 %s98, 1
    %p102 = scmp.eq.s32.totalorder %s10, 1
    %p103 = scmp.ne.s32.totalorder %s98, %s100
    %p104 = scmp.eq.s32.totalorder %s10, 0
    %p105 = por %p103, %p104
    %p106 = scmp.ne.s32.totalorder %s98, %s100
    %p107 = scmp.eq.s32.totalorder %s15, 1
    %p108 = por %p106, %p107
    %p109 = scmp.ne.s32.totalorder %s100, %s101
    %p110 = scmp.eq.s32.totalorder %s15, 0
    %p111 = por %p109, %p110
    %p112 = scmp.ne.s32.totalorder %s100, %s101
    %p113 = scmp.eq.s32.totalorder %s16, 1
    %p114 = por %p112, %p113
    %p116 = scmp.ne.s32.totalorder %s101, %s115
    %p117 = scmp.eq.s32.totalorder %s16, 0
    %p118 = por %p116, %p117
    %s119 = ssub.s32 %s18, %s25
    %p120 = scmp.eq.s32.totalorder %s119, 0
    %s122 = sadd.s32 %s121, 1
    %s123 = scalar_select %p120, %s121, %s122
    %p126 = pneg %p120
    %p127 = scmp.eq.s32.totalorder %s10, 1
    %p128 = por %p126, %p127
    %p129 = scmp.ne.s32.totalorder %s121, %s124
    %p130 = scmp.eq.s32.totalorder %s10, 0
    %p131 = por %p129, %p130
    %p132 = scmp.ne.s32.totalorder %s121, %s124
    %p133 = scmp.eq.s32.totalorder %s15, 1
    %p134 = por %p132, %p133
    %p135 = scmp.ne.s32.totalorder %s124, %s125
    %p136 = scmp.eq.s32.totalorder %s15, 0
    %p137 = por %p135, %p136
    %p138 = scmp.ne.s32.totalorder %s124, %s125
    %p139 = scmp.eq.s32.totalorder %s16, 1
    %p140 = por %p138, %p139
    %p142 = scmp.ne.s32.totalorder %s125, %s141
    %p143 = scmp.eq.s32.totalorder %s16, 0
    %p144 = por %p142, %p143
    %p145 = scmp.le.s32.totalorder 1, %s10
    %p146 = scmp.lt.s32.totalorder %s10, 3
    %p147 = pnand %p145, %p146
    %p148 = pneg %p147
    // Predicated region
    $region9: #{discriminator_forward.7} parent=5 // pred_check
      _
    $region10: #{discriminator_forward.7} parent=5 // pred_check_branch
      %150 = sbr.rel (%p147) target = $region12
    $region11: #{discriminator_forward.7} parent=5 // pred_region
      %s151 = ssub.s32 %s10, 1
      // Predicated region
      $region13: #{discriminator_forward.7} parent=11 // pred_check
        %p152 = pneg %p48
      $region14: #{discriminator_forward.7} parent=11 // pred_check_branch
        %154 = sbr.rel (%p152) target = $region16
      $region15: #{discriminator_forward.7} parent=11 // pred_region
        %s155 = smul.u32 16, %s20
        %p156 = scmp.lt.s32.totalorder %s155, 15
        %s157 = scalar_select %p156, %s155, 15
        %s158 = smul.addr %s157, 2
        %s159 = smul.addr %s158, 4
        %s160 = scalar_lea.vmem %s0, %s159
        %s161 = smul.u32 16, %s20
      $region16: #{discriminator_forward.7} parent=11 // pred_fallthru
        _
      // Predicated region
      $region17: #{discriminator_forward.7} parent=11 // pred_check
        %p162 = pneg %p69
      $region18: #{discriminator_forward.7} parent=11 // pred_check_branch
        %164 = sbr.rel (%p162) target = $region20
      $region19: #{discriminator_forward.7} parent=11 // pred_region
        _
      $region20: #{discriminator_forward.7} parent=11 // pred_fallthru
        _
      // Predicated region
      $region21: #{discriminator_forward.7} parent=11 // pred_check
        %p165 = pneg %p90
      $region22: #{discriminator_forward.7} parent=11 // pred_check_branch
        %167 = sbr.rel (%p165) target = $region24
      $region23: #{discriminator_forward.7} parent=11 // pred_region
        _
      $region24: #{discriminator_forward.7} parent=11 // pred_fallthru
        _
      // Predicated region
      $region25: #{discriminator_forward.7} parent=11 // pred_check
        %p168 = pneg %p111
      $region26: #{discriminator_forward.7} parent=11 // pred_check_branch
        %170 = sbr.rel (%p168) target = $region28
      $region27: #{discriminator_forward.7} parent=11 // pred_region
        _
      $region28: #{discriminator_forward.7} parent=11 // pred_fallthru
        _
    $region12: #{discriminator_forward.7} parent=5 // pred_fallthru
      _
    %p171 = scmp.lt.s32.totalorder %s10, 2
    // Predicated region
    $region29: #{discriminator_forward.7} parent=5 // pred_check
      %p172 = pneg %p171
    $region30: #{discriminator_forward.7} parent=5 // pred_check_branch
      %174 = sbr.rel (%p172) target = $region32
    $region31: #{discriminator_forward.7} parent=5 // pred_region
      _
    $region32: #{discriminator_forward.7} parent=5 // pred_fallthru
      _
    %p175 = scmp.le.s32.totalorder 1, %s10
    %p176 = scmp.lt.s32.totalorder %s10, 3
    %p177 = pnand %p175, %p176
    %p178 = pneg %p177
    // Predicated region
    $region33: #{discriminator_forward.7} parent=5 // pred_check
      _
    $region34: #{discriminator_forward.7} parent=5 // pred_check_branch
      %180 = sbr.rel (%p177) target = $region36
    $region35: #{discriminator_forward.7} parent=5 // pred_region
      %s181 = ssub.s32 %s10, 1
      %s182 = smul.u32 16, %s20
      %p183 = scmp.lt.s32.totalorder %s182, 15
      %s184 = scalar_select %p183, %s182, 15
      %s185 = smul.addr %s184, 2
      %s186 = smul.addr %s185, 4
      %s187 = scalar_lea.vmem %s0, %s186
      %p188 = pneg %p48
      %p189 = pneg %p45
      %p190 = pneg %p69
      %p191 = pneg %p66
      %p192 = pneg %p90
      %p193 = pneg %p87
      %p194 = pneg %p111
      %p195 = pneg %p108
      %p196 = pneg %p137
      %p197 = pneg %p134
      %s198 = smul.u32 16, %s20
      %p199 = scmp.lt.s32.totalorder %s198, 15
      %s200 = scalar_select %p199, %s198, 15
      %s201 = smul.addr %s200, 4
      %s202 = scalar_lea.vmem %s4, %s201
      %s203 = smul.u32 16, %s20
      %p204 = scmp.lt.s32.totalorder %s203, 15
      %s205 = scalar_select %p204, %s203, 15
      %s206 = smul.addr %s205, 2
      %s207 = smul.addr %s206, 4
      %s208 = scalar_lea.vmem %s0, %s207
      %s209 = smul.u32 16, %s20
      %s210 = smul.u32 16, %s20
      %p211 = scmp.lt.s32.totalorder %s210, 15
      %s212 = scalar_select %p211, %s210, 15
      %s213 = smul.addr %s212, 4
      %s214 = scalar_lea.vmem %s4, %s213
      %s215 = smul.u32 16, %s20
      %v217 = vld [vmem:[%s208] sm:$0xff]
      %v218 = vld [vmem:[%s208 + $0x8] sm:$0xff]
      %v219 = vld [vmem:[%s208 + $0x10] sm:$0xff]
      %v220 = vld [vmem:[%s208 + $0x18] sm:$0xff]
      %v221 = vld [vmem:[%s208 + $0x20] sm:$0xff]
      %v222 = vld [vmem:[%s208 + $0x28] sm:$0xff]
      %v223 = vld [vmem:[%s208 + $0x30] sm:$0xff]
      %v224 = vld [vmem:[%s208 + $0x38] sm:$0xff]
      %v225 = vld [vmem:[%s208 + $0x40] sm:$0xff]
      %v226 = vld [vmem:[%s208 + $0x48] sm:$0xff]
      %v227 = vld [vmem:[%s208 + $0x50] sm:$0xff]
      %v228 = vld [vmem:[%s208 + $0x58] sm:$0xff]
      %v229 = vld [vmem:[%s208 + $0x60] sm:$0xff]
      %v230 = vld [vmem:[%s208 + $0x68] sm:$0xff]
      %v231 = vld [vmem:[%s208 + $0x70] sm:$0xff]
      %v232 = vld [vmem:[%s208 + $0x78] sm:$0xff]
      %v233 = vld [vmem:[%s1] sm:$0xf]
      %v234 = vld [vmem:[%s1 + $0x4] sm:$0xf]
      %v235 = vld [vmem:[%s1 + $0x8] sm:$0xf]
      %v236 = vld [vmem:[%s1 + $0xc] sm:$0xf]
      %v237 = vld [vmem:[%s1 + $0x10] sm:$0xf]
      %v238 = vld [vmem:[%s1 + $0x14] sm:$0xf]
      %v239 = vld [vmem:[%s1 + $0x18] sm:$0xf]
      %v240 = vld [vmem:[%s1 + $0x1c] sm:$0xf]
      %v241 = vld [vmem:[%s1 + $0x20] sm:$0xf]
      %v242 = vld [vmem:[%s1 + $0x24] sm:$0xf]
      %v243 = vld [vmem:[%s1 + $0x28] sm:$0xf]
      %v244 = vld [vmem:[%s1 + $0x2c] sm:$0xf]
      %v245 = vld [vmem:[%s1 + $0x30] sm:$0xf]
      %v246 = vld [vmem:[%s1 + $0x34] sm:$0xf]
      %v247 = vld [vmem:[%s1 + $0x38] sm:$0xf]
      %v248 = vld [vmem:[%s1 + $0x3c] sm:$0xf]
      %v249 = vld [vmem:[%s1 + $0x40] sm:$0xf]
      %v250 = vld [vmem:[%s1 + $0x44] sm:$0xf]
      %v251 = vld [vmem:[%s1 + $0x48] sm:$0xf]
      %v252 = vld [vmem:[%s1 + $0x4c] sm:$0xf]
      %v253 = vld [vmem:[%s1 + $0x50] sm:$0xf]
      %v254 = vld [vmem:[%s1 + $0x54] sm:$0xf]
      %v255 = vld [vmem:[%s1 + $0x58] sm:$0xf]
      %v256 = vld [vmem:[%s1 + $0x5c] sm:$0xf]
      %v257 = vld [vmem:[%s1 + $0x60] sm:$0xf]
      %v258 = vld [vmem:[%s1 + $0x64] sm:$0xf]
      %v259 = vld [vmem:[%s1 + $0x68] sm:$0xf]
      %v260 = vld [vmem:[%s1 + $0x6c] sm:$0xf]
      %v261 = vld [vmem:[%s1 + $0x70] sm:$0xf]
      %v262 = vld [vmem:[%s1 + $0x74] sm:$0xf]
      %v263 = vld [vmem:[%s1 + $0x78] sm:$0xf]
      %v264 = vld [vmem:[%s1 + $0x7c] sm:$0xf]
      %v281 = vunpack.c.l.b16 %v217
      %v282 = vunpack.c.h.b16 %v217
      %v283 = vunpack.c.l.b16 %v218
      %v284 = vunpack.c.h.b16 %v218
      %v285 = vunpack.c.l.b16 %v219
      %v286 = vunpack.c.h.b16 %v219
      %v287 = vunpack.c.l.b16 %v220
      %v288 = vunpack.c.h.b16 %v220
      %v289 = vunpack.c.l.b16 %v221
      %v290 = vunpack.c.h.b16 %v221
      %v291 = vunpack.c.l.b16 %v222
      %v292 = vunpack.c.h.b16 %v222
      %v293 = vunpack.c.l.b16 %v223
      %v294 = vunpack.c.h.b16 %v223
      %v295 = vunpack.c.l.b16 %v224
      %v296 = vunpack.c.h.b16 %v224
      %v297 = vunpack.c.l.b16 %v225
      %v298 = vunpack.c.h.b16 %v225
      %v299 = vunpack.c.l.b16 %v226
      %v300 = vunpack.c.h.b16 %v226
      %v301 = vunpack.c.l.b16 %v227
      %v302 = vunpack.c.h.b16 %v227
      %v303 = vunpack.c.l.b16 %v228
      %v304 = vunpack.c.h.b16 %v228
      %v305 = vunpack.c.l.b16 %v229
      %v306 = vunpack.c.h.b16 %v229
      %v307 = vunpack.c.l.b16 %v230
      %v308 = vunpack.c.h.b16 %v230
      %v309 = vunpack.c.l.b16 %v231
      %v310 = vunpack.c.h.b16 %v231
      %v311 = vunpack.c.l.b16 %v232
      %v312 = vunpack.c.h.b16 %v232
      %v313 = vpack.c.b16 %v283, %v281
      %v314 = vpack.c.b16 %v284, %v282
      %v315 = vpack.c.b16 %v287, %v285
      %v316 = vpack.c.b16 %v288, %v286
      %v317 = vpack.c.b16 %v291, %v289
      %v318 = vpack.c.b16 %v292, %v290
      %v319 = vpack.c.b16 %v295, %v293
      %v320 = vpack.c.b16 %v296, %v294
      %v321 = vpack.c.b16 %v299, %v297
      %v322 = vpack.c.b16 %v300, %v298
      %v323 = vpack.c.b16 %v303, %v301
      %v324 = vpack.c.b16 %v304, %v302
      %v325 = vpack.c.b16 %v307, %v305
      %v326 = vpack.c.b16 %v308, %v306
      %v327 = vpack.c.b16 %v311, %v309
      %v328 = vpack.c.b16 %v312, %v310
      %v377 = vunpack.c.l.b16 %v233
      %v378 = vunpack.c.l.b16 %v234
      %v379 = vunpack.c.l.b16 %v235
      %v380 = vunpack.c.l.b16 %v236
      %v381 = vunpack.c.l.b16 %v237
      %v382 = vunpack.c.l.b16 %v238
      %v383 = vunpack.c.l.b16 %v239
      %v384 = vunpack.c.l.b16 %v240
      %v385 = vunpack.c.l.b16 %v241
      %v386 = vunpack.c.l.b16 %v242
      %v387 = vunpack.c.l.b16 %v243
      %v388 = vunpack.c.l.b16 %v244
      %v389 = vunpack.c.l.b16 %v245
      %v390 = vunpack.c.l.b16 %v246
      %v391 = vunpack.c.l.b16 %v247
      %v392 = vunpack.c.l.b16 %v248
      %v393 = vunpack.c.l.b16 %v249
      %v394 = vunpack.c.l.b16 %v250
      %v395 = vunpack.c.l.b16 %v251
      %v396 = vunpack.c.l.b16 %v252
      %v397 = vunpack.c.l.b16 %v253
      %v398 = vunpack.c.l.b16 %v254
      %v399 = vunpack.c.l.b16 %v255
      %v400 = vunpack.c.l.b16 %v256
      %v401 = vunpack.c.l.b16 %v257
      %v402 = vunpack.c.l.b16 %v258
      %v403 = vunpack.c.l.b16 %v259
      %v404 = vunpack.c.l.b16 %v260
      %v405 = vunpack.c.l.b16 %v261
      %v406 = vunpack.c.l.b16 %v262
      %v407 = vunpack.c.l.b16 %v263
      %v408 = vunpack.c.l.b16 %v264
      %v409 = vpack.c.b16 %v378, %v377
      %v410 = vpack.c.b16 %v380, %v379
      %v411 = vpack.c.b16 %v382, %v381
      %v412 = vpack.c.b16 %v384, %v383
      %v413 = vpack.c.b16 %v386, %v385
      %v414 = vpack.c.b16 %v388, %v387
      %v415 = vpack.c.b16 %v390, %v389
      %v416 = vpack.c.b16 %v392, %v391
      %v417 = vpack.c.b16 %v394, %v393
      %v418 = vpack.c.b16 %v396, %v395
      %v419 = vpack.c.b16 %v398, %v397
      %v420 = vpack.c.b16 %v400, %v399
      %v421 = vpack.c.b16 %v402, %v401
      %v422 = vpack.c.b16 %v404, %v403
      %v423 = vpack.c.b16 %v406, %v405
      %v424 = vpack.c.b16 %v408, %v407
      %441 = vmatprep.subr.bf16.mxu0 0
      %442 = vmatpush1.bf16.msra.mxu0 %v416
      %443 = vmatprep.subr.bf16.mxu0 0
      %444 = vmatpush1.bf16.msra.mxu0 %v415
      %445 = vmatprep.subr.bf16.mxu0 0
      %446 = vmatpush1.bf16.msra.mxu0 %v414
      %447 = vmatprep.subr.bf16.mxu0 0
      %448 = vmatpush1.bf16.msra.mxu0 %v413
      %449 = vmatprep.subr.bf16.mxu0 0
      %450 = vmatpush1.bf16.msra.mxu0 %v412
      %451 = vmatprep.subr.bf16.mxu0 0
      %452 = vmatpush1.bf16.msra.mxu0 %v411
      %453 = vmatprep.subr.bf16.mxu0 0
      %454 = vmatpush1.bf16.msra.mxu0 %v410
      %455 = vmatprep.subr.bf16.mxu0 0
      %456 = vmatpush1.bf16.msra.mxu0 %v409
      %457 = vmatprep.subr.bf16.mxu0 0
      %458 = vmatpush2.bf16.msra.mxu0 %v424
      %459 = vmatprep.subr.bf16.mxu0 0
      %460 = vmatpush2.bf16.msra.mxu0 %v423
      %461 = vmatprep.subr.bf16.mxu0 0
      %462 = vmatpush2.bf16.msra.mxu0 %v422
      %463 = vmatprep.subr.bf16.mxu0 0
      %464 = vmatpush2.bf16.msra.mxu0 %v421
      %465 = vmatprep.subr.bf16.mxu0 0
      %466 = vmatpush2.bf16.msra.mxu0 %v420
      %467 = vmatprep.subr.bf16.mxu0 0
      %468 = vmatpush2.bf16.msra.mxu0 %v419
      %469 = vmatprep.subr.bf16.mxu0 0
      %470 = vmatpush2.bf16.msra.mxu0 %v418
      %471 = vmatprep.subr.bf16.mxu0 0
      %472 = vmatpush2.bf16.msra.mxu0 %v417
      %473 = vmatprep.mubr.bf16.mxu0 %v314
      %474 = vmatmul.mubr.bf16.gmra.mxu0 %v313
      %v475 = vpop.f32.mrf.mxu0
      %v476 = vadd.f32 0.0, %v475
      %v477 = vpop.f32.mrf.mxu0
      %v478 = vpop.f32.mrf.mxu0
      %v479 = vadd.f32 0.0, %v478
      %v480 = vpop.f32.mrf.mxu0
      %481 = vmatprep.mubr.bf16.mxu0 %v316
      %482 = vmatmul.mubr.bf16.gmra.mxu0 %v315
      %v483 = vpop.f32.mrf.mxu0
      %v484 = vadd.f32 0.0, %v483
      %v485 = vpop.f32.mrf.mxu0
      %v486 = vpop.f32.mrf.mxu0
      %v487 = vadd.f32 0.0, %v486
      %v488 = vpop.f32.mrf.mxu0
      %489 = vmatprep.mubr.bf16.mxu0 %v318
      %490 = vmatmul.mubr.bf16.gmra.mxu0 %v317
      %v491 = vpop.f32.mrf.mxu0
      %v492 = vadd.f32 0.0, %v491
      %v493 = vpop.f32.mrf.mxu0
      %v494 = vpop.f32.mrf.mxu0
      %v495 = vadd.f32 0.0, %v494
      %v496 = vpop.f32.mrf.mxu0
      %497 = vmatprep.mubr.bf16.mxu0 %v320
      %498 = vmatmul.mubr.bf16.gmra.mxu0 %v319
      %v499 = vpop.f32.mrf.mxu0
      %v500 = vadd.f32 0.0, %v499
      %v501 = vpop.f32.mrf.mxu0
      %v502 = vpop.f32.mrf.mxu0
      %v503 = vadd.f32 0.0, %v502
      %v504 = vpop.f32.mrf.mxu0
      %505 = vmatprep.mubr.bf16.mxu0 %v322
      %506 = vmatmul.mubr.bf16.gmra.mxu0 %v321
      %v507 = vpop.f32.mrf.mxu0
      %v508 = vadd.f32 0.0, %v507
      %v509 = vpop.f32.mrf.mxu0
      %v510 = vpop.f32.mrf.mxu0
      %v511 = vadd.f32 0.0, %v510
      %v512 = vpop.f32.mrf.mxu0
      %513 = vmatprep.mubr.bf16.mxu0 %v324
      %514 = vmatmul.mubr.bf16.gmra.mxu0 %v323
      %v515 = vpop.f32.mrf.mxu0
      %v516 = vadd.f32 0.0, %v515
      %v517 = vpop.f32.mrf.mxu0
      %v518 = vpop.f32.mrf.mxu0
      %v519 = vadd.f32 0.0, %v518
      %v520 = vpop.f32.mrf.mxu0
      %521 = vmatprep.mubr.bf16.mxu0 %v326
      %522 = vmatmul.mubr.bf16.gmra.mxu0 %v325
      %v523 = vpop.f32.mrf.mxu0
      %v524 = vadd.f32 0.0, %v523
      %v525 = vpop.f32.mrf.mxu0
      %v526 = vpop.f32.mrf.mxu0
      %v527 = vadd.f32 0.0, %v526
      %v528 = vpop.f32.mrf.mxu0
      %529 = vmatprep.mubr.bf16.mxu0 %v328
      %530 = vmatmul.mubr.bf16.gmra.mxu0 %v327
      %v531 = vpop.f32.mrf.mxu0
      %v532 = vadd.f32 0.0, %v531
      %v533 = vpop.f32.mrf.mxu0
      %v534 = vpop.f32.mrf.mxu0
      %v535 = vadd.f32 0.0, %v534
      %v536 = vpop.f32.mrf.mxu0
      %537 = vdwg.mxu0
      %p538 = scmp.eq.s32.totalorder %s19, 0
      // Predicated region
      $region37: #{discriminator_forward.7} parent=35 // pred_check
        %p539 = pneg %p538
      $region38: #{discriminator_forward.7} parent=35 // pred_check_branch
        %541 = sbr.rel (%p539) target = $region40
      $region39: #{discriminator_forward.7} parent=35 // pred_region
        %p542 = scmp.eq.s32.totalorder %s20, 0
        // Predicated region
        $region41: #{discriminator_forward.7} parent=39 // pred_check
          %p543 = pneg %p542
        $region42: #{discriminator_forward.7} parent=39 // pred_check_branch
          %545 = sbr.rel (%p543) target = $region44
        $region43: #{discriminator_forward.7} parent=39 // pred_region
          %vm546 = vcmask 253952
          %547 = vst.msk [vmem:[#allocation2] sm:$0x1] %vm546, 0.0
          %548 = vst.msk [vmem:[#allocation3] sm:$0x1] %vm546, 0.0
        $region44: #{discriminator_forward.7} parent=39 // pred_fallthru
          _
        %v549 = vld [vmem:[#allocation2] sm:$0x1]
        %vm550 = vcmask 261120
        %v551 = vsel %vm550, %v476, 0.0
        %v552 = vsel %vm550, %v479, 0.0
        %v553 = vadd.f32 %v551, %v552
        %v554 = vsel %vm550, %v484, 0.0
        %v555 = vadd.f32 %v553, %v554
        %v556 = vsel %vm550, %v487, 0.0
        %v557 = vadd.f32 %v555, %v556
        %v558 = vsel %vm550, %v492, 0.0
        %v559 = vadd.f32 %v557, %v558
        %v560 = vsel %vm550, %v495, 0.0
        %v561 = vadd.f32 %v559, %v560
        %v562 = vsel %vm550, %v500, 0.0
        %v563 = vadd.f32 %v561, %v562
        %v564 = vsel %vm550, %v503, 0.0
        %v565 = vadd.f32 %v563, %v564
        %v566 = vsel %vm550, %v508, 0.0
        %v567 = vadd.f32 %v565, %v566
        %v568 = vsel %vm550, %v511, 0.0
        %v569 = vadd.f32 %v567, %v568
        %v570 = vsel %vm550, %v516, 0.0
        %v571 = vadd.f32 %v569, %v570
        %v572 = vsel %vm550, %v519, 0.0
        %v573 = vadd.f32 %v571, %v572
        %v574 = vsel %vm550, %v524, 0.0
        %v575 = vadd.f32 %v573, %v574
        %v576 = vsel %vm550, %v527, 0.0
        %v577 = vadd.f32 %v575, %v576
        %v578 = vsel %vm550, %v532, 0.0
        %v579 = vadd.f32 %v577, %v578
        %v580 = vsel %vm550, %v535, 0.0
        %v581 = vadd.f32 %v579, %v580
        %v582 = vrot.slane %v581, 4
        %v583 = vadd.f32 %v581, %v582
        %v584 = vrot.slane %v583, 2
        %v585 = vadd.f32 %v583, %v584
        %v586 = vrot.slane %v585, 1
        %v587 = vadd.f32 %v585, %v586
        %v588 = vadd.f32 %v549, %v587
        %vm589 = vcmask 253952
        %590 = vst.msk [vmem:[#allocation2] sm:$0x1] %vm589, %v588
        %v591 = vld [vmem:[#allocation3] sm:$0x1]
        %v592 = vmul.f32 %v476, %v476
        %v593 = vmul.f32 %v479, %v479
        %v594 = vmul.f32 %v484, %v484
        %v595 = vmul.f32 %v487, %v487
        %v596 = vmul.f32 %v492, %v492
        %v597 = vmul.f32 %v495, %v495
        %v598 = vmul.f32 %v500, %v500
        %v599 = vmul.f32 %v503, %v503
        %v600 = vmul.f32 %v508, %v508
        %v601 = vmul.f32 %v511, %v511
        %v602 = vmul.f32 %v516, %v516
        %v603 = vmul.f32 %v519, %v519
        %v604 = vmul.f32 %v524, %v524
        %v605 = vmul.f32 %v527, %v527
        %v606 = vmul.f32 %v532, %v532
        %v607 = vmul.f32 %v535, %v535
        %v608 = vsel %vm550, %v592, 0.0
        %v609 = vsel %vm550, %v593, 0.0
        %v610 = vadd.f32 %v608, %v609
        %v611 = vsel %vm550, %v594, 0.0
        %v612 = vadd.f32 %v610, %v611
        %v613 = vsel %vm550, %v595, 0.0
        %v614 = vadd.f32 %v612, %v613
        %v615 = vsel %vm550, %v596, 0.0
        %v616 = vadd.f32 %v614, %v615
        %v617 = vsel %vm550, %v597, 0.0
        %v618 = vadd.f32 %v616, %v617
        %v619 = vsel %vm550, %v598, 0.0
        %v620 = vadd.f32 %v618, %v619
        %v621 = vsel %vm550, %v599, 0.0
        %v622 = vadd.f32 %v620, %v621
        %v623 = vsel %vm550, %v600, 0.0
        %v624 = vadd.f32 %v622, %v623
        %v625 = vsel %vm550, %v601, 0.0
        %v626 = vadd.f32 %v624, %v625
        %v627 = vsel %vm550, %v602, 0.0
        %v628 = vadd.f32 %v626, %v627
        %v629 = vsel %vm550, %v603, 0.0
        %v630 = vadd.f32 %v628, %v629
        %v631 = vsel %vm550, %v604, 0.0
        %v632 = vadd.f32 %v630, %v631
        %v633 = vsel %vm550, %v605, 0.0
        %v634 = vadd.f32 %v632, %v633
        %v635 = vsel %vm550, %v606, 0.0
        %v636 = vadd.f32 %v634, %v635
        %v637 = vsel %vm550, %v607, 0.0
        %v638 = vadd.f32 %v636, %v637
        %v639 = vrot.slane %v638, 4
        %v640 = vadd.f32 %v638, %v639
        %v641 = vrot.slane %v640, 2
        %v642 = vadd.f32 %v640, %v641
        %v643 = vrot.slane %v642, 1
        %v644 = vadd.f32 %v642, %v643
        %v645 = vadd.f32 %v591, %v644
        %646 = vst.msk [vmem:[#allocation3] sm:$0x1] %vm589, %v645
      $region40: #{discriminator_forward.7} parent=35 // pred_fallthru
        _
      %p647 = scmp.eq.s32.totalorder %s19, 1
      // Predicated region
      $region45: #{discriminator_forward.7} parent=35 // pred_check
        %p648 = pneg %p647
      $region46: #{discriminator_forward.7} parent=35 // pred_check_branch
        %650 = sbr.rel (%p648) target = $region48
      $region47: #{discriminator_forward.7} parent=35 // pred_region
        %v651 = vld [vmem:[#allocation2] sm:$0x1]
        %v652 = vmul.f32 %v651, 0.0078125
        %v653 = vld [vmem:[#allocation3] sm:$0x1]
        %v654 = vmul.f32 %v653, 0.0078125
        %v655 = vmul.f32 %v652, %v652
        %v656 = vsub.f32 %v654, %v655
        %v657 = vmax.f32 %v656, 0.0
        %v658 = vadd.f32 %v657, 1e-05
        %v659 = vrsqrt.pop %v658
        %v660 = vld [vmem:[%s2] sm:$0x1]
        %v661 = vmul.f32 %v660, %v659
        %v662 = vld [vmem:[%s3] sm:$0x1]
        %v663 = vmul.f32 %v652, %v661
        %v664 = vsub.f32 %v662, %v663
        %v666 = vlaneseq
        %v667 = vshrl.u32 %v666, 7
        %v668 = vsub.s32 0, %v667
        %v669 = vrot.slane %v661, %v668
        %v671 = vmul.f32 %v476, %v669
        %v672 = vmul.f32 %v479, %v669
        %v673 = vmul.f32 %v484, %v669
        %v674 = vmul.f32 %v487, %v669
        %v675 = vmul.f32 %v492, %v669
        %v676 = vmul.f32 %v495, %v669
        %v677 = vmul.f32 %v500, %v669
        %v678 = vmul.f32 %v503, %v669
        %v679 = vmul.f32 %v508, %v669
        %v680 = vmul.f32 %v511, %v669
        %v681 = vmul.f32 %v516, %v669
        %v682 = vmul.f32 %v519, %v669
        %v683 = vmul.f32 %v524, %v669
        %v684 = vmul.f32 %v527, %v669
        %v685 = vmul.f32 %v532, %v669
        %v686 = vmul.f32 %v535, %v669
        %v688 = vlaneseq
        %v689 = vshrl.u32 %v688, 7
        %v690 = vsub.s32 0, %v689
        %v691 = vrot.slane %v664, %v690
        %v693 = vadd.f32 %v671, %v691
        %v694 = vadd.f32 %v672, %v691
        %v695 = vadd.f32 %v673, %v691
        %v696 = vadd.f32 %v674, %v691
        %v697 = vadd.f32 %v675, %v691
        %v698 = vadd.f32 %v676, %v691
        %v699 = vadd.f32 %v677, %v691
        %v700 = vadd.f32 %v678, %v691
        %v701 = vadd.f32 %v679, %v691
        %v702 = vadd.f32 %v680, %v691
        %v703 = vadd.f32 %v681, %v691
        %v704 = vadd.f32 %v682, %v691
        %v705 = vadd.f32 %v683, %v691
        %v706 = vadd.f32 %v684, %v691
        %v707 = vadd.f32 %v685, %v691
        %v708 = vadd.f32 %v686, %v691
        %vm709 = vcmp.ge.f32.partialorder %v693, 0.0
        %vm710 = vcmp.ge.f32.partialorder %v694, 0.0
        %vm711 = vcmp.ge.f32.partialorder %v695, 0.0
        %vm712 = vcmp.ge.f32.partialorder %v696, 0.0
        %vm713 = vcmp.ge.f32.partialorder %v697, 0.0
        %vm714 = vcmp.ge.f32.partialorder %v698, 0.0
        %vm715 = vcmp.ge.f32.partialorder %v699, 0.0
        %vm716 = vcmp.ge.f32.partialorder %v700, 0.0
        %vm717 = vcmp.ge.f32.partialorder %v701, 0.0
        %vm718 = vcmp.ge.f32.partialorder %v702, 0.0
        %vm719 = vcmp.ge.f32.partialorder %v703, 0.0
        %vm720 = vcmp.ge.f32.partialorder %v704, 0.0
        %vm721 = vcmp.ge.f32.partialorder %v705, 0.0
        %vm722 = vcmp.ge.f32.partialorder %v706, 0.0
        %vm723 = vcmp.ge.f32.partialorder %v707, 0.0
        %vm724 = vcmp.ge.f32.partialorder %v708, 0.0
        %v725 = vmul.f32 %v693, 0.2
        %v726 = vmul.f32 %v694, 0.2
        %v727 = vmul.f32 %v695, 0.2
        %v728 = vmul.f32 %v696, 0.2
        %v729 = vmul.f32 %v697, 0.2
        %v730 = vmul.f32 %v698, 0.2
        %v731 = vmul.f32 %v699, 0.2
        %v732 = vmul.f32 %v700, 0.2
        %v733 = vmul.f32 %v701, 0.2
        %v734 = vmul.f32 %v702, 0.2
        %v735 = vmul.f32 %v703, 0.2
        %v736 = vmul.f32 %v704, 0.2
        %v737 = vmul.f32 %v705, 0.2
        %v738 = vmul.f32 %v706, 0.2
        %v739 = vmul.f32 %v707, 0.2
        %v740 = vmul.f32 %v708, 0.2
        %v741 = vsel %vm709, %v693, %v725
        %v742 = vsel %vm710, %v694, %v726
        %v743 = vsel %vm711, %v695, %v727
        %v744 = vsel %vm712, %v696, %v728
        %v745 = vsel %vm713, %v697, %v729
        %v746 = vsel %vm714, %v698, %v730
        %v747 = vsel %vm715, %v699, %v731
        %v748 = vsel %vm716, %v700, %v732
        %v749 = vsel %vm717, %v701, %v733
        %v750 = vsel %vm718, %v702, %v734
        %v751 = vsel %vm719, %v703, %v735
        %v752 = vsel %vm720, %v704, %v736
        %v753 = vsel %vm721, %v705, %v737
        %v754 = vsel %vm722, %v706, %v738
        %v755 = vsel %vm723, %v707, %v739
        %v756 = vsel %vm724, %v708, %v740
        %v757 = vpack.c.bf16 %v742, %v741
        %v758 = vpack.c.bf16 %v744, %v743
        %v759 = vpack.c.bf16 %v746, %v745
        %v760 = vpack.c.bf16 %v748, %v747
        %v761 = vpack.c.bf16 %v750, %v749
        %v762 = vpack.c.bf16 %v752, %v751
        %v763 = vpack.c.bf16 %v754, %v753
        %v764 = vpack.c.bf16 %v756, %v755
        %v773 = vunpack.c.l.b16 %v757
        %v774 = vunpack.c.h.b16 %v757
        %v775 = vunpack.c.l.b16 %v758
        %v776 = vunpack.c.h.b16 %v758
        %v777 = vunpack.c.l.b16 %v759
        %v778 = vunpack.c.h.b16 %v759
        %v779 = vunpack.c.l.b16 %v760
        %v780 = vunpack.c.h.b16 %v760
        %v781 = vunpack.c.l.b16 %v761
        %v782 = vunpack.c.h.b16 %v761
        %v783 = vunpack.c.l.b16 %v762
        %v784 = vunpack.c.h.b16 %v762
        %v785 = vunpack.c.l.b16 %v763
        %v786 = vunpack.c.h.b16 %v763
        %v787 = vunpack.c.l.b16 %v764
        %v788 = vunpack.c.h.b16 %v764
        %v789 = vpack.c.b16 %v773, %v773
        %v790 = vpack.c.b16 %v774, %v774
        %v791 = vpack.c.b16 %v775, %v775
        %v792 = vpack.c.b16 %v776, %v776
        %v793 = vpack.c.b16 %v777, %v777
        %v794 = vpack.c.b16 %v778, %v778
        %v795 = vpack.c.b16 %v779, %v779
        %v796 = vpack.c.b16 %v780, %v780
        %v797 = vpack.c.b16 %v781, %v781
        %v798 = vpack.c.b16 %v782, %v782
        %v799 = vpack.c.b16 %v783, %v783
        %v800 = vpack.c.b16 %v784, %v784
        %v801 = vpack.c.b16 %v785, %v785
        %v802 = vpack.c.b16 %v786, %v786
        %v803 = vpack.c.b16 %v787, %v787
        %v804 = vpack.c.b16 %v788, %v788
        %vm821 = vcmask 257024
        %822 = vst.msk [vmem:[%s214] sm:$0xf] %vm821, %v789
        %823 = vst.msk [vmem:[%s214 + $0x4] sm:$0xf] %vm821, %v790
        %824 = vst.msk [vmem:[%s214 + $0x8] sm:$0xf] %vm821, %v791
        %825 = vst.msk [vmem:[%s214 + $0xc] sm:$0xf] %vm821, %v792
        %826 = vst.msk [vmem:[%s214 + $0x10] sm:$0xf] %vm821, %v793
        %827 = vst.msk [vmem:[%s214 + $0x14] sm:$0xf] %vm821, %v794
        %828 = vst.msk [vmem:[%s214 + $0x18] sm:$0xf] %vm821, %v795
        %829 = vst.msk [vmem:[%s214 + $0x1c] sm:$0xf] %vm821, %v796
        %830 = vst.msk [vmem:[%s214 + $0x20] sm:$0xf] %vm821, %v797
        %831 = vst.msk [vmem:[%s214 + $0x24] sm:$0xf] %vm821, %v798
        %832 = vst.msk [vmem:[%s214 + $0x28] sm:$0xf] %vm821, %v799
        %833 = vst.msk [vmem:[%s214 + $0x2c] sm:$0xf] %vm821, %v800
        %834 = vst.msk [vmem:[%s214 + $0x30] sm:$0xf] %vm821, %v801
        %835 = vst.msk [vmem:[%s214 + $0x34] sm:$0xf] %vm821, %v802
        %836 = vst.msk [vmem:[%s214 + $0x38] sm:$0xf] %vm821, %v803
        %837 = vst.msk [vmem:[%s214 + $0x3c] sm:$0xf] %vm821, %v804
      $region48: #{discriminator_forward.7} parent=35 // pred_fallthru
        _
      %s838 = smul.u32 16, %s20
      %p839 = scmp.lt.s32.totalorder %s838, 15
      %s840 = scalar_select %p839, %s838, 15
      %s841 = smul.addr %s840, 4
      %s842 = scalar_lea.vmem %s4, %s841
      // Predicated region
      $region49: #{discriminator_forward.7} parent=35 // pred_check
        %p843 = pneg %p134
      $region50: #{discriminator_forward.7} parent=35 // pred_check_branch
        %845 = sbr.rel (%p843) target = $region52
      $region51: #{discriminator_forward.7} parent=35 // pred_region
        %s846 = smul.u32 16, %s20
      $region52: #{discriminator_forward.7} parent=35 // pred_fallthru
        _
      // Predicated region
      $region53: #{discriminator_forward.7} parent=35 // pred_check
        %p847 = pneg %p134
      $region54: #{discriminator_forward.7} parent=35 // pred_check_branch
        %849 = sbr.rel (%p847) target = $region56
      $region55: #{discriminator_forward.7} parent=35 // pred_region
        %s850 = smul.u32 16, %s20
        %p851 = scmp.lt.s32.totalorder %s850, 15
        %s852 = scalar_select %p851, %s850, 15
        %s853 = smul.addr %s852, 4
        %s854 = scalar_lea.vmem %s4, %s853
      $region56: #{discriminator_forward.7} parent=35 // pred_fallthru
        _
    $region36: #{discriminator_forward.7} parent=5 // pred_fallthru
      _
    %p855 = scmp.le.s32.totalorder 2, %s10
    // Predicated region
    $region57: #{discriminator_forward.7} parent=5 // pred_check
      %p856 = pneg %p855
    $region58: #{discriminator_forward.7} parent=5 // pred_check_branch
      %858 = sbr.rel (%p856) target = $region60
    $region59: #{discriminator_forward.7} parent=5 // pred_region
      %s859 = ssub.s32 %s10, 2
    $region60: #{discriminator_forward.7} parent=5 // pred_fallthru
      _
  $region6: #{discriminator_forward.7} parent=0 // loop_footer
    %s14 = sadd.s32 1, %s10
  $region7: #{discriminator_forward.7} parent=0 // loop_footer_branch
    %9 = sbr.rel target = $region3
  $region8: #{discriminator_forward.7} parent=0 // loop_exit
    _

// kernel: discriminator_forward.8
$region0: #{discriminator_forward.8}
  #allocation0 [shape = 'u32[]', space=smem, size = 0x4, offset = 0x4, fixed_abs, tag = 'smem constant byte address 0x4 - core index']
  #allocation1 [shape = 'u32[144,128]{1,0:T(1,128)}', space=vmem, size = 0x12000, scoped, tag = 'internal scratch']
  #allocation2 [shape = 'f32[1,64]{1,0:T(1,128)}', space=vmem, size = 0x200, scoped, tag = 'scratch operand']
  #allocation3 [shape = 'f32[1,64]{1,0:T(1,128)}', space=vmem, size = 0x200, scoped, tag = 'scratch operand']
  %s0 = inlined_call_operand.vmem [shape: bf16[32,512], index: 0, kind: input, shape index: {}]
  %s1 = inlined_call_operand.vmem [shape: bf16[512,64], index: 1, kind: input, shape index: {}]
  %s2 = inlined_call_operand.vmem [shape: f32[1,64], index: 2, kind: input, shape index: {}]
  %s3 = inlined_call_operand.vmem [shape: f32[1,64], index: 3, kind: input, shape index: {}]
  %s4 = inlined_call_operand.vmem [shape: bf16[32,64], index: 4, kind: output, shape index: {}]
  %s5 = sld [smem:[#allocation0]]
  $region61: #{discriminator_forward.8} parent=0
    _
  %s7 = ssub.s32 1, %s5
  %s8 = scalar_select 0, %s7, %s5
  loop: start=0, step=1, limit=4
  $region2: #{discriminator_forward.8} parent=0 // loop_pre_header
    _
  $region3: #{discriminator_forward.8} parent=0 // loop_header
    %s10 = sphi 0, %s14
    %p11 = scmp.ge.s32.totalorder %s10, 4
    %s17 = sphi 0, %s29
    %s18 = sphi 0, %s25
    %s19 = sphi 0, %s17
    %s20 = sphi 0, %s18
    %s21 = sphi 0, %s19
    %s22 = sphi 0, %s20
    %s32 = sphi 0, %s34
    %s35 = sphi 0, %s32
    %s36 = sphi 0, %s35
    %s52 = sphi 0, %s36
    %s56 = sphi 0, %s56
    %s58 = sphi 0, %s56
    %s59 = sphi 0, %s58
    %s73 = sphi 0, %s59
    %s77 = sphi 0, %s77
    %s79 = sphi 0, %s77
    %s80 = sphi 0, %s79
    %s94 = sphi 0, %s80
    %s98 = sphi 0, %s98
    %s100 = sphi 0, %s98
    %s101 = sphi 0, %s100
    %s115 = sphi 0, %s101
    %s121 = sphi 0, %s123
    %s124 = sphi 0, %s121
    %s125 = sphi 0, %s124
    %s141 = sphi 0, %s125
  $region4: #{discriminator_forward.8} parent=0 // loop_header_branch
    %13 = sbr.rel (%p11) target = $region8
  $region5: #{discriminator_forward.8} parent=0 // loop_body
    %s15 = ssub.s32 %s10, 1
    %s16 = ssub.s32 %s10, 2
    %s23 = sadd.s32 1, %s18
    %p24 = scmp.ge.s32.totalorder %s23, 1
    %s25 = scalar_select %p24, 0, %s23
    %s26 = sadd.s32 1, %s17
    %s27 = scalar_select %p24, %s26, %s17
    %p28 = scmp.ge.s32.totalorder %s27, 2
    %s29 = scalar_select %p28, 0, %s27
    %s30 = ssub.s32 %s18, %s25
    %p31 = scmp.eq.s32.totalorder %s30, 0
    %s33 = sadd.s32 %s32, 1
    %s34 = scalar_select %p31, %s32, %s33
    %p37 = pneg %p31
    %p38 = scmp.eq.s32.totalorder %s10, 1
    %p39 = por %p37, %p38
    %p40 = scmp.ne.s32.totalorder %s32, %s35
    %p41 = scmp.eq.s32.totalorder %s10, 0
    %p42 = por %p40, %p41
    %p43 = scmp.ne.s32.totalorder %s32, %s35
    %p44 = scmp.eq.s32.totalorder %s15, 1
    %p45 = por %p43, %p44
    %p46 = scmp.ne.s32.totalorder %s35, %s36
    %p47 = scmp.eq.s32.totalorder %s15, 0
    %p48 = por %p46, %p47
    %p49 = scmp.ne.s32.totalorder %s35, %s36
    %p50 = scmp.eq.s32.totalorder %s16, 1
    %p51 = por %p49, %p50
    %p53 = scmp.ne.s32.totalorder %s36, %s52
    %p54 = scmp.eq.s32.totalorder %s16, 0
    %p55 = por %p53, %p54
    %s57 = sadd.s32 %s56, 1
    %p60 = scmp.eq.s32.totalorder %s10, 1
    %p61 = scmp.ne.s32.totalorder %s56, %s58
    %p62 = scmp.eq.s32.totalorder %s10, 0
    %p63 = por %p61, %p62
    %p64 = scmp.ne.s32.totalorder %s56, %s58
    %p65 = scmp.eq.s32.totalorder %s15, 1
    %p66 = por %p64, %p65
    %p67 = scmp.ne.s32.totalorder %s58, %s59
    %p68 = scmp.eq.s32.totalorder %s15, 0
    %p69 = por %p67, %p68
    %p70 = scmp.ne.s32.totalorder %s58, %s59
    %p71 = scmp.eq.s32.totalorder %s16, 1
    %p72 = por %p70, %p71
    %p74 = scmp.ne.s32.totalorder %s59, %s73
    %p75 = scmp.eq.s32.totalorder %s16, 0
    %p76 = por %p74, %p75
    %s78 = sadd.s32 %s77, 1
    %p81 = scmp.eq.s32.totalorder %s10, 1
    %p82 = scmp.ne.s32.totalorder %s77, %s79
    %p83 = scmp.eq.s32.totalorder %s10, 0
    %p84 = por %p82, %p83
    %p85 = scmp.ne.s32.totalorder %s77, %s79
    %p86 = scmp.eq.s32.totalorder %s15, 1
    %p87 = por %p85, %p86
    %p88 = scmp.ne.s32.totalorder %s79, %s80
    %p89 = scmp.eq.s32.totalorder %s15, 0
    %p90 = por %p88, %p89
    %p91 = scmp.ne.s32.totalorder %s79, %s80
    %p92 = scmp.eq.s32.totalorder %s16, 1
    %p93 = por %p91, %p92
    %p95 = scmp.ne.s32.totalorder %s80, %s94
    %p96 = scmp.eq.s32.totalorder %s16, 0
    %p97 = por %p95, %p96
    %s99 = sadd.s32 %s98, 1
    %p102 = scmp.eq.s32.totalorder %s10, 1
    %p103 = scmp.ne.s32.totalorder %s98, %s100
    %p104 = scmp.eq.s32.totalorder %s10, 0
    %p105 = por %p103, %p104
    %p106 = scmp.ne.s32.totalorder %s98, %s100
    %p107 = scmp.eq.s32.totalorder %s15, 1
    %p108 = por %p106, %p107
    %p109 = scmp.ne.s32.totalorder %s100, %s101
    %p110 = scmp.eq.s32.totalorder %s15, 0
    %p111 = por %p109, %p110
    %p112 = scmp.ne.s32.totalorder %s100, %s101
    %p113 = scmp.eq.s32.totalorder %s16, 1
    %p114 = por %p112, %p113
    %p116 = scmp.ne.s32.totalorder %s101, %s115
    %p117 = scmp.eq.s32.totalorder %s16, 0
    %p118 = por %p116, %p117
    %s119 = ssub.s32 %s18, %s25
    %p120 = scmp.eq.s32.totalorder %s119, 0
    %s122 = sadd.s32 %s121, 1
    %s123 = scalar_select %p120, %s121, %s122
    %p126 = pneg %p120
    %p127 = scmp.eq.s32.totalorder %s10, 1
    %p128 = por %p126, %p127
    %p129 = scmp.ne.s32.totalorder %s121, %s124
    %p130 = scmp.eq.s32.totalorder %s10, 0
    %p131 = por %p129, %p130
    %p132 = scmp.ne.s32.totalorder %s121, %s124
    %p133 = scmp.eq.s32.totalorder %s15, 1
    %p134 = por %p132, %p133
    %p135 = scmp.ne.s32.totalorder %s124, %s125
    %p136 = scmp.eq.s32.totalorder %s15, 0
    %p137 = por %p135, %p136
    %p138 = scmp.ne.s32.totalorder %s124, %s125
    %p139 = scmp.eq.s32.totalorder %s16, 1
    %p140 = por %p138, %p139
    %p142 = scmp.ne.s32.totalorder %s125, %s141
    %p143 = scmp.eq.s32.totalorder %s16, 0
    %p144 = por %p142, %p143
    %p145 = scmp.le.s32.totalorder 1, %s10
    %p146 = scmp.lt.s32.totalorder %s10, 3
    %p147 = pnand %p145, %p146
    %p148 = pneg %p147
    // Predicated region
    $region9: #{discriminator_forward.8} parent=5 // pred_check
      _
    $region10: #{discriminator_forward.8} parent=5 // pred_check_branch
      %150 = sbr.rel (%p147) target = $region12
    $region11: #{discriminator_forward.8} parent=5 // pred_region
      %s151 = ssub.s32 %s10, 1
      // Predicated region
      $region13: #{discriminator_forward.8} parent=11 // pred_check
        %p152 = pneg %p48
      $region14: #{discriminator_forward.8} parent=11 // pred_check_branch
        %154 = sbr.rel (%p152) target = $region16
      $region15: #{discriminator_forward.8} parent=11 // pred_region
        %s155 = smul.u32 4, %s20
        %p156 = scmp.lt.s32.totalorder %s155, 3
        %s157 = scalar_select %p156, %s155, 3
        %s158 = smul.addr %s157, 4
        %s159 = smul.addr %s158, 4
        %s160 = scalar_lea.vmem %s0, %s159
        %s161 = smul.u32 4, %s20
      $region16: #{discriminator_forward.8} parent=11 // pred_fallthru
        _
      // Predicated region
      $region17: #{discriminator_forward.8} parent=11 // pred_check
        %p162 = pneg %p69
      $region18: #{discriminator_forward.8} parent=11 // pred_check_branch
        %164 = sbr.rel (%p162) target = $region20
      $region19: #{discriminator_forward.8} parent=11 // pred_region
        _
      $region20: #{discriminator_forward.8} parent=11 // pred_fallthru
        _
      // Predicated region
      $region21: #{discriminator_forward.8} parent=11 // pred_check
        %p165 = pneg %p90
      $region22: #{discriminator_forward.8} parent=11 // pred_check_branch
        %167 = sbr.rel (%p165) target = $region24
      $region23: #{discriminator_forward.8} parent=11 // pred_region
        _
      $region24: #{discriminator_forward.8} parent=11 // pred_fallthru
        _
      // Predicated region
      $region25: #{discriminator_forward.8} parent=11 // pred_check
        %p168 = pneg %p111
      $region26: #{discriminator_forward.8} parent=11 // pred_check_branch
        %170 = sbr.rel (%p168) target = $region28
      $region27: #{discriminator_forward.8} parent=11 // pred_region
        _
      $region28: #{discriminator_forward.8} parent=11 // pred_fallthru
        _
    $region12: #{discriminator_forward.8} parent=5 // pred_fallthru
      _
    %p171 = scmp.lt.s32.totalorder %s10, 2
    // Predicated region
    $region29: #{discriminator_forward.8} parent=5 // pred_check
      %p172 = pneg %p171
    $region30: #{discriminator_forward.8} parent=5 // pred_check_branch
      %174 = sbr.rel (%p172) target = $region32
    $region31: #{discriminator_forward.8} parent=5 // pred_region
      _
    $region32: #{discriminator_forward.8} parent=5 // pred_fallthru
      _
    %p175 = scmp.le.s32.totalorder 1, %s10
    %p176 = scmp.lt.s32.totalorder %s10, 3
    %p177 = pnand %p175, %p176
    %p178 = pneg %p177
    // Predicated region
    $region33: #{discriminator_forward.8} parent=5 // pred_check
      _
    $region34: #{discriminator_forward.8} parent=5 // pred_check_branch
      %180 = sbr.rel (%p177) target = $region36
    $region35: #{discriminator_forward.8} parent=5 // pred_region
      %s181 = ssub.s32 %s10, 1
      %s182 = smul.u32 4, %s20
      %p183 = scmp.lt.s32.totalorder %s182, 3
      %s184 = scalar_select %p183, %s182, 3
      %s185 = smul.addr %s184, 4
      %s186 = smul.addr %s185, 4
      %s187 = scalar_lea.vmem %s0, %s186
      %p188 = pneg %p48
      %p189 = pneg %p45
      %p190 = pneg %p69
      %p191 = pneg %p66
      %p192 = pneg %p90
      %p193 = pneg %p87
      %p194 = pneg %p111
      %p195 = pneg %p108
      %p196 = pneg %p137
      %p197 = pneg %p134
      %s198 = smul.u32 4, %s20
      %p199 = scmp.lt.s32.totalorder %s198, 3
      %s200 = scalar_select %p199, %s198, 3
      %s201 = smul.addr %s200, 4
      %s202 = scalar_lea.vmem %s4, %s201
      %s203 = smul.u32 4, %s20
      %p204 = scmp.lt.s32.totalorder %s203, 3
      %s205 = scalar_select %p204, %s203, 3
      %s206 = smul.addr %s205, 4
      %s207 = smul.addr %s206, 4
      %s208 = scalar_lea.vmem %s0, %s207
      %s209 = smul.u32 4, %s20
      %s210 = smul.u32 4, %s20
      %p211 = scmp.lt.s32.totalorder %s210, 3
      %s212 = scalar_select %p211, %s210, 3
      %s213 = smul.addr %s212, 4
      %s214 = scalar_lea.vmem %s4, %s213
      %s215 = smul.u32 4, %s20
      %v217 = vld [vmem:[%s208] sm:$0xff]
      %v218 = vld [vmem:[%s208 + $0x8] sm:$0xff]
      %v219 = vld [vmem:[%s208 + $0x10] sm:$0xff]
      %v220 = vld [vmem:[%s208 + $0x18] sm:$0xff]
      %v221 = vld [vmem:[%s208 + $0x20] sm:$0xff]
      %v222 = vld [vmem:[%s208 + $0x28] sm:$0xff]
      %v223 = vld [vmem:[%s208 + $0x30] sm:$0xff]
      %v224 = vld [vmem:[%s208 + $0x38] sm:$0xff]
      %v225 = vld [vmem:[%s1] sm:$0xf]
      %v226 = vld [vmem:[%s1 + $0x4] sm:$0xf]
      %v227 = vld [vmem:[%s1 + $0x8] sm:$0xf]
      %v228 = vld [vmem:[%s1 + $0xc] sm:$0xf]
      %v229 = vld [vmem:[%s1 + $0x10] sm:$0xf]
      %v230 = vld [vmem:[%s1 + $0x14] sm:$0xf]
      %v231 = vld [vmem:[%s1 + $0x18] sm:$0xf]
      %v232 = vld [vmem:[%s1 + $0x1c] sm:$0xf]
      %v233 = vld [vmem:[%s1 + $0x20] sm:$0xf]
      %v234 = vld [vmem:[%s1 + $0x24] sm:$0xf]
      %v235 = vld [vmem:[%s1 + $0x28] sm:$0xf]
      %v236 = vld [vmem:[%s1 + $0x2c] sm:$0xf]
      %v237 = vld [vmem:[%s1 + $0x30] sm:$0xf]
      %v238 = vld [vmem:[%s1 + $0x34] sm:$0xf]
      %v239 = vld [vmem:[%s1 + $0x38] sm:$0xf]
      %v240 = vld [vmem:[%s1 + $0x3c] sm:$0xf]
      %v241 = vld [vmem:[%s1 + $0x40] sm:$0xf]
      %v242 = vld [vmem:[%s1 + $0x44] sm:$0xf]
      %v243 = vld [vmem:[%s1 + $0x48] sm:$0xf]
      %v244 = vld [vmem:[%s1 + $0x4c] sm:$0xf]
      %v245 = vld [vmem:[%s1 + $0x50] sm:$0xf]
      %v246 = vld [vmem:[%s1 + $0x54] sm:$0xf]
      %v247 = vld [vmem:[%s1 + $0x58] sm:$0xf]
      %v248 = vld [vmem:[%s1 + $0x5c] sm:$0xf]
      %v249 = vld [vmem:[%s1 + $0x60] sm:$0xf]
      %v250 = vld [vmem:[%s1 + $0x64] sm:$0xf]
      %v251 = vld [vmem:[%s1 + $0x68] sm:$0xf]
      %v252 = vld [vmem:[%s1 + $0x6c] sm:$0xf]
      %v253 = vld [vmem:[%s1 + $0x70] sm:$0xf]
      %v254 = vld [vmem:[%s1 + $0x74] sm:$0xf]
      %v255 = vld [vmem:[%s1 + $0x78] sm:$0xf]
      %v256 = vld [vmem:[%s1 + $0x7c] sm:$0xf]
      %v257 = vld [vmem:[%s1 + $0x80] sm:$0xf]
      %v258 = vld [vmem:[%s1 + $0x84] sm:$0xf]
      %v259 = vld [vmem:[%s1 + $0x88] sm:$0xf]
      %v260 = vld [vmem:[%s1 + $0x8c] sm:$0xf]
      %v261 = vld [vmem:[%s1 + $0x90] sm:$0xf]
      %v262 = vld [vmem:[%s1 + $0x94] sm:$0xf]
      %v263 = vld [vmem:[%s1 + $0x98] sm:$0xf]
      %v264 = vld [vmem:[%s1 + $0x9c] sm:$0xf]
      %v265 = vld [vmem:[%s1 + $0xa0] sm:$0xf]
      %v266 = vld [vmem:[%s1 + $0xa4] sm:$0xf]
      %v267 = vld [vmem:[%s1 + $0xa8] sm:$0xf]
      %v268 = vld [vmem:[%s1 + $0xac] sm:$0xf]
      %v269 = vld [vmem:[%s1 + $0xb0] sm:$0xf]
      %v270 = vld [vmem:[%s1 + $0xb4] sm:$0xf]
      %v271 = vld [vmem:[%s1 + $0xb8] sm:$0xf]
      %v272 = vld [vmem:[%s1 + $0xbc] sm:$0xf]
      %v273 = vld [vmem:[%s1 + $0xc0] sm:$0xf]
      %v274 = vld [vmem:[%s1 + $0xc4] sm:$0xf]
      %v275 = vld [vmem:[%s1 + $0xc8] sm:$0xf]
      %v276 = vld [vmem:[%s1 + $0xcc] sm:$0xf]
      %v277 = vld [vmem:[%s1 + $0xd0] sm:$0xf]
      %v278 = vld [vmem:[%s1 + $0xd4] sm:$0xf]
      %v279 = vld [vmem:[%s1 + $0xd8] sm:$0xf]
      %v280 = vld [vmem:[%s1 + $0xdc] sm:$0xf]
      %v281 = vld [vmem:[%s1 + $0xe0] sm:$0xf]
      %v282 = vld [vmem:[%s1 + $0xe4] sm:$0xf]
      %v283 = vld [vmem:[%s1 + $0xe8] sm:$0xf]
      %v284 = vld [vmem:[%s1 + $0xec] sm:$0xf]
      %v285 = vld [vmem:[%s1 + $0xf0] sm:$0xf]
      %v286 = vld [vmem:[%s1 + $0xf4] sm:$0xf]
      %v287 = vld [vmem:[%s1 + $0xf8] sm:$0xf]
      %v288 = vld [vmem:[%s1 + $0xfc] sm:$0xf]
      %v297 = vunpack.c.l.b16 %v217
      %v298 = vunpack.c.h.b16 %v217
      %v299 = vunpack.c.l.b16 %v218
      %v300 = vunpack.c.h.b16 %v218
      %v301 = vunpack.c.l.b16 %v219
      %v302 = vunpack.c.h.b16 %v219
      %v303 = vunpack.c.l.b16 %v220
      %v304 = vunpack.c.h.b16 %v220
      %v305 = vunpack.c.l.b16 %v221
      %v306 = vunpack.c.h.b16 %v221
      %v307 = vunpack.c.l.b16 %v222
      %v308 = vunpack.c.h.b16 %v222
      %v309 = vunpack.c.l.b16 %v223
      %v310 = vunpack.c.h.b16 %v223
      %v311 = vunpack.c.l.b16 %v224
      %v312 = vunpack.c.h.b16 %v224
      %v313 = vpack.c.b16 %v301, %v297
      %v314 = vpack.c.b16 %v302, %v298
      %v315 = vpack.c.b16 %v303, %v299
      %v316 = vpack.c.b16 %v304, %v300
      %v317 = vpack.c.b16 %v309, %v305
      %v318 = vpack.c.b16 %v310, %v306
      %v319 = vpack.c.b16 %v311, %v307
      %v320 = vpack.c.b16 %v312, %v308
      %v393 = vunpack.c.l.b16 %v225
      %v394 = vunpack.c.l.b16 %v226
      %v395 = vunpack.c.l.b16 %v227
      %v396 = vunpack.c.l.b16 %v228
      %v397 = vunpack.c.l.b16 %v229
      %v398 = vunpack.c.l.b16 %v230
      %v399 = vunpack.c.l.b16 %v231
      %v400 = vunpack.c.l.b16 %v232
      %v401 = vunpack.c.l.b16 %v233
      %v402 = vunpack.c.l.b16 %v234
      %v403 = vunpack.c.l.b16 %v235
      %v404 = vunpack.c.l.b16 %v236
      %v405 = vunpack.c.l.b16 %v237
      %v406 = vunpack.c.l.b16 %v238
      %v407 = vunpack.c.l.b16 %v239
      %v408 = vunpack.c.l.b16 %v240
      %v409 = vunpack.c.l.b16 %v241
      %v410 = vunpack.c.l.b16 %v242
      %v411 = vunpack.c.l.b16 %v243
      %v412 = vunpack.c.l.b16 %v244
      %v413 = vunpack.c.l.b16 %v245
      %v414 = vunpack.c.l.b16 %v246
      %v415 = vunpack.c.l.b16 %v247
      %v416 = vunpack.c.l.b16 %v248
      %v417 = vunpack.c.l.b16 %v249
      %v418 = vunpack.c.l.b16 %v250
      %v419 = vunpack.c.l.b16 %v251
      %v420 = vunpack.c.l.b16 %v252
      %v421 = vunpack.c.l.b16 %v253
      %v422 = vunpack.c.l.b16 %v254
      %v423 = vunpack.c.l.b16 %v255
      %v424 = vunpack.c.l.b16 %v256
      %v425 = vunpack.c.l.b16 %v257
      %v426 = vunpack.c.l.b16 %v258
      %v427 = vunpack.c.l.b16 %v259
      %v428 = vunpack.c.l.b16 %v260
      %v429 = vunpack.c.l.b16 %v261
      %v430 = vunpack.c.l.b16 %v262
      %v431 = vunpack.c.l.b16 %v263
      %v432 = vunpack.c.l.b16 %v264
      %v433 = vunpack.c.l.b16 %v265
      %v434 = vunpack.c.l.b16 %v266
      %v435 = vunpack.c.l.b16 %v267
      %v436 = vunpack.c.l.b16 %v268
      %v437 = vunpack.c.l.b16 %v269
      %v438 = vunpack.c.l.b16 %v270
      %v439 = vunpack.c.l.b16 %v271
      %v440 = vunpack.c.l.b16 %v272
      %v441 = vunpack.c.l.b16 %v273
      %v442 = vunpack.c.l.b16 %v274
      %v443 = vunpack.c.l.b16 %v275
      %v444 = vunpack.c.l.b16 %v276
      %v445 = vunpack.c.l.b16 %v277
      %v446 = vunpack.c.l.b16 %v278
      %v447 = vunpack.c.l.b16 %v279
      %v448 = vunpack.c.l.b16 %v280
      %v449 = vunpack.c.l.b16 %v281
      %v450 = vunpack.c.l.b16 %v282
      %v451 = vunpack.c.l.b16 %v283
      %v452 = vunpack.c.l.b16 %v284
      %v453 = vunpack.c.l.b16 %v285
      %v454 = vunpack.c.l.b16 %v286
      %v455 = vunpack.c.l.b16 %v287
      %v456 = vunpack.c.l.b16 %v288
      %v457 = vpack.c.b16 %v394, %v393
      %v458 = vpack.c.b16 %v396, %v395
      %v459 = vpack.c.b16 %v398, %v397
      %v460 = vpack.c.b16 %v400, %v399
      %v461 = vpack.c.b16 %v402, %v401
      %v462 = vpack.c.b16 %v404, %v403
      %v463 = vpack.c.b16 %v406, %v405
      %v464 = vpack.c.b16 %v408, %v407
      %v465 = vpack.c.b16 %v410, %v409
      %v466 = vpack.c.b16 %v412, %v411
      %v467 = vpack.c.b16 %v414, %v413
      %v468 = vpack.c.b16 %v416, %v415
      %v469 = vpack.c.b16 %v418, %v417
      %v470 = vpack.c.b16 %v420, %v419
      %v471 = vpack.c.b16 %v422, %v421
      %v472 = vpack.c.b16 %v424, %v423
      %v473 = vpack.c.b16 %v426, %v425
      %v474 = vpack.c.b16 %v428, %v427
      %v475 = vpack.c.b16 %v430, %v429
      %v476 = vpack.c.b16 %v432, %v431
      %v477 = vpack.c.b16 %v434, %v433
      %v478 = vpack.c.b16 %v436, %v435
      %v479 = vpack.c.b16 %v438, %v437
      %v480 = vpack.c.b16 %v440, %v439
      %v481 = vpack.c.b16 %v442, %v441
      %v482 = vpack.c.b16 %v444, %v443
      %v483 = vpack.c.b16 %v446, %v445
      %v484 = vpack.c.b16 %v448, %v447
      %v485 = vpack.c.b16 %v450, %v449
      %v486 = vpack.c.b16 %v452, %v451
      %v487 = vpack.c.b16 %v454, %v453
      %v488 = vpack.c.b16 %v456, %v455
      %521 = vmatprep.subr.bf16.mxu0 0
      %522 = vmatpush1.bf16.msra.mxu0 %v464
      %523 = vmatprep.subr.bf16.mxu0 0
      %524 = vmatpush1.bf16.msra.mxu0 %v463
      %525 = vmatprep.subr.bf16.mxu0 0
      %526 = vmatpush1.bf16.msra.mxu0 %v462
      %527 = vmatprep.subr.bf16.mxu0 0
      %528 = vmatpush1.bf16.msra.mxu0 %v461
      %529 = vmatprep.subr.bf16.mxu0 0
      %530 = vmatpush1.bf16.msra.mxu0 %v460
      %531 = vmatprep.subr.bf16.mxu0 0
      %532 = vmatpush1.bf16.msra.mxu0 %v459
      %533 = vmatprep.subr.bf16.mxu0 0
      %534 = vmatpush1.bf16.msra.mxu0 %v458
      %535 = vmatprep.subr.bf16.mxu0 0
      %536 = vmatpush1.bf16.msra.mxu0 %v457
      %537 = vmatprep.subr.bf16.mxu0 0
      %538 = vmatpush2.bf16.msra.mxu0 %v472
      %539 = vmatprep.subr.bf16.mxu0 0
      %540 = vmatpush2.bf16.msra.mxu0 %v471
      %541 = vmatprep.subr.bf16.mxu0 0
      %542 = vmatpush2.bf16.msra.mxu0 %v470
      %543 = vmatprep.subr.bf16.mxu0 0
      %544 = vmatpush2.bf16.msra.mxu0 %v469
      %545 = vmatprep.subr.bf16.mxu0 0
      %546 = vmatpush2.bf16.msra.mxu0 %v468
      %547 = vmatprep.subr.bf16.mxu0 0
      %548 = vmatpush2.bf16.msra.mxu0 %v467
      %549 = vmatprep.subr.bf16.mxu0 0
      %550 = vmatpush2.bf16.msra.mxu0 %v466
      %551 = vmatprep.subr.bf16.mxu0 0
      %552 = vmatpush2.bf16.msra.mxu0 %v465
      %553 = vmatprep.mubr.bf16.mxu0 %v314
      %554 = vmatmul.mubr.bf16.gmra.mxu0 %v313
      %v555 = vpop.f32.mrf.mxu0
      %v556 = vadd.f32 0.0, %v555
      %v557 = vpop.f32.mrf.mxu0
      %v558 = vpop.f32.mrf.mxu0
      %v559 = vadd.f32 0.0, %v558
      %v560 = vpop.f32.mrf.mxu0
      %561 = vmatprep.mubr.bf16.mxu0 %v318
      %562 = vmatmul.mubr.bf16.gmra.mxu0 %v317
      %v563 = vpop.f32.mrf.mxu0
      %v564 = vadd.f32 0.0, %v563
      %v565 = vpop.f32.mrf.mxu0
      %v566 = vpop.f32.mrf.mxu0
      %v567 = vadd.f32 0.0, %v566
      %v568 = vpop.f32.mrf.mxu0
      %569 = vdwg.mxu0
      %570 = vmatprep.subr.bf16.mxu0 0
      %571 = vmatpush1.bf16.msra.mxu0 %v480
      %572 = vmatprep.subr.bf16.mxu0 0
      %573 = vmatpush1.bf16.msra.mxu0 %v479
      %574 = vmatprep.subr.bf16.mxu0 0
      %575 = vmatpush1.bf16.msra.mxu0 %v478
      %576 = vmatprep.subr.bf16.mxu0 0
      %577 = vmatpush1.bf16.msra.mxu0 %v477
      %578 = vmatprep.subr.bf16.mxu0 0
      %579 = vmatpush1.bf16.msra.mxu0 %v476
      %580 = vmatprep.subr.bf16.mxu0 0
      %581 = vmatpush1.bf16.msra.mxu0 %v475
      %582 = vmatprep.subr.bf16.mxu0 0
      %583 = vmatpush1.bf16.msra.mxu0 %v474
      %584 = vmatprep.subr.bf16.mxu0 0
      %585 = vmatpush1.bf16.msra.mxu0 %v473
      %586 = vmatprep.subr.bf16.mxu0 0
      %587 = vmatpush2.bf16.msra.mxu0 %v488
      %588 = vmatprep.subr.bf16.mxu0 0
      %589 = vmatpush2.bf16.msra.mxu0 %v487
      %590 = vmatprep.subr.bf16.mxu0 0
      %591 = vmatpush2.bf16.msra.mxu0 %v486
      %592 = vmatprep.subr.bf16.mxu0 0
      %593 = vmatpush2.bf16.msra.mxu0 %v485
      %594 = vmatprep.subr.bf16.mxu0 0
      %595 = vmatpush2.bf16.msra.mxu0 %v484
      %596 = vmatprep.subr.bf16.mxu0 0
      %597 = vmatpush2.bf16.msra.mxu0 %v483
      %598 = vmatprep.subr.bf16.mxu0 0
      %599 = vmatpush2.bf16.msra.mxu0 %v482
      %600 = vmatprep.subr.bf16.mxu0 0
      %601 = vmatpush2.bf16.msra.mxu0 %v481
      %602 = vmatprep.mubr.bf16.mxu0 %v316
      %603 = vmatmul.mubr.bf16.gmra.mxu0 %v315
      %v604 = vpop.f32.mrf.mxu0
      %v605 = vadd.f32 %v556, %v604
      %v606 = vpop.f32.mrf.mxu0
      %v607 = vpop.f32.mrf.mxu0
      %v608 = vadd.f32 %v559, %v607
      %v609 = vpop.f32.mrf.mxu0
      %610 = vmatprep.mubr.bf16.mxu0 %v320
      %611 = vmatmul.mubr.bf16.gmra.mxu0 %v319
      %v612 = vpop.f32.mrf.mxu0
      %v613 = vadd.f32 %v564, %v612
      %v614 = vpop.f32.mrf.mxu0
      %v615 = vpop.f32.mrf.mxu0
      %v616 = vadd.f32 %v567, %v615
      %v617 = vpop.f32.mrf.mxu0
      %618 = vdwg.mxu0
      %p619 = scmp.eq.s32.totalorder %s19, 0
      // Predicated region
      $region37: #{discriminator_forward.8} parent=35 // pred_check
        %p620 = pneg %p619
      $region38: #{discriminator_forward.8} parent=35 // pred_check_branch
        %622 = sbr.rel (%p620) target = $region40
      $region39: #{discriminator_forward.8} parent=35 // pred_region
        %p623 = scmp.eq.s32.totalorder %s20, 0
        // Predicated region
        $region41: #{discriminator_forward.8} parent=39 // pred_check
          %p624 = pneg %p623
        $region42: #{discriminator_forward.8} parent=39 // pred_check_branch
          %626 = sbr.rel (%p624) target = $region44
        $region43: #{discriminator_forward.8} parent=39 // pred_region
          %vm627 = vcmask 516096
          %628 = vst.msk [vmem:[#allocation2] sm:$0x1] %vm627, 0.0
          %629 = vst.msk [vmem:[#allocation3] sm:$0x1] %vm627, 0.0
        $region44: #{discriminator_forward.8} parent=39 // pred_fallthru
          _
        %v630 = vld [vmem:[#allocation2] sm:$0x1]
        %vm631 = vcmask 523264
        %v632 = vsel %vm631, %v605, 0.0
        %v633 = vsel %vm631, %v608, 0.0
        %v634 = vadd.f32 %v632, %v633
        %v635 = vsel %vm631, %v613, 0.0
        %v636 = vadd.f32 %v634, %v635
        %v637 = vsel %vm631, %v616, 0.0
        %v638 = vadd.f32 %v636, %v637
        %v639 = vrot.slane %v638, 4
        %v640 = vadd.f32 %v638, %v639
        %v641 = vrot.slane %v640, 2
        %v642 = vadd.f32 %v640, %v641
        %v643 = vrot.slane %v642, 1
        %v644 = vadd.f32 %v642, %v643
        %v645 = vadd.f32 %v630, %v644
        %vm646 = vcmask 516096
        %647 = vst.msk [vmem:[#allocation2] sm:$0x1] %vm646, %v645
        %v648 = vld [vmem:[#allocation3] sm:$0x1]
        %v649 = vmul.f32 %v605, %v605
        %v650 = vmul.f32 %v608, %v608
        %v651 = vmul.f32 %v613, %v613
        %v652 = vmul.f32 %v616, %v616
        %v653 = vsel %vm631, %v649, 0.0
        %v654 = vsel %vm631, %v650, 0.0
        %v655 = vadd.f32 %v653, %v654
        %v656 = vsel %vm631, %v651, 0.0
        %v657 = vadd.f32 %v655, %v656
        %v658 = vsel %vm631, %v652, 0.0
        %v659 = vadd.f32 %v657, %v658
        %v660 = vrot.slane %v659, 4
        %v661 = vadd.f32 %v659, %v660
        %v662 = vrot.slane %v661, 2
        %v663 = vadd.f32 %v661, %v662
        %v664 = vrot.slane %v663, 1
        %v665 = vadd.f32 %v663, %v664
        %v666 = vadd.f32 %v648, %v665
        %667 = vst.msk [vmem:[#allocation3] sm:$0x1] %vm646, %v666
      $region40: #{discriminator_forward.8} parent=35 // pred_fallthru
        _
      %p668 = scmp.eq.s32.totalorder %s19, 1
      // Predicated region
      $region45: #{discriminator_forward.8} parent=35 // pred_check
        %p669 = pneg %p668
      $region46: #{discriminator_forward.8} parent=35 // pred_check_branch
        %671 = sbr.rel (%p669) target = $region48
      $region47: #{discriminator_forward.8} parent=35 // pred_region
        %v672 = vld [vmem:[#allocation2] sm:$0x1]
        %v673 = vmul.f32 %v672, 0.03125
        %v674 = vld [vmem:[#allocation3] sm:$0x1]
        %v675 = vmul.f32 %v674, 0.03125
        %v676 = vmul.f32 %v673, %v673
        %v677 = vsub.f32 %v675, %v676
        %v678 = vmax.f32 %v677, 0.0
        %v679 = vadd.f32 %v678, 1e-05
        %v680 = vrsqrt.pop %v679
        %v681 = vld [vmem:[%s2] sm:$0x1]
        %v682 = vmul.f32 %v681, %v680
        %v683 = vld [vmem:[%s3] sm:$0x1]
        %v684 = vmul.f32 %v673, %v682
        %v685 = vsub.f32 %v683, %v684
        %v687 = vlaneseq
        %v688 = vshrl.u32 %v687, 7
        %v689 = vsub.s32 0, %v688
        %v690 = vrot.slane %v682, %v689
        %v692 = vmul.f32 %v605, %v690
        %v693 = vmul.f32 %v608, %v690
        %v694 = vmul.f32 %v613, %v690
        %v695 = vmul.f32 %v616, %v690
        %v697 = vlaneseq
        %v698 = vshrl.u32 %v697, 7
        %v699 = vsub.s32 0, %v698
        %v700 = vrot.slane %v685, %v699
        %v702 = vadd.f32 %v692, %v700
        %v703 = vadd.f32 %v693, %v700
        %v704 = vadd.f32 %v694, %v700
        %v705 = vadd.f32 %v695, %v700
        %vm706 = vcmp.ge.f32.partialorder %v702, 0.0
        %vm707 = vcmp.ge.f32.partialorder %v703, 0.0
        %vm708 = vcmp.ge.f32.partialorder %v704, 0.0
        %vm709 = vcmp.ge.f32.partialorder %v705, 0.0
        %v710 = vmul.f32 %v702, 0.2
        %v711 = vmul.f32 %v703, 0.2
        %v712 = vmul.f32 %v704, 0.2
        %v713 = vmul.f32 %v705, 0.2
        %v714 = vsel %vm706, %v702, %v710
        %v715 = vsel %vm707, %v703, %v711
        %v716 = vsel %vm708, %v704, %v712
        %v717 = vsel %vm709, %v705, %v713
        %v718 = vpack.c.bf16 %v715, %v714
        %v719 = vpack.c.bf16 %v717, %v716
        %v722 = vunpack.c.l.b16 %v718
        %v723 = vunpack.c.h.b16 %v718
        %v724 = vunpack.c.l.b16 %v719
        %v725 = vunpack.c.h.b16 %v719
        %v726 = vpack.c.b16 %v722, %v722
        %v727 = vpack.c.b16 %v723, %v723
        %v728 = vpack.c.b16 %v724, %v724
        %v729 = vpack.c.b16 %v725, %v725
        %vm734 = vcmask 519168
        %735 = vst.msk [vmem:[%s214] sm:$0xf] %vm734, %v726
        %736 = vst.msk [vmem:[%s214 + $0x4] sm:$0xf] %vm734, %v727
        %737 = vst.msk [vmem:[%s214 + $0x8] sm:$0xf] %vm734, %v728
        %738 = vst.msk [vmem:[%s214 + $0xc] sm:$0xf] %vm734, %v729
      $region48: #{discriminator_forward.8} parent=35 // pred_fallthru
        _
      %s739 = smul.u32 4, %s20
      %p740 = scmp.lt.s32.totalorder %s739, 3
      %s741 = scalar_select %p740, %s739, 3
      %s742 = smul.addr %s741, 4
      %s743 = scalar_lea.vmem %s4, %s742
      // Predicated region
      $region49: #{discriminator_forward.8} parent=35 // pred_check
        %p744 = pneg %p134
      $region50: #{discriminator_forward.8} parent=35 // pred_check_branch
        %746 = sbr.rel (%p744) target = $region52
      $region51: #{discriminator_forward.8} parent=35 // pred_region
        %s747 = smul.u32 4, %s20
      $region52: #{discriminator_forward.8} parent=35 // pred_fallthru
        _
      // Predicated region
      $region53: #{discriminator_forward.8} parent=35 // pred_check
        %p748 = pneg %p134
      $region54: #{discriminator_forward.8} parent=35 // pred_check_branch
        %750 = sbr.rel (%p748) target = $region56
      $region55: #{discriminator_forward.8} parent=35 // pred_region
        %s751 = smul.u32 4, %s20
        %p752 = scmp.lt.s32.totalorder %s751, 3
        %s753 = scalar_select %p752, %s751, 3
        %s754 = smul.addr %s753, 4
        %s755 = scalar_lea.vmem %s4, %s754
      $region56: #{discriminator_forward.8} parent=35 // pred_fallthru
        _
    $region36: #{discriminator_forward.8} parent=5 // pred_fallthru
      _
    %p756 = scmp.le.s32.totalorder 2, %s10
    // Predicated region
    $region57: #{discriminator_forward.8} parent=5 // pred_check
      %p757 = pneg %p756
    $region58: #{discriminator_forward.8} parent=5 // pred_check_branch
      %759 = sbr.rel (%p757) target = $region60
    $region59: #{discriminator_forward.8} parent=5 // pred_region
      %s760 = ssub.s32 %s10, 2
    $region60: #{discriminator_forward.8} parent=5 // pred_fallthru
      _
  $region6: #{discriminator_forward.8} parent=0 // loop_footer
    %s14 = sadd.s32 1, %s10
  $region7: #{discriminator_forward.8} parent=0 // loop_footer_branch
    %9 = sbr.rel target = $region3
  $region8: #{discriminator_forward.8} parent=0 // loop_exit
    _

// kernel: discriminator_forward.9
$region0: #{discriminator_forward.9}
  #allocation0 [shape = 'u32[]', space=smem, size = 0x4, offset = 0x4, fixed_abs, tag = 'smem constant byte address 0x4 - core index']
  #allocation1 [shape = 'u32[144,128]{1,0:T(1,128)}', space=vmem, size = 0x12000, scoped, tag = 'internal scratch']
  %s0 = inlined_call_operand.vmem [shape: bf16[8,1024], index: 0, kind: input, shape index: {}]
  %s1 = inlined_call_operand.vmem [shape: bf16[1024,1], index: 1, kind: input, shape index: {}]
  %s2 = inlined_call_operand.vmem [shape: f32[8,1], index: 2, kind: output, shape index: {}]
  %s3 = sld [smem:[#allocation0]]
  $region18: #{discriminator_forward.9} parent=0
    _
  %s5 = ssub.s32 1, %s3
  %s6 = scalar_select 0, %s5, %s3
  // Predicated region
  $region2: #{discriminator_forward.9} parent=0 // pred_check
    _
  $region3: #{discriminator_forward.9} parent=0 // pred_check_branch
    %8 = sbr.rel (0) target = $region5
  $region4: #{discriminator_forward.9} parent=0 // pred_region
    _
  $region5: #{discriminator_forward.9} parent=0 // pred_fallthru
    _
  // Predicated region
  $region6: #{discriminator_forward.9} parent=0 // pred_check
    _
  $region7: #{discriminator_forward.9} parent=0 // pred_check_branch
    %10 = sbr.rel (0) target = $region9
  $region8: #{discriminator_forward.9} parent=0 // pred_region
    _
  $region9: #{discriminator_forward.9} parent=0 // pred_fallthru
    _
  %v12 = vld [vmem:[%s0] sm:$0xff]
  %v13 = vld [vmem:[%s0 + $0x8] sm:$0xff]
  %v14 = vld [vmem:[%s0 + $0x10] sm:$0xff]
  %v15 = vld [vmem:[%s0 + $0x18] sm:$0xff]
  %v16 = vld [vmem:[%s1] sm:$0xf]
  %v17 = vld [vmem:[%s1 + $0x4] sm:$0xf]
  %v18 = vld [vmem:[%s1 + $0x8] sm:$0xf]
  %v19 = vld [vmem:[%s1 + $0xc] sm:$0xf]
  %v20 = vld [vmem:[%s1 + $0x10] sm:$0xf]
  %v21 = vld [vmem:[%s1 + $0x14] sm:$0xf]
  %v22 = vld [vmem:[%s1 + $0x18] sm:$0xf]
  %v23 = vld [vmem:[%s1 + $0x1c] sm:$0xf]
  %v24 = vld [vmem:[%s1 + $0x20] sm:$0xf]
  %v25 = vld [vmem:[%s1 + $0x24] sm:$0xf]
  %v26 = vld [vmem:[%s1 + $0x28] sm:$0xf]
  %v27 = vld [vmem:[%s1 + $0x2c] sm:$0xf]
  %v28 = vld [vmem:[%s1 + $0x30] sm:$0xf]
  %v29 = vld [vmem:[%s1 + $0x34] sm:$0xf]
  %v30 = vld [vmem:[%s1 + $0x38] sm:$0xf]
  %v31 = vld [vmem:[%s1 + $0x3c] sm:$0xf]
  %v32 = vld [vmem:[%s1 + $0x40] sm:$0xf]
  %v33 = vld [vmem:[%s1 + $0x44] sm:$0xf]
  %v34 = vld [vmem:[%s1 + $0x48] sm:$0xf]
  %v35 = vld [vmem:[%s1 + $0x4c] sm:$0xf]
  %v36 = vld [vmem:[%s1 + $0x50] sm:$0xf]
  %v37 = vld [vmem:[%s1 + $0x54] sm:$0xf]
  %v38 = vld [vmem:[%s1 + $0x58] sm:$0xf]
  %v39 = vld [vmem:[%s1 + $0x5c] sm:$0xf]
  %v40 = vld [vmem:[%s1 + $0x60] sm:$0xf]
  %v41 = vld [vmem:[%s1 + $0x64] sm:$0xf]
  %v42 = vld [vmem:[%s1 + $0x68] sm:$0xf]
  %v43 = vld [vmem:[%s1 + $0x6c] sm:$0xf]
  %v44 = vld [vmem:[%s1 + $0x70] sm:$0xf]
  %v45 = vld [vmem:[%s1 + $0x74] sm:$0xf]
  %v46 = vld [vmem:[%s1 + $0x78] sm:$0xf]
  %v47 = vld [vmem:[%s1 + $0x7c] sm:$0xf]
  %v48 = vld [vmem:[%s1 + $0x80] sm:$0xf]
  %v49 = vld [vmem:[%s1 + $0x84] sm:$0xf]
  %v50 = vld [vmem:[%s1 + $0x88] sm:$0xf]
  %v51 = vld [vmem:[%s1 + $0x8c] sm:$0xf]
  %v52 = vld [vmem:[%s1 + $0x90] sm:$0xf]
  %v53 = vld [vmem:[%s1 + $0x94] sm:$0xf]
  %v54 = vld [vmem:[%s1 + $0x98] sm:$0xf]
  %v55 = vld [vmem:[%s1 + $0x9c] sm:$0xf]
  %v56 = vld [vmem:[%s1 + $0xa0] sm:$0xf]
  %v57 = vld [vmem:[%s1 + $0xa4] sm:$0xf]
  %v58 = vld [vmem:[%s1 + $0xa8] sm:$0xf]
  %v59 = vld [vmem:[%s1 + $0xac] sm:$0xf]
  %v60 = vld [vmem:[%s1 + $0xb0] sm:$0xf]
  %v61 = vld [vmem:[%s1 + $0xb4] sm:$0xf]
  %v62 = vld [vmem:[%s1 + $0xb8] sm:$0xf]
  %v63 = vld [vmem:[%s1 + $0xbc] sm:$0xf]
  %v64 = vld [vmem:[%s1 + $0xc0] sm:$0xf]
  %v65 = vld [vmem:[%s1 + $0xc4] sm:$0xf]
  %v66 = vld [vmem:[%s1 + $0xc8] sm:$0xf]
  %v67 = vld [vmem:[%s1 + $0xcc] sm:$0xf]
  %v68 = vld [vmem:[%s1 + $0xd0] sm:$0xf]
  %v69 = vld [vmem:[%s1 + $0xd4] sm:$0xf]
  %v70 = vld [vmem:[%s1 + $0xd8] sm:$0xf]
  %v71 = vld [vmem:[%s1 + $0xdc] sm:$0xf]
  %v72 = vld [vmem:[%s1 + $0xe0] sm:$0xf]
  %v73 = vld [vmem:[%s1 + $0xe4] sm:$0xf]
  %v74 = vld [vmem:[%s1 + $0xe8] sm:$0xf]
  %v75 = vld [vmem:[%s1 + $0xec] sm:$0xf]
  %v76 = vld [vmem:[%s1 + $0xf0] sm:$0xf]
  %v77 = vld [vmem:[%s1 + $0xf4] sm:$0xf]
  %v78 = vld [vmem:[%s1 + $0xf8] sm:$0xf]
  %v79 = vld [vmem:[%s1 + $0xfc] sm:$0xf]
  %v80 = vld [vmem:[%s1 + $0x100] sm:$0xf]
  %v81 = vld [vmem:[%s1 + $0x104] sm:$0xf]
  %v82 = vld [vmem:[%s1 + $0x108] sm:$0xf]
  %v83 = vld [vmem:[%s1 + $0x10c] sm:$0xf]
  %v84 = vld [vmem:[%s1 + $0x110] sm:$0xf]
  %v85 = vld [vmem:[%s1 + $0x114] sm:$0xf]
  %v86 = vld [vmem:[%s1 + $0x118] sm:$0xf]
  %v87 = vld [vmem:[%s1 + $0x11c] sm:$0xf]
  %v88 = vld [vmem:[%s1 + $0x120] sm:$0xf]
  %v89 = vld [vmem:[%s1 + $0x124] sm:$0xf]
  %v90 = vld [vmem:[%s1 + $0x128] sm:$0xf]
  %v91 = vld [vmem:[%s1 + $0x12c] sm:$0xf]
  %v92 = vld [vmem:[%s1 + $0x130] sm:$0xf]
  %v93 = vld [vmem:[%s1 + $0x134] sm:$0xf]
  %v94 = vld [vmem:[%s1 + $0x138] sm:$0xf]
  %v95 = vld [vmem:[%s1 + $0x13c] sm:$0xf]
  %v96 = vld [vmem:[%s1 + $0x140] sm:$0xf]
  %v97 = vld [vmem:[%s1 + $0x144] sm:$0xf]
  %v98 = vld [vmem:[%s1 + $0x148] sm:$0xf]
  %v99 = vld [vmem:[%s1 + $0x14c] sm:$0xf]
  %v100 = vld [vmem:[%s1 + $0x150] sm:$0xf]
  %v101 = vld [vmem:[%s1 + $0x154] sm:$0xf]
  %v102 = vld [vmem:[%s1 + $0x158] sm:$0xf]
  %v103 = vld [vmem:[%s1 + $0x15c] sm:$0xf]
  %v104 = vld [vmem:[%s1 + $0x160] sm:$0xf]
  %v105 = vld [vmem:[%s1 + $0x164] sm:$0xf]
  %v106 = vld [vmem:[%s1 + $0x168] sm:$0xf]
  %v107 = vld [vmem:[%s1 + $0x16c] sm:$0xf]
  %v108 = vld [vmem:[%s1 + $0x170] sm:$0xf]
  %v109 = vld [vmem:[%s1 + $0x174] sm:$0xf]
  %v110 = vld [vmem:[%s1 + $0x178] sm:$0xf]
  %v111 = vld [vmem:[%s1 + $0x17c] sm:$0xf]
  %v112 = vld [vmem:[%s1 + $0x180] sm:$0xf]
  %v113 = vld [vmem:[%s1 + $0x184] sm:$0xf]
  %v114 = vld [vmem:[%s1 + $0x188] sm:$0xf]
  %v115 = vld [vmem:[%s1 + $0x18c] sm:$0xf]
  %v116 = vld [vmem:[%s1 + $0x190] sm:$0xf]
  %v117 = vld [vmem:[%s1 + $0x194] sm:$0xf]
  %v118 = vld [vmem:[%s1 + $0x198] sm:$0xf]
  %v119 = vld [vmem:[%s1 + $0x19c] sm:$0xf]
  %v120 = vld [vmem:[%s1 + $0x1a0] sm:$0xf]
  %v121 = vld [vmem:[%s1 + $0x1a4] sm:$0xf]
  %v122 = vld [vmem:[%s1 + $0x1a8] sm:$0xf]
  %v123 = vld [vmem:[%s1 + $0x1ac] sm:$0xf]
  %v124 = vld [vmem:[%s1 + $0x1b0] sm:$0xf]
  %v125 = vld [vmem:[%s1 + $0x1b4] sm:$0xf]
  %v126 = vld [vmem:[%s1 + $0x1b8] sm:$0xf]
  %v127 = vld [vmem:[%s1 + $0x1bc] sm:$0xf]
  %v128 = vld [vmem:[%s1 + $0x1c0] sm:$0xf]
  %v129 = vld [vmem:[%s1 + $0x1c4] sm:$0xf]
  %v130 = vld [vmem:[%s1 + $0x1c8] sm:$0xf]
  %v131 = vld [vmem:[%s1 + $0x1cc] sm:$0xf]
  %v132 = vld [vmem:[%s1 + $0x1d0] sm:$0xf]
  %v133 = vld [vmem:[%s1 + $0x1d4] sm:$0xf]
  %v134 = vld [vmem:[%s1 + $0x1d8] sm:$0xf]
  %v135 = vld [vmem:[%s1 + $0x1dc] sm:$0xf]
  %v136 = vld [vmem:[%s1 + $0x1e0] sm:$0xf]
  %v137 = vld [vmem:[%s1 + $0x1e4] sm:$0xf]
  %v138 = vld [vmem:[%s1 + $0x1e8] sm:$0xf]
  %v139 = vld [vmem:[%s1 + $0x1ec] sm:$0xf]
  %v140 = vld [vmem:[%s1 + $0x1f0] sm:$0xf]
  %v141 = vld [vmem:[%s1 + $0x1f4] sm:$0xf]
  %v142 = vld [vmem:[%s1 + $0x1f8] sm:$0xf]
  %v143 = vld [vmem:[%s1 + $0x1fc] sm:$0xf]
  %v148 = vunpack.c.l.b16 %v12
  %v149 = vunpack.c.h.b16 %v12
  %v150 = vunpack.c.l.b16 %v13
  %v151 = vunpack.c.h.b16 %v13
  %v152 = vunpack.c.l.b16 %v14
  %v153 = vunpack.c.h.b16 %v14
  %v154 = vunpack.c.l.b16 %v15
  %v155 = vunpack.c.h.b16 %v15
  %v156 = vpack.c.b16 %v148, %v148
  %v157 = vpack.c.b16 %v149, %v149
  %v158 = vpack.c.b16 %v150, %v150
  %v159 = vpack.c.b16 %v151, %v151
  %v160 = vpack.c.b16 %v152, %v152
  %v161 = vpack.c.b16 %v153, %v153
  %v162 = vpack.c.b16 %v154, %v154
  %v163 = vpack.c.b16 %v155, %v155
  %v300 = vunpack.c.l.b16 %v16
  %v301 = vunpack.c.l.b16 %v17
  %v302 = vunpack.c.l.b16 %v18
  %v303 = vunpack.c.l.b16 %v19
  %v304 = vunpack.c.l.b16 %v20
  %v305 = vunpack.c.l.b16 %v21
  %v306 = vunpack.c.l.b16 %v22
  %v307 = vunpack.c.l.b16 %v23
  %v308 = vunpack.c.l.b16 %v24
  %v309 = vunpack.c.l.b16 %v25
  %v310 = vunpack.c.l.b16 %v26
  %v311 = vunpack.c.l.b16 %v27
  %v312 = vunpack.c.l.b16 %v28
  %v313 = vunpack.c.l.b16 %v29
  %v314 = vunpack.c.l.b16 %v30
  %v315 = vunpack.c.l.b16 %v31
  %v316 = vunpack.c.l.b16 %v32
  %v317 = vunpack.c.l.b16 %v33
  %v318 = vunpack.c.l.b16 %v34
  %v319 = vunpack.c.l.b16 %v35
  %v320 = vunpack.c.l.b16 %v36
  %v321 = vunpack.c.l.b16 %v37
  %v322 = vunpack.c.l.b16 %v38
  %v323 = vunpack.c.l.b16 %v39
  %v324 = vunpack.c.l.b16 %v40
  %v325 = vunpack.c.l.b16 %v41
  %v326 = vunpack.c.l.b16 %v42
  %v327 = vunpack.c.l.b16 %v43
  %v328 = vunpack.c.l.b16 %v44
  %v329 = vunpack.c.l.b16 %v45
  %v330 = vunpack.c.l.b16 %v46
  %v331 = vunpack.c.l.b16 %v47
  %v332 = vunpack.c.l.b16 %v48
  %v333 = vunpack.c.l.b16 %v49
  %v334 = vunpack.c.l.b16 %v50
  %v335 = vunpack.c.l.b16 %v51
  %v336 = vunpack.c.l.b16 %v52
  %v337 = vunpack.c.l.b16 %v53
  %v338 = vunpack.c.l.b16 %v54
  %v339 = vunpack.c.l.b16 %v55
  %v340 = vunpack.c.l.b16 %v56
  %v341 = vunpack.c.l.b16 %v57
  %v342 = vunpack.c.l.b16 %v58
  %v343 = vunpack.c.l.b16 %v59
  %v344 = vunpack.c.l.b16 %v60
  %v345 = vunpack.c.l.b16 %v61
  %v346 = vunpack.c.l.b16 %v62
  %v347 = vunpack.c.l.b16 %v63
  %v348 = vunpack.c.l.b16 %v64
  %v349 = vunpack.c.l.b16 %v65
  %v350 = vunpack.c.l.b16 %v66
  %v351 = vunpack.c.l.b16 %v67
  %v352 = vunpack.c.l.b16 %v68
  %v353 = vunpack.c.l.b16 %v69
  %v354 = vunpack.c.l.b16 %v70
  %v355 = vunpack.c.l.b16 %v71
  %v356 = vunpack.c.l.b16 %v72
  %v357 = vunpack.c.l.b16 %v73
  %v358 = vunpack.c.l.b16 %v74
  %v359 = vunpack.c.l.b16 %v75
  %v360 = vunpack.c.l.b16 %v76
  %v361 = vunpack.c.l.b16 %v77
  %v362 = vunpack.c.l.b16 %v78
  %v363 = vunpack.c.l.b16 %v79
  %v364 = vunpack.c.l.b16 %v80
  %v365 = vunpack.c.l.b16 %v81
  %v366 = vunpack.c.l.b16 %v82
  %v367 = vunpack.c.l.b16 %v83
  %v368 = vunpack.c.l.b16 %v84
  %v369 = vunpack.c.l.b16 %v85
  %v370 = vunpack.c.l.b16 %v86
  %v371 = vunpack.c.l.b16 %v87
  %v372 = vunpack.c.l.b16 %v88
  %v373 = vunpack.c.l.b16 %v89
  %v374 = vunpack.c.l.b16 %v90
  %v375 = vunpack.c.l.b16 %v91
  %v376 = vunpack.c.l.b16 %v92
  %v377 = vunpack.c.l.b16 %v93
  %v378 = vunpack.c.l.b16 %v94
  %v379 = vunpack.c.l.b16 %v95
  %v380 = vunpack.c.l.b16 %v96
  %v381 = vunpack.c.l.b16 %v97
  %v382 = vunpack.c.l.b16 %v98
  %v383 = vunpack.c.l.b16 %v99
  %v384 = vunpack.c.l.b16 %v100
  %v385 = vunpack.c.l.b16 %v101
  %v386 = vunpack.c.l.b16 %v102
  %v387 = vunpack.c.l.b16 %v103
  %v388 = vunpack.c.l.b16 %v104
  %v389 = vunpack.c.l.b16 %v105
  %v390 = vunpack.c.l.b16 %v106
  %v391 = vunpack.c.l.b16 %v107
  %v392 = vunpack.c.l.b16 %v108
  %v393 = vunpack.c.l.b16 %v109
  %v394 = vunpack.c.l.b16 %v110
  %v395 = vunpack.c.l.b16 %v111
  %v396 = vunpack.c.l.b16 %v112
  %v397 = vunpack.c.l.b16 %v113
  %v398 = vunpack.c.l.b16 %v114
  %v399 = vunpack.c.l.b16 %v115
  %v400 = vunpack.c.l.b16 %v116
  %v401 = vunpack.c.l.b16 %v117
  %v402 = vunpack.c.l.b16 %v118
  %v403 = vunpack.c.l.b16 %v119
  %v404 = vunpack.c.l.b16 %v120
  %v405 = vunpack.c.l.b16 %v121
  %v406 = vunpack.c.l.b16 %v122
  %v407 = vunpack.c.l.b16 %v123
  %v408 = vunpack.c.l.b16 %v124
  %v409 = vunpack.c.l.b16 %v125
  %v410 = vunpack.c.l.b16 %v126
  %v411 = vunpack.c.l.b16 %v127
  %v412 = vunpack.c.l.b16 %v128
  %v413 = vunpack.c.l.b16 %v129
  %v414 = vunpack.c.l.b16 %v130
  %v415 = vunpack.c.l.b16 %v131
  %v416 = vunpack.c.l.b16 %v132
  %v417 = vunpack.c.l.b16 %v133
  %v418 = vunpack.c.l.b16 %v134
  %v419 = vunpack.c.l.b16 %v135
  %v420 = vunpack.c.l.b16 %v136
  %v421 = vunpack.c.l.b16 %v137
  %v422 = vunpack.c.l.b16 %v138
  %v423 = vunpack.c.l.b16 %v139
  %v424 = vunpack.c.l.b16 %v140
  %v425 = vunpack.c.l.b16 %v141
  %v426 = vunpack.c.l.b16 %v142
  %v427 = vunpack.c.l.b16 %v143
  %v428 = vpack.c.b16 %v301, %v300
  %v429 = vpack.c.b16 %v303, %v302
  %v430 = vpack.c.b16 %v305, %v304
  %v431 = vpack.c.b16 %v307, %v306
  %v432 = vpack.c.b16 %v309, %v308
  %v433 = vpack.c.b16 %v311, %v310
  %v434 = vpack.c.b16 %v313, %v312
  %v435 = vpack.c.b16 %v315, %v314
  %v436 = vpack.c.b16 %v317, %v316
  %v437 = vpack.c.b16 %v319, %v318
  %v438 = vpack.c.b16 %v321, %v320
  %v439 = vpack.c.b16 %v323, %v322
  %v440 = vpack.c.b16 %v325, %v324
  %v441 = vpack.c.b16 %v327, %v326
  %v442 = vpack.c.b16 %v329, %v328
  %v443 = vpack.c.b16 %v331, %v330
  %v444 = vpack.c.b16 %v333, %v332
  %v445 = vpack.c.b16 %v335, %v334
  %v446 = vpack.c.b16 %v337, %v336
  %v447 = vpack.c.b16 %v339, %v338
  %v448 = vpack.c.b16 %v341, %v340
  %v449 = vpack.c.b16 %v343, %v342
  %v450 = vpack.c.b16 %v345, %v344
  %v451 = vpack.c.b16 %v347, %v346
  %v452 = vpack.c.b16 %v349, %v348
  %v453 = vpack.c.b16 %v351, %v350
  %v454 = vpack.c.b16 %v353, %v352
  %v455 = vpack.c.b16 %v355, %v354
  %v456 = vpack.c.b16 %v357, %v356
  %v457 = vpack.c.b16 %v359, %v358
  %v458 = vpack.c.b16 %v361, %v360
  %v459 = vpack.c.b16 %v363, %v362
  %v460 = vpack.c.b16 %v365, %v364
  %v461 = vpack.c.b16 %v367, %v366
  %v462 = vpack.c.b16 %v369, %v368
  %v463 = vpack.c.b16 %v371, %v370
  %v464 = vpack.c.b16 %v373, %v372
  %v465 = vpack.c.b16 %v375, %v374
  %v466 = vpack.c.b16 %v377, %v376
  %v467 = vpack.c.b16 %v379, %v378
  %v468 = vpack.c.b16 %v381, %v380
  %v469 = vpack.c.b16 %v383, %v382
  %v470 = vpack.c.b16 %v385, %v384
  %v471 = vpack.c.b16 %v387, %v386
  %v472 = vpack.c.b16 %v389, %v388
  %v473 = vpack.c.b16 %v391, %v390
  %v474 = vpack.c.b16 %v393, %v392
  %v475 = vpack.c.b16 %v395, %v394
  %v476 = vpack.c.b16 %v397, %v396
  %v477 = vpack.c.b16 %v399, %v398
  %v478 = vpack.c.b16 %v401, %v400
  %v479 = vpack.c.b16 %v403, %v402
  %v480 = vpack.c.b16 %v405, %v404
  %v481 = vpack.c.b16 %v407, %v406
  %v482 = vpack.c.b16 %v409, %v408
  %v483 = vpack.c.b16 %v411, %v410
  %v484 = vpack.c.b16 %v413, %v412
  %v485 = vpack.c.b16 %v415, %v414
  %v486 = vpack.c.b16 %v417, %v416
  %v487 = vpack.c.b16 %v419, %v418
  %v488 = vpack.c.b16 %v421, %v420
  %v489 = vpack.c.b16 %v423, %v422
  %v490 = vpack.c.b16 %v425, %v424
  %v491 = vpack.c.b16 %v427, %v426
  %556 = vmatprep.subr.bf16.mxu0 0
  %557 = vmatpush1.bf16.msra.mxu0 %v435
  %558 = vmatprep.subr.bf16.mxu0 0
  %559 = vmatpush1.bf16.msra.mxu0 %v434
  %560 = vmatprep.subr.bf16.mxu0 0
  %561 = vmatpush1.bf16.msra.mxu0 %v433
  %562 = vmatprep.subr.bf16.mxu0 0
  %563 = vmatpush1.bf16.msra.mxu0 %v432
  %564 = vmatprep.subr.bf16.mxu0 0
  %565 = vmatpush1.bf16.msra.mxu0 %v431
  %566 = vmatprep.subr.bf16.mxu0 0
  %567 = vmatpush1.bf16.msra.mxu0 %v430
  %568 = vmatprep.subr.bf16.mxu0 0
  %569 = vmatpush1.bf16.msra.mxu0 %v429
  %570 = vmatprep.subr.bf16.mxu0 0
  %571 = vmatpush1.bf16.msra.mxu0 %v428
  %572 = vmatprep.subr.bf16.mxu0 0
  %573 = vmatpush2.bf16.msra.mxu0 %v443
  %574 = vmatprep.subr.bf16.mxu0 0
  %575 = vmatpush2.bf16.msra.mxu0 %v442
  %576 = vmatprep.subr.bf16.mxu0 0
  %577 = vmatpush2.bf16.msra.mxu0 %v441
  %578 = vmatprep.subr.bf16.mxu0 0
  %579 = vmatpush2.bf16.msra.mxu0 %v440
  %580 = vmatprep.subr.bf16.mxu0 0
  %581 = vmatpush2.bf16.msra.mxu0 %v439
  %582 = vmatprep.subr.bf16.mxu0 0
  %583 = vmatpush2.bf16.msra.mxu0 %v438
  %584 = vmatprep.subr.bf16.mxu0 0
  %585 = vmatpush2.bf16.msra.mxu0 %v437
  %586 = vmatprep.subr.bf16.mxu0 0
  %587 = vmatpush2.bf16.msra.mxu0 %v436
  %588 = vmatprep.mubr.bf16.mxu0 %v157
  %589 = vmatmul.mubr.bf16.gmra.mxu0 %v156
  %v590 = vpop.f32.mrf.mxu0
  %v591 = vadd.f32 0.0, %v590
  %v592 = vpop.f32.mrf.mxu0
  %v593 = vpop.f32.mrf.mxu0
  %v594 = vpop.f32.mrf.mxu0
  %595 = vdwg.mxu0
  %596 = vmatprep.subr.bf16.mxu0 0
  %597 = vmatpush1.bf16.msra.mxu0 %v451
  %598 = vmatprep.subr.bf16.mxu0 0
  %599 = vmatpush1.bf16.msra.mxu0 %v450
  %600 = vmatprep.subr.bf16.mxu0 0
  %601 = vmatpush1.bf16.msra.mxu0 %v449
  %602 = vmatprep.subr.bf16.mxu0 0
  %603 = vmatpush1.bf16.msra.mxu0 %v448
  %604 = vmatprep.subr.bf16.mxu0 0
  %605 = vmatpush1.bf16.msra.mxu0 %v447
  %606 = vmatprep.subr.bf16.mxu0 0
  %607 = vmatpush1.bf16.msra.mxu0 %v446
  %608 = vmatprep.subr.bf16.mxu0 0
  %609 = vmatpush1.bf16.msra.mxu0 %v445
  %610 = vmatprep.subr.bf16.mxu0 0
  %611 = vmatpush1.bf16.msra.mxu0 %v444
  %612 = vmatprep.subr.bf16.mxu0 0
  %613 = vmatpush2.bf16.msra.mxu0 %v459
  %614 = vmatprep.subr.bf16.mxu0 0
  %615 = vmatpush2.bf16.msra.mxu0 %v458
  %616 = vmatprep.subr.bf16.mxu0 0
  %617 = vmatpush2.bf16.msra.mxu0 %v457
  %618 = vmatprep.subr.bf16.mxu0 0
  %619 = vmatpush2.bf16.msra.mxu0 %v456
  %620 = vmatprep.subr.bf16.mxu0 0
  %621 = vmatpush2.bf16.msra.mxu0 %v455
  %622 = vmatprep.subr.bf16.mxu0 0
  %623 = vmatpush2.bf16.msra.mxu0 %v454
  %624 = vmatprep.subr.bf16.mxu0 0
  %625 = vmatpush2.bf16.msra.mxu0 %v453
  %626 = vmatprep.subr.bf16.mxu0 0
  %627 = vmatpush2.bf16.msra.mxu0 %v452
  %628 = vmatprep.mubr.bf16.mxu0 %v159
  %629 = vmatmul.mubr.bf16.gmra.mxu0 %v158
  %v630 = vpop.f32.mrf.mxu0
  %v631 = vadd.f32 %v591, %v630
  %v632 = vpop.f32.mrf.mxu0
  %v633 = vpop.f32.mrf.mxu0
  %v634 = vpop.f32.mrf.mxu0
  %635 = vdwg.mxu0
  %636 = vmatprep.subr.bf16.mxu0 0
  %637 = vmatpush1.bf16.msra.mxu0 %v467
  %638 = vmatprep.subr.bf16.mxu0 0
  %639 = vmatpush1.bf16.msra.mxu0 %v466
  %640 = vmatprep.subr.bf16.mxu0 0
  %641 = vmatpush1.bf16.msra.mxu0 %v465
  %642 = vmatprep.subr.bf16.mxu0 0
  %643 = vmatpush1.bf16.msra.mxu0 %v464
  %644 = vmatprep.subr.bf16.mxu0 0
  %645 = vmatpush1.bf16.msra.mxu0 %v463
  %646 = vmatprep.subr.bf16.mxu0 0
  %647 = vmatpush1.bf16.msra.mxu0 %v462
  %648 = vmatprep.subr.bf16.mxu0 0
  %649 = vmatpush1.bf16.msra.mxu0 %v461
  %650 = vmatprep.subr.bf16.mxu0 0
  %651 = vmatpush1.bf16.msra.mxu0 %v460
  %652 = vmatprep.subr.bf16.mxu0 0
  %653 = vmatpush2.bf16.msra.mxu0 %v475
  %654 = vmatprep.subr.bf16.mxu0 0
  %655 = vmatpush2.bf16.msra.mxu0 %v474
  %656 = vmatprep.subr.bf16.mxu0 0
  %657 = vmatpush2.bf16.msra.mxu0 %v473
  %658 = vmatprep.subr.bf16.mxu0 0
  %659 = vmatpush2.bf16.msra.mxu0 %v472
  %660 = vmatprep.subr.bf16.mxu0 0
  %661 = vmatpush2.bf16.msra.mxu0 %v471
  %662 = vmatprep.subr.bf16.mxu0 0
  %663 = vmatpush2.bf16.msra.mxu0 %v470
  %664 = vmatprep.subr.bf16.mxu0 0
  %665 = vmatpush2.bf16.msra.mxu0 %v469
  %666 = vmatprep.subr.bf16.mxu0 0
  %667 = vmatpush2.bf16.msra.mxu0 %v468
  %668 = vmatprep.mubr.bf16.mxu0 %v161
  %669 = vmatmul.mubr.bf16.gmra.mxu0 %v160
  %v670 = vpop.f32.mrf.mxu0
  %v671 = vadd.f32 %v631, %v670
  %v672 = vpop.f32.mrf.mxu0
  %v673 = vpop.f32.mrf.mxu0
  %v674 = vpop.f32.mrf.mxu0
  %675 = vdwg.mxu0
  %676 = vmatprep.subr.bf16.mxu0 0
  %677 = vmatpush1.bf16.msra.mxu0 %v483
  %678 = vmatprep.subr.bf16.mxu0 0
  %679 = vmatpush1.bf16.msra.mxu0 %v482
  %680 = vmatprep.subr.bf16.mxu0 0
  %681 = vmatpush1.bf16.msra.mxu0 %v481
  %682 = vmatprep.subr.bf16.mxu0 0
  %683 = vmatpush1.bf16.msra.mxu0 %v480
  %684 = vmatprep.subr.bf16.mxu0 0
  %685 = vmatpush1.bf16.msra.mxu0 %v479
  %686 = vmatprep.subr.bf16.mxu0 0
  %687 = vmatpush1.bf16.msra.mxu0 %v478
  %688 = vmatprep.subr.bf16.mxu0 0
  %689 = vmatpush1.bf16.msra.mxu0 %v477
  %690 = vmatprep.subr.bf16.mxu0 0
  %691 = vmatpush1.bf16.msra.mxu0 %v476
  %692 = vmatprep.subr.bf16.mxu0 0
  %693 = vmatpush2.bf16.msra.mxu0 %v491
  %694 = vmatprep.subr.bf16.mxu0 0
  %695 = vmatpush2.bf16.msra.mxu0 %v490
  %696 = vmatprep.subr.bf16.mxu0 0
  %697 = vmatpush2.bf16.msra.mxu0 %v489
  %698 = vmatprep.subr.bf16.mxu0 0
  %699 = vmatpush2.bf16.msra.mxu0 %v488
  %700 = vmatprep.subr.bf16.mxu0 0
  %701 = vmatpush2.bf16.msra.mxu0 %v487
  %702 = vmatprep.subr.bf16.mxu0 0
  %703 = vmatpush2.bf16.msra.mxu0 %v486
  %704 = vmatprep.subr.bf16.mxu0 0
  %705 = vmatpush2.bf16.msra.mxu0 %v485
  %706 = vmatprep.subr.bf16.mxu0 0
  %707 = vmatpush2.bf16.msra.mxu0 %v484
  %708 = vmatprep.mubr.bf16.mxu0 %v163
  %709 = vmatmul.mubr.bf16.gmra.mxu0 %v162
  %v710 = vpop.f32.mrf.mxu0
  %v711 = vadd.f32 %v671, %v710
  %v712 = vpop.f32.mrf.mxu0
  %v713 = vpop.f32.mrf.mxu0
  %v714 = vpop.f32.mrf.mxu0
  %715 = vdwg.mxu0
  %v716 = vxor.u32 %v711, 2147483648
  %v717 = vmul.f32 %v716, 1.442695
  %v718 = vpow.pop %v717
  %v719 = vadd.f32 %v718, 1.0
  %v720 = vrcp.pop %v719
  %v721 = vmul.f32 1.0, %v720
  %vm722 = vcmask 7168
  %723 = vst.msk [vmem:[%s2] sm:$0xff] %vm722, %v721
  // Predicated region
  $region10: #{discriminator_forward.9} parent=0 // pred_check
    _
  $region11: #{discriminator_forward.9} parent=0 // pred_check_branch
    %725 = sbr.rel (0) target = $region13
  $region12: #{discriminator_forward.9} parent=0 // pred_region
    _
  $region13: #{discriminator_forward.9} parent=0 // pred_fallthru
    _
  // Predicated region
  $region14: #{discriminator_forward.9} parent=0 // pred_check
    _
  $region15: #{discriminator_forward.9} parent=0 // pred_check_branch
    %727 = sbr.rel (0) target = $region17
  $region16: #{discriminator_forward.9} parent=0 // pred_region
    _
  $region17: #{discriminator_forward.9} parent=0 // pred_fallthru
    _

</llo_original>
